<compile_context>
chip_gen: v7x
topology: tpu7x:2x2x1
jax: 0.10.0
libtpu: 0.0.40
codegen_flags: <defaults>
</compile_context>

<pallas_src>
import jax
import jax.numpy as jnp
from jax.experimental import pallas as pl
from jax.experimental.pallas import tpu as pltpu


def _attn_dropout_kernel(recip_ref, scale_ref, thresh_ref,
                         q_ref, k_ref, v_ref, r_ref, o_ref):
    """One batch-chunk per grid step; all seq/feature dims fit one VMEM tile."""
    q = q_ref[...]        # (BB, Sq, D)
    k = k_ref[...]        # (BB, Sk, D)
    v = v_ref[...]        # (BB, Sk, D)
    rbits = r_ref[...]    # (BB, Sq, Sk) uint32 random bits

    recip = recip_ref[0]        # 1 / inv_scale_factor
    drop_scale = scale_ref[0]   # 1 / (1 - p), or 0.0 when p >= 1
    thresh = thresh_ref[0]      # uint32 threshold: keep iff bits >= thresh

    # Scaled scores: batched contraction over the feature dim.
    # (einsum -> dot_general with batch dims; no explicit k transpose.)
    s = jnp.einsum("bqd,bkd->bqk", q, k,
                   preferred_element_type=jnp.float32) * recip   # (BB, Sq, Sk)

    # Softmax over the last dim.  Only the (BB, Sq, 1) row-sum column is
    # divided; its reciprocal is fused with the dropout rescale into one
    # full-tile multiply.
    m = jnp.max(s, axis=-1, keepdims=True)
    e = jnp.exp(s - m)
    l = jnp.sum(e, axis=-1, keepdims=True)
    inv_l = 1.0 / l                                   # tiny tensor, cheap

    keep = rbits >= thresh                            # P(keep) = 1 - p
    dm = jnp.where(keep, e * (inv_l * drop_scale), 0.0)

    out = jnp.einsum("bqk,bkd->bqd", dm.astype(v.dtype), v,
                     preferred_element_type=jnp.float32)
    o_ref[...] = out.astype(o_ref.dtype)


def attention_dropout(q, k, v, inv_scale_factor, dropout_p, seed=0):
    B, Sq, D = q.shape
    _, Sk, _ = k.shape

    # --- scalar prep (host / XLA side; keeps the vector path minimal) -------
    p = jnp.float32(dropout_p)
    keep_prob = jnp.maximum(jnp.float32(1.0) - p, jnp.float32(0.0))
    # p >= 1  ->  drop_scale = 0  ->  exact zeros (matches torch dropout(p=1))
    drop_scale = jnp.where(keep_prob > 0.0,
                           1.0 / jnp.maximum(keep_prob, jnp.float32(1e-30)),
                           jnp.float32(0.0))
    # keep element iff uint32 random bits >= floor(p * 2^32)  (clamped to u32)
    thresh = jnp.minimum(p * jnp.float32(4294967296.0),
                         jnp.float32(4294967040.0)).astype(jnp.uint32)
    recip = jnp.float32(1.0) / jnp.float32(inv_scale_factor)

    # Random bits for the dropout mask (no in-kernel stateful PRNG needed).
    rbits = jax.random.bits(jax.random.PRNGKey(seed), (B, Sq, Sk),
                            dtype=jnp.uint32)

    # Batch split: 2 blocks when possible so v7x can run them on both
    # TensorCores ("parallel"); one extra grid step is negligible on v5e/v6e.
    G = 2 if (B % 2 == 0 and B >= 2) else 1
    BB = B // G

    flops = 2 * B * Sq * Sk * D * 2            # two matmuls
    bytes_accessed = 4 * (q.size + k.size + v.size + B * Sq * D + B * Sq * Sk)
    cost = pl.CostEstimate(flops=flops,
                           transcendentals=B * Sq * Sk,
                           bytes_accessed=bytes_accessed)

    return pl.pallas_call(
        _attn_dropout_kernel,
        out_shape=jax.ShapeDtypeStruct((B, Sq, D), q.dtype),
        grid=(G,),
        in_specs=[
            pl.BlockSpec(memory_space=pltpu.SMEM),              # recip
            pl.BlockSpec(memory_space=pltpu.SMEM),              # drop_scale
            pl.BlockSpec(memory_space=pltpu.SMEM),              # thresh
            pl.BlockSpec((BB, Sq, D), lambda b: (b, 0, 0)),     # q
            pl.BlockSpec((BB, Sk, D), lambda b: (b, 0, 0)),     # k
            pl.BlockSpec((BB, Sk, D), lambda b: (b, 0, 0)),     # v
            pl.BlockSpec((BB, Sq, Sk), lambda b: (b, 0, 0)),    # random bits
        ],
        out_specs=pl.BlockSpec((BB, Sq, D), lambda b: (b, 0, 0)),
        compiler_params=pltpu.CompilerParams(
            dimension_semantics=("parallel",),
        ),
        cost_estimate=cost,
    )(jnp.reshape(recip, (1,)),
      jnp.reshape(drop_scale, (1,)),
      jnp.reshape(thresh, (1,)),
      q, k, v, rbits)


if __name__ == "__main__":
    key = jax.random.PRNGKey(0)

    # Shapes from the original spec: q (20, 50, 200), k/v (20, 13, 200).
    B, Sq, Sk, D = 20, 50, 13, 200
    kq, kk, kv = jax.random.split(key, 3)
    q = jax.random.normal(kq, (B, Sq, D), jnp.float32)
    k = jax.random.normal(kk, (B, Sk, D), jnp.float32)
    v = jax.random.normal(kv, (B, Sk, D), jnp.float32)

    inv_scale_factor = 1.0
    dropout_p = 1.0  # matches the reference script: F.dropout(p=1) -> all zeros

    out = jax.block_until_ready(
        attention_dropout(q, k, v, inv_scale_factor, dropout_p, seed=0))
    assert out.shape == (B, Sq, D)
    assert bool(jnp.allclose(out, 0.0)), "dropout(p=1) should yield all-zero output"

    # Extra check with p == 0 (identity dropout) against a pure-JAX reference.
    # Use sqrt(D) scaling here so the check is robust to MXU f32 matmul
    # precision differences between the kernel and the XLA reference.
    inv_scale_chk = float(D) ** 0.5
    out_p0 = jax.block_until_ready(
        attention_dropout(q, k, v, inv_scale_chk, 0.0, seed=0))
    ref_sm = jax.nn.softmax(
        jnp.einsum("bqd,bkd->bqk", q, k) / inv_scale_chk, axis=-1)
    ref_p0 = jnp.einsum("bqk,bkd->bqd", ref_sm, v)
    assert bool(jnp.allclose(out_p0, ref_p0, atol=2e-2, rtol=2e-2))

    print("KERNEL_OK")
</pallas_src>

<mosaic_0001>
module attributes {stable_mosaic.version = 11 : i64} {
  func.func @_attn_dropout_kernel(%arg0: i32, %arg1: memref<1xf32, #tpu.memory_space<smem>>, %arg2: memref<1xf32, #tpu.memory_space<smem>>, %arg3: memref<1xi32, #tpu.memory_space<smem>>, %arg4: memref<10x50x200xf32, #tpu.memory_space<vmem>>, %arg5: memref<10x13x200xf32, #tpu.memory_space<vmem>>, %arg6: memref<10x13x200xf32, #tpu.memory_space<vmem>>, %arg7: memref<10x50x13xi32, #tpu.memory_space<vmem>>, %arg8: memref<10x50x200xf32, #tpu.memory_space<vmem>>) attributes {dimension_semantics = [#tpu.dimension_semantics<parallel>], iteration_bounds = array<i64: 2>, scalar_prefetch = 0 : i64, scratch_operands = 0 : i64, tpu.core_type = #tpu.core_type<tc>, window_params = [{transform_indices = @transform_0, window_bounds = array<i64: 1>}, {transform_indices = @transform_1, window_bounds = array<i64: 1>}, {transform_indices = @transform_2, window_bounds = array<i64: 1>}, {transform_indices = @transform_3, window_bounds = array<i64: 10, 50, 200>}, {transform_indices = @transform_4, window_bounds = array<i64: 10, 13, 200>}, {transform_indices = @transform_5, window_bounds = array<i64: 10, 13, 200>}, {transform_indices = @transform_6, window_bounds = array<i64: 10, 50, 13>}, {transform_indices = @transform_7, window_bounds = array<i64: 10, 50, 200>}]} {
    %c0 = arith.constant 0 : index
    %c0_0 = arith.constant 0 : index
    %c0_1 = arith.constant 0 : index
    %0 = vector.load %arg4[%c0, %c0_0, %c0_1] : memref<10x50x200xf32, #tpu.memory_space<vmem>>, vector<10x50x200xf32>
    %c0_2 = arith.constant 0 : index
    %c0_3 = arith.constant 0 : index
    %c0_4 = arith.constant 0 : index
    %1 = vector.load %arg5[%c0_2, %c0_3, %c0_4] : memref<10x13x200xf32, #tpu.memory_space<vmem>>, vector<10x13x200xf32>
    %c0_5 = arith.constant 0 : index
    %c0_6 = arith.constant 0 : index
    %c0_7 = arith.constant 0 : index
    %2 = vector.load %arg6[%c0_5, %c0_6, %c0_7] : memref<10x13x200xf32, #tpu.memory_space<vmem>>, vector<10x13x200xf32>
    %c0_8 = arith.constant 0 : index
    %c0_9 = arith.constant 0 : index
    %c0_10 = arith.constant 0 : index
    %3 = vector.load %arg7[%c0_8, %c0_9, %c0_10] : memref<10x50x13xi32, #tpu.memory_space<vmem>>, vector<10x50x13xi32>
    %c0_11 = arith.constant 0 : index
    %4 = memref.load %arg1[%c0_11] : memref<1xf32, #tpu.memory_space<smem>>
    %c0_12 = arith.constant 0 : index
    %5 = memref.load %arg2[%c0_12] : memref<1xf32, #tpu.memory_space<smem>>
    %c0_13 = arith.constant 0 : index
    %6 = memref.load %arg3[%c0_13] : memref<1xi32, #tpu.memory_space<smem>>
    "tpu.trace_start"() <{level = 10 : i32, message = "bqd,bkd->bqk"}> : () -> ()
    %cst = arith.constant dense<0.000000e+00> : vector<10x50x13xf32>
    %7 = tpu.matmul %0, %1, %cst {dimension_numbers = #tpu.dot_dimension_numbers<[2], [2], [1], [1], [0, 0, 0, 1, 1, 1], [0], [0]>} : vector<10x50x200xf32>, vector<10x13x200xf32>, vector<10x50x13xf32> -> vector<10x50x13xf32>
    "tpu.trace_stop"() : () -> ()
    %8 = vector.broadcast %4 : f32 to vector<10x50x13xf32>
    %9 = arith.mulf %7, %8 : vector<10x50x13xf32>
    %cst_14 = arith.constant dense<0xFF800000> : vector<10x50xf32>
    %10 = vector.multi_reduction <maximumf>, %9, %cst_14 [2] : vector<10x50x13xf32> to vector<10x50xf32>
    %11 = vector.shape_cast %10 : vector<10x50xf32> to vector<10x50x1xf32>
    %12 = vector.broadcast %11 : vector<10x50x1xf32> to vector<10x50x13xf32>
    %13 = arith.subf %9, %12 : vector<10x50x13xf32>
    %14 = math.exp %13 : vector<10x50x13xf32>
    %cst_15 = arith.constant dense<0.000000e+00> : vector<10x50xf32>
    %15 = vector.multi_reduction <add>, %14, %cst_15 [2] : vector<10x50x13xf32> to vector<10x50xf32>
    %16 = vector.shape_cast %15 : vector<10x50xf32> to vector<10x50x1xf32>
    %cst_16 = arith.constant 1.000000e+00 : f32
    %17 = vector.broadcast %cst_16 : f32 to vector<10x50x1xf32>
    %18 = arith.divf %17, %16 : vector<10x50x1xf32>
    %19 = vector.broadcast %6 : i32 to vector<10x50x13xi32>
    %20 = arith.cmpi uge, %3, %19 : vector<10x50x13xi32>
    %21 = vector.broadcast %5 : f32 to vector<10x50x1xf32>
    %22 = arith.mulf %18, %21 : vector<10x50x1xf32>
    %23 = vector.broadcast %22 : vector<10x50x1xf32> to vector<10x50x13xf32>
    %24 = arith.mulf %14, %23 : vector<10x50x13xf32>
    %cst_17 = arith.constant 0.000000e+00 : f32
    %25 = vector.broadcast %cst_17 : f32 to vector<10x50x13xf32>
    %26 = arith.select %20, %24, %25 : vector<10x50x13xi1>, vector<10x50x13xf32>
    "tpu.trace_start"() <{level = 10 : i32, message = "bqk,bkd->bqd"}> : () -> ()
    %cst_18 = arith.constant dense<0.000000e+00> : vector<10x50x200xf32>
    %27 = tpu.matmul %26, %2, %cst_18 {dimension_numbers = #tpu.dot_dimension_numbers<[2], [1], [1], [2], [0, 0, 0, 1, 1, 2], [0], [0]>} : vector<10x50x13xf32>, vector<10x13x200xf32>, vector<10x50x200xf32> -> vector<10x50x200xf32>
    "tpu.trace_stop"() : () -> ()
    %c0_19 = arith.constant 0 : index
    %c0_20 = arith.constant 0 : index
    %c0_21 = arith.constant 0 : index
    %28 = vector.load %arg8[%c0_19, %c0_20, %c0_21] : memref<10x50x200xf32, #tpu.memory_space<vmem>>, vector<10x50x200xf32>
    tpu.vector_store %arg8[%c0_19, %c0_20, %c0_21], %27 {strides = array<i32>} : memref<10x50x200xf32, #tpu.memory_space<vmem>>, vector<10x50x200xf32>,
    return
  }
  func.func @transform_0(%arg0: i32) -> i32 {
    %c0_i32 = arith.constant 0 : i32
    %c0_i32_0 = arith.constant 0 : i32
    return %c0_i32 : i32
  }
  func.func @transform_1(%arg0: i32) -> i32 {
    %c0_i32 = arith.constant 0 : i32
    %c0_i32_0 = arith.constant 0 : i32
    return %c0_i32 : i32
  }
  func.func @transform_2(%arg0: i32) -> i32 {
    %c0_i32 = arith.constant 0 : i32
    %c0_i32_0 = arith.constant 0 : i32
    return %c0_i32 : i32
  }
  func.func @transform_3(%arg0: i32) -> (i32, i32, i32) {
    %c0_i32 = arith.constant 0 : i32
    %c0_i32_0 = arith.constant 0 : i32
    %c0_i32_1 = arith.constant 0 : i32
    return %arg0, %c0_i32, %c0_i32_0 : i32, i32, i32
  }
  func.func @transform_4(%arg0: i32) -> (i32, i32, i32) {
    %c0_i32 = arith.constant 0 : i32
    %c0_i32_0 = arith.constant 0 : i32
    %c0_i32_1 = arith.constant 0 : i32
    return %arg0, %c0_i32, %c0_i32_0 : i32, i32, i32
  }
  func.func @transform_5(%arg0: i32) -> (i32, i32, i32) {
    %c0_i32 = arith.constant 0 : i32
    %c0_i32_0 = arith.constant 0 : i32
    %c0_i32_1 = arith.constant 0 : i32
    return %arg0, %c0_i32, %c0_i32_0 : i32, i32, i32
  }
  func.func @transform_6(%arg0: i32) -> (i32, i32, i32) {
    %c0_i32 = arith.constant 0 : i32
    %c0_i32_0 = arith.constant 0 : i32
    %c0_i32_1 = arith.constant 0 : i32
    return %arg0, %c0_i32, %c0_i32_0 : i32, i32, i32
  }
  func.func @transform_7(%arg0: i32) -> (i32, i32, i32) {
    %c0_i32 = arith.constant 0 : i32
    %c0_i32_0 = arith.constant 0 : i32
    %c0_i32_1 = arith.constant 0 : i32
    return %arg0, %c0_i32, %c0_i32_0 : i32, i32, i32
  }
}

</mosaic_0001>

<llo_original>
// kernel: tpu_custom_call.1
$region0: #{tpu_custom_call.1}
  #allocation0 [shape = 'u32[]', space=smem, size = 0x4, offset = 0x4, fixed_abs, tag = 'smem constant byte address 0x4 - core index']
  #allocation1 [shape = 'u32[144,128]{1,0:T(1,128)}', space=vmem, size = 0x12000, scoped, tag = 'internal scratch']
  #allocation2 [shape = 'f32[1]{0:T(128)S(6)}', space=smem, size = 0x200, scoped, tag = 'scoped memory for tpu_custom_call.1']
  #allocation3 [shape = 'f32[1]{0:T(128)S(6)}', space=smem, size = 0x200, scoped, tag = 'scoped memory for tpu_custom_call.1']
  #allocation4 [shape = 'u32[1]{0:T(128)S(6)}', space=smem, size = 0x200, scoped, tag = 'scoped memory for tpu_custom_call.1']
  %s0 = inlined_call_operand.<no memory space> [shape: f32[1], index: 0, kind: input, shape index: {}]
  %s1 = inlined_call_operand.<no memory space> [shape: f32[1], index: 1, kind: input, shape index: {}]
  %s2 = inlined_call_operand.<no memory space> [shape: u32[1], index: 2, kind: input, shape index: {}]
  %s3 = inlined_call_operand.vmem [shape: f32[20,50,200], index: 3, kind: input, shape index: {}]
  %s4 = inlined_call_operand.vmem [shape: f32[20,13,200], index: 4, kind: input, shape index: {}]
  %s5 = inlined_call_operand.vmem [shape: f32[20,13,200], index: 5, kind: input, shape index: {}]
  %s6 = inlined_call_operand.vmem [shape: u32[20,50,13], index: 6, kind: input, shape index: {}]
  %s7 = inlined_call_operand.hbm [shape: f32[20,50,200], index: 7, kind: output, shape index: {}]
  %s8 = sld [smem:[#allocation0]]
  $region61: #{tpu_custom_call.1} parent=0
    _
  %s10 = ssub.s32 1, %s8
  %s11 = scalar_select 0, %s10, %s8
  %12 = sst [smem:[#allocation2]] %s0
  %13 = sst [smem:[#allocation3]] %s1
  %14 = sst [smem:[#allocation4]] %s2
  $region1: #{tpu_custom_call.1} parent=0
    #allocation5 [shape = 'u8[1146880]{0}', space=vmem, size = 0x118000, scoped, tag = 'output window, operand 0']
    #allocation6 [shape = 's32[2]{0}', space=sflag, size = 0x8, scoped, tag = 'scoped memory for tpu_custom_call.1']
    %15 = vsyncpa [#allocation6], 0
    %s16 = scalar_lea.sflag [#allocation6], 1
    %17 = vsyncpa %s16, 0
    loop: start=0, step=1, limit=4
    $region2: #{tpu_custom_call.1} parent=1 // loop_pre_header
      _
    $region3: #{tpu_custom_call.1} parent=1 // loop_header
      %s19 = sphi 0, %s23
      %p20 = scmp.ge.s32.totalorder %s19, 4
      %s27 = sphi 0, %s27
      %s29 = sphi 0, %s27
      %s30 = sphi 0, %s29
      %s44 = sphi 0, %s30
      %s48 = sphi 0, %s48
      %s50 = sphi 0, %s48
      %s51 = sphi 0, %s50
      %s65 = sphi 0, %s51
      %s69 = sphi 0, %s69
      %s71 = sphi 0, %s69
      %s72 = sphi 0, %s71
      %s86 = sphi 0, %s72
      %s92 = sphi 0, %s94
      %s95 = sphi 0, %s92
      %s96 = sphi 0, %s95
      %s112 = sphi 0, %s96
      %s118 = sphi 0, %s120
      %s121 = sphi 0, %s118
      %s122 = sphi 0, %s121
      %s138 = sphi 0, %s122
      %s144 = sphi 0, %s146
      %s147 = sphi 0, %s144
      %s148 = sphi 0, %s147
      %s164 = sphi 0, %s148
      %s170 = sphi 0, %s172
      %s173 = sphi 0, %s170
      %s174 = sphi 0, %s173
      %s190 = sphi 0, %s174
      %s196 = sphi 0, %s198
      %s199 = sphi 0, %s196
      %s200 = sphi 0, %s199
      %s216 = sphi 0, %s200
    $region4: #{tpu_custom_call.1} parent=1 // loop_header_branch
      %22 = sbr.rel (%p20) target = $region8
    $region5: #{tpu_custom_call.1} parent=1 // loop_body
      %s24 = ssub.s32 %s19, 1
      %s25 = ssub.s32 %s19, 2
      %s26 = sadd.s32 %s19, 1
      %s28 = sadd.s32 %s27, 1
      %p31 = scmp.eq.s32.totalorder %s19, 1
      %p32 = scmp.ne.s32.totalorder %s27, %s29
      %p33 = scmp.eq.s32.totalorder %s19, 0
      %p34 = por %p32, %p33
      %p35 = scmp.ne.s32.totalorder %s27, %s29
      %p36 = scmp.eq.s32.totalorder %s24, 1
      %p37 = por %p35, %p36
      %p38 = scmp.ne.s32.totalorder %s29, %s30
      %p39 = scmp.eq.s32.totalorder %s24, 0
      %p40 = por %p38, %p39
      %p41 = scmp.ne.s32.totalorder %s29, %s30
      %p42 = scmp.eq.s32.totalorder %s25, 1
      %p43 = por %p41, %p42
      %p45 = scmp.ne.s32.totalorder %s30, %s44
      %p46 = scmp.eq.s32.totalorder %s25, 0
      %p47 = por %p45, %p46
      %s49 = sadd.s32 %s48, 1
      %p52 = scmp.eq.s32.totalorder %s19, 1
      %p53 = scmp.ne.s32.totalorder %s48, %s50
      %p54 = scmp.eq.s32.totalorder %s19, 0
      %p55 = por %p53, %p54
      %p56 = scmp.ne.s32.totalorder %s48, %s50
      %p57 = scmp.eq.s32.totalorder %s24, 1
      %p58 = por %p56, %p57
      %p59 = scmp.ne.s32.totalorder %s50, %s51
      %p60 = scmp.eq.s32.totalorder %s24, 0
      %p61 = por %p59, %p60
      %p62 = scmp.ne.s32.totalorder %s50, %s51
      %p63 = scmp.eq.s32.totalorder %s25, 1
      %p64 = por %p62, %p63
      %p66 = scmp.ne.s32.totalorder %s51, %s65
      %p67 = scmp.eq.s32.totalorder %s25, 0
      %p68 = por %p66, %p67
      %s70 = sadd.s32 %s69, 1
      %p73 = scmp.eq.s32.totalorder %s19, 1
      %p74 = scmp.ne.s32.totalorder %s69, %s71
      %p75 = scmp.eq.s32.totalorder %s19, 0
      %p76 = por %p74, %p75
      %p77 = scmp.ne.s32.totalorder %s69, %s71
      %p78 = scmp.eq.s32.totalorder %s24, 1
      %p79 = por %p77, %p78
      %p80 = scmp.ne.s32.totalorder %s71, %s72
      %p81 = scmp.eq.s32.totalorder %s24, 0
      %p82 = por %p80, %p81
      %p83 = scmp.ne.s32.totalorder %s71, %s72
      %p84 = scmp.eq.s32.totalorder %s25, 1
      %p85 = por %p83, %p84
      %p87 = scmp.ne.s32.totalorder %s72, %s86
      %p88 = scmp.eq.s32.totalorder %s25, 0
      %p89 = por %p87, %p88
      %s90 = ssub.s32 %s19, %s26
      %p91 = scmp.eq.s32.totalorder %s90, 0
      %s93 = sadd.s32 %s92, 1
      %s94 = scalar_select %p91, %s92, %s93
      %p97 = pneg %p91
      %p98 = scmp.eq.s32.totalorder %s19, 1
      %p99 = por %p97, %p98
      %p100 = scmp.ne.s32.totalorder %s92, %s95
      %p101 = scmp.eq.s32.totalorder %s19, 0
      %p102 = por %p100, %p101
      %p103 = scmp.ne.s32.totalorder %s92, %s95
      %p104 = scmp.eq.s32.totalorder %s24, 1
      %p105 = por %p103, %p104
      %p106 = scmp.ne.s32.totalorder %s95, %s96
      %p107 = scmp.eq.s32.totalorder %s24, 0
      %p108 = por %p106, %p107
      %p109 = scmp.ne.s32.totalorder %s95, %s96
      %p110 = scmp.eq.s32.totalorder %s25, 1
      %p111 = por %p109, %p110
      %p113 = scmp.ne.s32.totalorder %s96, %s112
      %p114 = scmp.eq.s32.totalorder %s25, 0
      %p115 = por %p113, %p114
      %s116 = ssub.s32 %s19, %s26
      %p117 = scmp.eq.s32.totalorder %s116, 0
      %s119 = sadd.s32 %s118, 1
      %s120 = scalar_select %p117, %s118, %s119
      %p123 = pneg %p117
      %p124 = scmp.eq.s32.totalorder %s19, 1
      %p125 = por %p123, %p124
      %p126 = scmp.ne.s32.totalorder %s118, %s121
      %p127 = scmp.eq.s32.totalorder %s19, 0
      %p128 = por %p126, %p127
      %p129 = scmp.ne.s32.totalorder %s118, %s121
      %p130 = scmp.eq.s32.totalorder %s24, 1
      %p131 = por %p129, %p130
      %p132 = scmp.ne.s32.totalorder %s121, %s122
      %p133 = scmp.eq.s32.totalorder %s24, 0
      %p134 = por %p132, %p133
      %p135 = scmp.ne.s32.totalorder %s121, %s122
      %p136 = scmp.eq.s32.totalorder %s25, 1
      %p137 = por %p135, %p136
      %p139 = scmp.ne.s32.totalorder %s122, %s138
      %p140 = scmp.eq.s32.totalorder %s25, 0
      %p141 = por %p139, %p140
      %s142 = ssub.s32 %s19, %s26
      %p143 = scmp.eq.s32.totalorder %s142, 0
      %s145 = sadd.s32 %s144, 1
      %s146 = scalar_select %p143, %s144, %s145
      %p149 = pneg %p143
      %p150 = scmp.eq.s32.totalorder %s19, 1
      %p151 = por %p149, %p150
      %p152 = scmp.ne.s32.totalorder %s144, %s147
      %p153 = scmp.eq.s32.totalorder %s19, 0
      %p154 = por %p152, %p153
      %p155 = scmp.ne.s32.totalorder %s144, %s147
      %p156 = scmp.eq.s32.totalorder %s24, 1
      %p157 = por %p155, %p156
      %p158 = scmp.ne.s32.totalorder %s147, %s148
      %p159 = scmp.eq.s32.totalorder %s24, 0
      %p160 = por %p158, %p159
      %p161 = scmp.ne.s32.totalorder %s147, %s148
      %p162 = scmp.eq.s32.totalorder %s25, 1
      %p163 = por %p161, %p162
      %p165 = scmp.ne.s32.totalorder %s148, %s164
      %p166 = scmp.eq.s32.totalorder %s25, 0
      %p167 = por %p165, %p166
      %s168 = ssub.s32 %s19, %s26
      %p169 = scmp.eq.s32.totalorder %s168, 0
      %s171 = sadd.s32 %s170, 1
      %s172 = scalar_select %p169, %s170, %s171
      %p175 = pneg %p169
      %p176 = scmp.eq.s32.totalorder %s19, 1
      %p177 = por %p175, %p176
      %p178 = scmp.ne.s32.totalorder %s170, %s173
      %p179 = scmp.eq.s32.totalorder %s19, 0
      %p180 = por %p178, %p179
      %p181 = scmp.ne.s32.totalorder %s170, %s173
      %p182 = scmp.eq.s32.totalorder %s24, 1
      %p183 = por %p181, %p182
      %p184 = scmp.ne.s32.totalorder %s173, %s174
      %p185 = scmp.eq.s32.totalorder %s24, 0
      %p186 = por %p184, %p185
      %p187 = scmp.ne.s32.totalorder %s173, %s174
      %p188 = scmp.eq.s32.totalorder %s25, 1
      %p189 = por %p187, %p188
      %p191 = scmp.ne.s32.totalorder %s174, %s190
      %p192 = scmp.eq.s32.totalorder %s25, 0
      %p193 = por %p191, %p192
      %s194 = ssub.s32 %s19, %s26
      %p195 = scmp.eq.s32.totalorder %s194, 0
      %s197 = sadd.s32 %s196, 1
      %s198 = scalar_select %p195, %s196, %s197
      %p201 = pneg %p195
      %p202 = scmp.eq.s32.totalorder %s19, 1
      %p203 = por %p201, %p202
      %p204 = scmp.ne.s32.totalorder %s196, %s199
      %p205 = scmp.eq.s32.totalorder %s19, 0
      %p206 = por %p204, %p205
      %p207 = scmp.ne.s32.totalorder %s196, %s199
      %p208 = scmp.eq.s32.totalorder %s24, 1
      %p209 = por %p207, %p208
      %p210 = scmp.ne.s32.totalorder %s199, %s200
      %p211 = scmp.eq.s32.totalorder %s24, 0
      %p212 = por %p210, %p211
      %p213 = scmp.ne.s32.totalorder %s199, %s200
      %p214 = scmp.eq.s32.totalorder %s25, 1
      %p215 = por %p213, %p214
      %p217 = scmp.ne.s32.totalorder %s200, %s216
      %p218 = scmp.eq.s32.totalorder %s25, 0
      %p219 = por %p217, %p218
      %p220 = scmp.le.s32.totalorder 1, %s19
      %p221 = scmp.lt.s32.totalorder %s19, 3
      %p222 = pnand %p220, %p221
      %p223 = pneg %p222
      // Predicated region
      $region9: #{tpu_custom_call.1} parent=5 // pred_check
        _
      $region10: #{tpu_custom_call.1} parent=5 // pred_check_branch
        %225 = sbr.rel (%p222) target = $region12
      $region11: #{tpu_custom_call.1} parent=5 // pred_region
        %s226 = ssub.s32 %s19, 1
        // Predicated region
        $region13: #{tpu_custom_call.1} parent=11 // pred_check
          %p227 = pneg %p40
        $region14: #{tpu_custom_call.1} parent=11 // pred_check_branch
          %229 = sbr.rel (%p227) target = $region16
        $region15: #{tpu_custom_call.1} parent=11 // pred_region
          _
        $region16: #{tpu_custom_call.1} parent=11 // pred_fallthru
          _
        // Predicated region
        $region17: #{tpu_custom_call.1} parent=11 // pred_check
          %p230 = pneg %p61
        $region18: #{tpu_custom_call.1} parent=11 // pred_check_branch
          %232 = sbr.rel (%p230) target = $region20
        $region19: #{tpu_custom_call.1} parent=11 // pred_region
          _
        $region20: #{tpu_custom_call.1} parent=11 // pred_fallthru
          _
        // Predicated region
        $region21: #{tpu_custom_call.1} parent=11 // pred_check
          %p233 = pneg %p82
        $region22: #{tpu_custom_call.1} parent=11 // pred_check_branch
          %235 = sbr.rel (%p233) target = $region24
        $region23: #{tpu_custom_call.1} parent=11 // pred_region
          _
        $region24: #{tpu_custom_call.1} parent=11 // pred_fallthru
          _
      $region12: #{tpu_custom_call.1} parent=5 // pred_fallthru
        _
      %p236 = scmp.lt.s32.totalorder %s19, 2
      // Predicated region
      $region25: #{tpu_custom_call.1} parent=5 // pred_check
        %p237 = pneg %p236
      $region26: #{tpu_custom_call.1} parent=5 // pred_check_branch
        %239 = sbr.rel (%p237) target = $region28
      $region27: #{tpu_custom_call.1} parent=5 // pred_region
        // Predicated region
        $region29: #{tpu_custom_call.1} parent=27 // pred_check
          %p240 = pneg %p102
        $region30: #{tpu_custom_call.1} parent=27 // pred_check_branch
          %242 = sbr.rel (%p240) target = $region32
        $region31: #{tpu_custom_call.1} parent=27 // pred_region
          %s243 = smul.u32 10, %s19
          %p244 = scmp.lt.s32.totalorder %s243, 19
          %s245 = scalar_select %p244, %s243, 19
          %s246 = smul.addr %s245, 14
          %s247 = smul.addr %s246, 8
          %s248 = scalar_lea.vmem %s3, %s247
          %s249 = smul.u32 10, %s19
        $region32: #{tpu_custom_call.1} parent=27 // pred_fallthru
          _
        // Predicated region
        $region33: #{tpu_custom_call.1} parent=27 // pred_check
          %p250 = pneg %p128
        $region34: #{tpu_custom_call.1} parent=27 // pred_check_branch
          %252 = sbr.rel (%p250) target = $region36
        $region35: #{tpu_custom_call.1} parent=27 // pred_region
          %s253 = smul.u32 10, %s19
          %p254 = scmp.lt.s32.totalorder %s253, 19
          %s255 = scalar_select %p254, %s253, 19
          %s256 = smul.addr %s255, 4
          %s257 = smul.addr %s256, 8
          %s258 = scalar_lea.vmem %s4, %s257
          %s259 = smul.u32 10, %s19
        $region36: #{tpu_custom_call.1} parent=27 // pred_fallthru
          _
        // Predicated region
        $region37: #{tpu_custom_call.1} parent=27 // pred_check
          %p260 = pneg %p154
        $region38: #{tpu_custom_call.1} parent=27 // pred_check_branch
          %262 = sbr.rel (%p260) target = $region40
        $region39: #{tpu_custom_call.1} parent=27 // pred_region
          %s263 = smul.u32 10, %s19
          %p264 = scmp.lt.s32.totalorder %s263, 19
          %s265 = scalar_select %p264, %s263, 19
          %s266 = smul.addr %s265, 4
          %s267 = smul.addr %s266, 8
          %s268 = scalar_lea.vmem %s5, %s267
          %s269 = smul.u32 10, %s19
        $region40: #{tpu_custom_call.1} parent=27 // pred_fallthru
          _
        // Predicated region
        $region41: #{tpu_custom_call.1} parent=27 // pred_check
          %p270 = pneg %p180
        $region42: #{tpu_custom_call.1} parent=27 // pred_check_branch
          %272 = sbr.rel (%p270) target = $region44
        $region43: #{tpu_custom_call.1} parent=27 // pred_region
          %s273 = smul.u32 10, %s19
          %p274 = scmp.lt.s32.totalorder %s273, 19
          %s275 = scalar_select %p274, %s273, 19
          %s276 = smul.addr %s275, 7
          %s277 = smul.addr %s276, 8
          %s278 = scalar_lea.vmem %s6, %s277
          %s279 = smul.u32 10, %s19
        $region44: #{tpu_custom_call.1} parent=27 // pred_fallthru
          _
      $region28: #{tpu_custom_call.1} parent=5 // pred_fallthru
        _
      %p280 = scmp.le.s32.totalorder 1, %s19
      %p281 = scmp.lt.s32.totalorder %s19, 3
      %p282 = pnand %p280, %p281
      %p283 = pneg %p282
      // Predicated region
      $region45: #{tpu_custom_call.1} parent=5 // pred_check
        _
      $region46: #{tpu_custom_call.1} parent=5 // pred_check_branch
        %285 = sbr.rel (%p282) target = $region48
      $region47: #{tpu_custom_call.1} parent=5 // pred_region
        %s286 = ssub.s32 %s19, 1
        %p287 = pneg %p40
        %p288 = pneg %p37
        %p289 = pneg %p61
        %p290 = pneg %p58
        %p291 = pneg %p82
        %p292 = pneg %p79
        %s293 = smul.u32 10, %s24
        %p294 = scmp.lt.s32.totalorder %s293, 19
        %s295 = scalar_select %p294, %s293, 19
        %s296 = smul.addr %s295, 14
        %s297 = smul.addr %s296, 8
        %s298 = scalar_lea.vmem %s3, %s297
        %p299 = pneg %p108
        %p300 = pneg %p105
        %s301 = smul.u32 10, %s24
        %p302 = scmp.lt.s32.totalorder %s301, 19
        %s303 = scalar_select %p302, %s301, 19
        %s304 = smul.addr %s303, 4
        %s305 = smul.addr %s304, 8
        %s306 = scalar_lea.vmem %s4, %s305
        %p307 = pneg %p134
        %p308 = pneg %p131
        %s309 = smul.u32 10, %s24
        %p310 = scmp.lt.s32.totalorder %s309, 19
        %s311 = scalar_select %p310, %s309, 19
        %s312 = smul.addr %s311, 4
        %s313 = smul.addr %s312, 8
        %s314 = scalar_lea.vmem %s5, %s313
        %p315 = pneg %p160
        %p316 = pneg %p157
        %s317 = smul.u32 10, %s24
        %p318 = scmp.lt.s32.totalorder %s317, 19
        %s319 = scalar_select %p318, %s317, 19
        %s320 = smul.addr %s319, 7
        %s321 = smul.addr %s320, 8
        %s322 = scalar_lea.vmem %s6, %s321
        %p323 = pneg %p186
        %p324 = pneg %p183
        %p325 = pneg %p212
        %p326 = pneg %p209
        %s327 = sand.u32 %s199, 1
        %s328 = scalar_lea.sflag [#allocation6], %s327
        %s329 = sand.u32 %s199, 1
        %s330 = smul.addr %s329, 1120
        %s331 = scalar_lea.vmem [#allocation5], %s330
        %s332 = smul.u32 10, %s24
        %p333 = scmp.lt.s32.totalorder %s332, 19
        %s334 = scalar_select %p333, %s332, 19
        %s335 = smul.addr %s334, 14
        %s336 = smul.addr %s335, 8
        %s337 = scalar_lea.vmem %s3, %s336
        %s338 = smul.u32 10, %s24
        %s339 = smul.u32 10, %s24
        %p340 = scmp.lt.s32.totalorder %s339, 19
        %s341 = scalar_select %p340, %s339, 19
        %s342 = smul.addr %s341, 4
        %s343 = smul.addr %s342, 8
        %s344 = scalar_lea.vmem %s4, %s343
        %s345 = smul.u32 10, %s24
        %s346 = smul.u32 10, %s24
        %p347 = scmp.lt.s32.totalorder %s346, 19
        %s348 = scalar_select %p347, %s346, 19
        %s349 = smul.addr %s348, 4
        %s350 = smul.addr %s349, 8
        %s351 = scalar_lea.vmem %s5, %s350
        %s352 = smul.u32 10, %s24
        %s353 = smul.u32 10, %s24
        %p354 = scmp.lt.s32.totalorder %s353, 19
        %s355 = scalar_select %p354, %s353, 19
        %s356 = smul.addr %s355, 7
        %s357 = smul.addr %s356, 8
        %s358 = scalar_lea.vmem %s6, %s357
        %s359 = smul.u32 10, %s24
        %s360 = smul.u32 10, %s24
        %v361 = vld [vmem:[%s337] sm:$0xff]
        %v362 = vld [vmem:[%s337 + $0x8] sm:$0xff]
        %v363 = vld [vmem:[%s337 + $0x10] sm:$0xff]
        %v364 = vld [vmem:[%s337 + $0x18] sm:$0xff]
        %v365 = vld [vmem:[%s337 + $0x20] sm:$0xff]
        %v366 = vld [vmem:[%s337 + $0x28] sm:$0xff]
        %v367 = vld [vmem:[%s337 + $0x30] sm:$0xff]
        %v368 = vld [vmem:[%s337 + $0x38] sm:$0xff]
        %v369 = vld [vmem:[%s337 + $0x40] sm:$0xff]
        %v370 = vld [vmem:[%s337 + $0x48] sm:$0xff]
        %v371 = vld [vmem:[%s337 + $0x50] sm:$0xff]
        %v372 = vld [vmem:[%s337 + $0x58] sm:$0xff]
        %v373 = vld [vmem:[%s337 + $0x60] sm:$0x3]
        %v374 = vld [vmem:[%s337 + $0x68] sm:$0x3]
        %v375 = vld [vmem:[%s337 + $0x70] sm:$0xff]
        %v376 = vld [vmem:[%s337 + $0x78] sm:$0xff]
        %v377 = vld [vmem:[%s337 + $0x80] sm:$0xff]
        %v378 = vld [vmem:[%s337 + $0x88] sm:$0xff]
        %v379 = vld [vmem:[%s337 + $0x90] sm:$0xff]
        %v380 = vld [vmem:[%s337 + $0x98] sm:$0xff]
        %v381 = vld [vmem:[%s337 + $0xa0] sm:$0xff]
        %v382 = vld [vmem:[%s337 + $0xa8] sm:$0xff]
        %v383 = vld [vmem:[%s337 + $0xb0] sm:$0xff]
        %v384 = vld [vmem:[%s337 + $0xb8] sm:$0xff]
        %v385 = vld [vmem:[%s337 + $0xc0] sm:$0xff]
        %v386 = vld [vmem:[%s337 + $0xc8] sm:$0xff]
        %v387 = vld [vmem:[%s337 + $0xd0] sm:$0x3]
        %v388 = vld [vmem:[%s337 + $0xd8] sm:$0x3]
        %v389 = vld [vmem:[%s337 + $0xe0] sm:$0xff]
        %v390 = vld [vmem:[%s337 + $0xe8] sm:$0xff]
        %v391 = vld [vmem:[%s337 + $0xf0] sm:$0xff]
        %v392 = vld [vmem:[%s337 + $0xf8] sm:$0xff]
        %v393 = vld [vmem:[%s337 + $0x100] sm:$0xff]
        %v394 = vld [vmem:[%s337 + $0x108] sm:$0xff]
        %v395 = vld [vmem:[%s337 + $0x110] sm:$0xff]
        %v396 = vld [vmem:[%s337 + $0x118] sm:$0xff]
        %v397 = vld [vmem:[%s337 + $0x120] sm:$0xff]
        %v398 = vld [vmem:[%s337 + $0x128] sm:$0xff]
        %v399 = vld [vmem:[%s337 + $0x130] sm:$0xff]
        %v400 = vld [vmem:[%s337 + $0x138] sm:$0xff]
        %v401 = vld [vmem:[%s337 + $0x140] sm:$0x3]
        %v402 = vld [vmem:[%s337 + $0x148] sm:$0x3]
        %v403 = vld [vmem:[%s337 + $0x150] sm:$0xff]
        %v404 = vld [vmem:[%s337 + $0x158] sm:$0xff]
        %v405 = vld [vmem:[%s337 + $0x160] sm:$0xff]
        %v406 = vld [vmem:[%s337 + $0x168] sm:$0xff]
        %v407 = vld [vmem:[%s337 + $0x170] sm:$0xff]
        %v408 = vld [vmem:[%s337 + $0x178] sm:$0xff]
        %v409 = vld [vmem:[%s337 + $0x180] sm:$0xff]
        %v410 = vld [vmem:[%s337 + $0x188] sm:$0xff]
        %v411 = vld [vmem:[%s337 + $0x190] sm:$0xff]
        %v412 = vld [vmem:[%s337 + $0x198] sm:$0xff]
        %v413 = vld [vmem:[%s337 + $0x1a0] sm:$0xff]
        %v414 = vld [vmem:[%s337 + $0x1a8] sm:$0xff]
        %v415 = vld [vmem:[%s337 + $0x1b0] sm:$0x3]
        %v416 = vld [vmem:[%s337 + $0x1b8] sm:$0x3]
        %v417 = vld [vmem:[%s337 + $0x1c0] sm:$0xff]
        %v418 = vld [vmem:[%s337 + $0x1c8] sm:$0xff]
        %v419 = vld [vmem:[%s337 + $0x1d0] sm:$0xff]
        %v420 = vld [vmem:[%s337 + $0x1d8] sm:$0xff]
        %v421 = vld [vmem:[%s337 + $0x1e0] sm:$0xff]
        %v422 = vld [vmem:[%s337 + $0x1e8] sm:$0xff]
        %v423 = vld [vmem:[%s337 + $0x1f0] sm:$0xff]
        %v424 = vld [vmem:[%s337 + $0x1f8] sm:$0xff]
        %v425 = vld [vmem:[%s337 + $0x200] sm:$0xff]
        %v426 = vld [vmem:[%s337 + $0x208] sm:$0xff]
        %v427 = vld [vmem:[%s337 + $0x210] sm:$0xff]
        %v428 = vld [vmem:[%s337 + $0x218] sm:$0xff]
        %v429 = vld [vmem:[%s337 + $0x220] sm:$0x3]
        %v430 = vld [vmem:[%s337 + $0x228] sm:$0x3]
        %v431 = vld [vmem:[%s337 + $0x230] sm:$0xff]
        %v432 = vld [vmem:[%s337 + $0x238] sm:$0xff]
        %v433 = vld [vmem:[%s337 + $0x240] sm:$0xff]
        %v434 = vld [vmem:[%s337 + $0x248] sm:$0xff]
        %v435 = vld [vmem:[%s337 + $0x250] sm:$0xff]
        %v436 = vld [vmem:[%s337 + $0x258] sm:$0xff]
        %v437 = vld [vmem:[%s337 + $0x260] sm:$0xff]
        %v438 = vld [vmem:[%s337 + $0x268] sm:$0xff]
        %v439 = vld [vmem:[%s337 + $0x270] sm:$0xff]
        %v440 = vld [vmem:[%s337 + $0x278] sm:$0xff]
        %v441 = vld [vmem:[%s337 + $0x280] sm:$0xff]
        %v442 = vld [vmem:[%s337 + $0x288] sm:$0xff]
        %v443 = vld [vmem:[%s337 + $0x290] sm:$0x3]
        %v444 = vld [vmem:[%s337 + $0x298] sm:$0x3]
        %v445 = vld [vmem:[%s337 + $0x2a0] sm:$0xff]
        %v446 = vld [vmem:[%s337 + $0x2a8] sm:$0xff]
        %v447 = vld [vmem:[%s337 + $0x2b0] sm:$0xff]
        %v448 = vld [vmem:[%s337 + $0x2b8] sm:$0xff]
        %v449 = vld [vmem:[%s337 + $0x2c0] sm:$0xff]
        %v450 = vld [vmem:[%s337 + $0x2c8] sm:$0xff]
        %v451 = vld [vmem:[%s337 + $0x2d0] sm:$0xff]
        %v452 = vld [vmem:[%s337 + $0x2d8] sm:$0xff]
        %v453 = vld [vmem:[%s337 + $0x2e0] sm:$0xff]
        %v454 = vld [vmem:[%s337 + $0x2e8] sm:$0xff]
        %v455 = vld [vmem:[%s337 + $0x2f0] sm:$0xff]
        %v456 = vld [vmem:[%s337 + $0x2f8] sm:$0xff]
        %v457 = vld [vmem:[%s337 + $0x300] sm:$0x3]
        %v458 = vld [vmem:[%s337 + $0x308] sm:$0x3]
        %v459 = vld [vmem:[%s337 + $0x310] sm:$0xff]
        %v460 = vld [vmem:[%s337 + $0x318] sm:$0xff]
        %v461 = vld [vmem:[%s337 + $0x320] sm:$0xff]
        %v462 = vld [vmem:[%s337 + $0x328] sm:$0xff]
        %v463 = vld [vmem:[%s337 + $0x330] sm:$0xff]
        %v464 = vld [vmem:[%s337 + $0x338] sm:$0xff]
        %v465 = vld [vmem:[%s337 + $0x340] sm:$0xff]
        %v466 = vld [vmem:[%s337 + $0x348] sm:$0xff]
        %v467 = vld [vmem:[%s337 + $0x350] sm:$0xff]
        %v468 = vld [vmem:[%s337 + $0x358] sm:$0xff]
        %v469 = vld [vmem:[%s337 + $0x360] sm:$0xff]
        %v470 = vld [vmem:[%s337 + $0x368] sm:$0xff]
        %v471 = vld [vmem:[%s337 + $0x370] sm:$0x3]
        %v472 = vld [vmem:[%s337 + $0x378] sm:$0x3]
        %v473 = vld [vmem:[%s337 + $0x380] sm:$0xff]
        %v474 = vld [vmem:[%s337 + $0x388] sm:$0xff]
        %v475 = vld [vmem:[%s337 + $0x390] sm:$0xff]
        %v476 = vld [vmem:[%s337 + $0x398] sm:$0xff]
        %v477 = vld [vmem:[%s337 + $0x3a0] sm:$0xff]
        %v478 = vld [vmem:[%s337 + $0x3a8] sm:$0xff]
        %v479 = vld [vmem:[%s337 + $0x3b0] sm:$0xff]
        %v480 = vld [vmem:[%s337 + $0x3b8] sm:$0xff]
        %v481 = vld [vmem:[%s337 + $0x3c0] sm:$0xff]
        %v482 = vld [vmem:[%s337 + $0x3c8] sm:$0xff]
        %v483 = vld [vmem:[%s337 + $0x3d0] sm:$0xff]
        %v484 = vld [vmem:[%s337 + $0x3d8] sm:$0xff]
        %v485 = vld [vmem:[%s337 + $0x3e0] sm:$0x3]
        %v486 = vld [vmem:[%s337 + $0x3e8] sm:$0x3]
        %v487 = vld [vmem:[%s337 + $0x3f0] sm:$0xff]
        %v488 = vld [vmem:[%s337 + $0x3f8] sm:$0xff]
        %v489 = vld [vmem:[%s337 + $0x400] sm:$0xff]
        %v490 = vld [vmem:[%s337 + $0x408] sm:$0xff]
        %v491 = vld [vmem:[%s337 + $0x410] sm:$0xff]
        %v492 = vld [vmem:[%s337 + $0x418] sm:$0xff]
        %v493 = vld [vmem:[%s337 + $0x420] sm:$0xff]
        %v494 = vld [vmem:[%s337 + $0x428] sm:$0xff]
        %v495 = vld [vmem:[%s337 + $0x430] sm:$0xff]
        %v496 = vld [vmem:[%s337 + $0x438] sm:$0xff]
        %v497 = vld [vmem:[%s337 + $0x440] sm:$0xff]
        %v498 = vld [vmem:[%s337 + $0x448] sm:$0xff]
        %v499 = vld [vmem:[%s337 + $0x450] sm:$0x3]
        %v500 = vld [vmem:[%s337 + $0x458] sm:$0x3]
        %v501 = vld [vmem:[%s344] sm:$0xff]
        %v502 = vld [vmem:[%s344 + $0x8] sm:$0xff]
        %v503 = vld [vmem:[%s344 + $0x10] sm:$0x1f]
        %v504 = vld [vmem:[%s344 + $0x18] sm:$0x1f]
        %v505 = vld [vmem:[%s344 + $0x20] sm:$0xff]
        %v506 = vld [vmem:[%s344 + $0x28] sm:$0xff]
        %v507 = vld [vmem:[%s344 + $0x30] sm:$0x1f]
        %v508 = vld [vmem:[%s344 + $0x38] sm:$0x1f]
        %v509 = vld [vmem:[%s344 + $0x40] sm:$0xff]
        %v510 = vld [vmem:[%s344 + $0x48] sm:$0xff]
        %v511 = vld [vmem:[%s344 + $0x50] sm:$0x1f]
        %v512 = vld [vmem:[%s344 + $0x58] sm:$0x1f]
        %v513 = vld [vmem:[%s344 + $0x60] sm:$0xff]
        %v514 = vld [vmem:[%s344 + $0x68] sm:$0xff]
        %v515 = vld [vmem:[%s344 + $0x70] sm:$0x1f]
        %v516 = vld [vmem:[%s344 + $0x78] sm:$0x1f]
        %v517 = vld [vmem:[%s344 + $0x80] sm:$0xff]
        %v518 = vld [vmem:[%s344 + $0x88] sm:$0xff]
        %v519 = vld [vmem:[%s344 + $0x90] sm:$0x1f]
        %v520 = vld [vmem:[%s344 + $0x98] sm:$0x1f]
        %v521 = vld [vmem:[%s344 + $0xa0] sm:$0xff]
        %v522 = vld [vmem:[%s344 + $0xa8] sm:$0xff]
        %v523 = vld [vmem:[%s344 + $0xb0] sm:$0x1f]
        %v524 = vld [vmem:[%s344 + $0xb8] sm:$0x1f]
        %v525 = vld [vmem:[%s344 + $0xc0] sm:$0xff]
        %v526 = vld [vmem:[%s344 + $0xc8] sm:$0xff]
        %v527 = vld [vmem:[%s344 + $0xd0] sm:$0x1f]
        %v528 = vld [vmem:[%s344 + $0xd8] sm:$0x1f]
        %v529 = vld [vmem:[%s344 + $0xe0] sm:$0xff]
        %v530 = vld [vmem:[%s344 + $0xe8] sm:$0xff]
        %v531 = vld [vmem:[%s344 + $0xf0] sm:$0x1f]
        %v532 = vld [vmem:[%s344 + $0xf8] sm:$0x1f]
        %v533 = vld [vmem:[%s344 + $0x100] sm:$0xff]
        %v534 = vld [vmem:[%s344 + $0x108] sm:$0xff]
        %v535 = vld [vmem:[%s344 + $0x110] sm:$0x1f]
        %v536 = vld [vmem:[%s344 + $0x118] sm:$0x1f]
        %v537 = vld [vmem:[%s344 + $0x120] sm:$0xff]
        %v538 = vld [vmem:[%s344 + $0x128] sm:$0xff]
        %v539 = vld [vmem:[%s344 + $0x130] sm:$0x1f]
        %v540 = vld [vmem:[%s344 + $0x138] sm:$0x1f]
        %v541 = vld [vmem:[%s351] sm:$0xff]
        %v542 = vld [vmem:[%s351 + $0x8] sm:$0xff]
        %v543 = vld [vmem:[%s351 + $0x10] sm:$0x1f]
        %v544 = vld [vmem:[%s351 + $0x18] sm:$0x1f]
        %v545 = vld [vmem:[%s351 + $0x20] sm:$0xff]
        %v546 = vld [vmem:[%s351 + $0x28] sm:$0xff]
        %v547 = vld [vmem:[%s351 + $0x30] sm:$0x1f]
        %v548 = vld [vmem:[%s351 + $0x38] sm:$0x1f]
        %v549 = vld [vmem:[%s351 + $0x40] sm:$0xff]
        %v550 = vld [vmem:[%s351 + $0x48] sm:$0xff]
        %v551 = vld [vmem:[%s351 + $0x50] sm:$0x1f]
        %v552 = vld [vmem:[%s351 + $0x58] sm:$0x1f]
        %v553 = vld [vmem:[%s351 + $0x60] sm:$0xff]
        %v554 = vld [vmem:[%s351 + $0x68] sm:$0xff]
        %v555 = vld [vmem:[%s351 + $0x70] sm:$0x1f]
        %v556 = vld [vmem:[%s351 + $0x78] sm:$0x1f]
        %v557 = vld [vmem:[%s351 + $0x80] sm:$0xff]
        %v558 = vld [vmem:[%s351 + $0x88] sm:$0xff]
        %v559 = vld [vmem:[%s351 + $0x90] sm:$0x1f]
        %v560 = vld [vmem:[%s351 + $0x98] sm:$0x1f]
        %v561 = vld [vmem:[%s351 + $0xa0] sm:$0xff]
        %v562 = vld [vmem:[%s351 + $0xa8] sm:$0xff]
        %v563 = vld [vmem:[%s351 + $0xb0] sm:$0x1f]
        %v564 = vld [vmem:[%s351 + $0xb8] sm:$0x1f]
        %v565 = vld [vmem:[%s351 + $0xc0] sm:$0xff]
        %v566 = vld [vmem:[%s351 + $0xc8] sm:$0xff]
        %v567 = vld [vmem:[%s351 + $0xd0] sm:$0x1f]
        %v568 = vld [vmem:[%s351 + $0xd8] sm:$0x1f]
        %v569 = vld [vmem:[%s351 + $0xe0] sm:$0xff]
        %v570 = vld [vmem:[%s351 + $0xe8] sm:$0xff]
        %v571 = vld [vmem:[%s351 + $0xf0] sm:$0x1f]
        %v572 = vld [vmem:[%s351 + $0xf8] sm:$0x1f]
        %v573 = vld [vmem:[%s351 + $0x100] sm:$0xff]
        %v574 = vld [vmem:[%s351 + $0x108] sm:$0xff]
        %v575 = vld [vmem:[%s351 + $0x110] sm:$0x1f]
        %v576 = vld [vmem:[%s351 + $0x118] sm:$0x1f]
        %v577 = vld [vmem:[%s351 + $0x120] sm:$0xff]
        %v578 = vld [vmem:[%s351 + $0x128] sm:$0xff]
        %v579 = vld [vmem:[%s351 + $0x130] sm:$0x1f]
        %v580 = vld [vmem:[%s351 + $0x138] sm:$0x1f]
        %v581 = vld [vmem:[%s358] sm:$0xff]
        %v582 = vld [vmem:[%s358 + $0x8] sm:$0xff]
        %v583 = vld [vmem:[%s358 + $0x10] sm:$0xff]
        %v584 = vld [vmem:[%s358 + $0x18] sm:$0xff]
        %v585 = vld [vmem:[%s358 + $0x20] sm:$0xff]
        %v586 = vld [vmem:[%s358 + $0x28] sm:$0xff]
        %v587 = vld [vmem:[%s358 + $0x30] sm:$0x3]
        %v588 = vld [vmem:[%s358 + $0x38] sm:$0xff]
        %v589 = vld [vmem:[%s358 + $0x40] sm:$0xff]
        %v590 = vld [vmem:[%s358 + $0x48] sm:$0xff]
        %v591 = vld [vmem:[%s358 + $0x50] sm:$0xff]
        %v592 = vld [vmem:[%s358 + $0x58] sm:$0xff]
        %v593 = vld [vmem:[%s358 + $0x60] sm:$0xff]
        %v594 = vld [vmem:[%s358 + $0x68] sm:$0x3]
        %v595 = vld [vmem:[%s358 + $0x70] sm:$0xff]
        %v596 = vld [vmem:[%s358 + $0x78] sm:$0xff]
        %v597 = vld [vmem:[%s358 + $0x80] sm:$0xff]
        %v598 = vld [vmem:[%s358 + $0x88] sm:$0xff]
        %v599 = vld [vmem:[%s358 + $0x90] sm:$0xff]
        %v600 = vld [vmem:[%s358 + $0x98] sm:$0xff]
        %v601 = vld [vmem:[%s358 + $0xa0] sm:$0x3]
        %v602 = vld [vmem:[%s358 + $0xa8] sm:$0xff]
        %v603 = vld [vmem:[%s358 + $0xb0] sm:$0xff]
        %v604 = vld [vmem:[%s358 + $0xb8] sm:$0xff]
        %v605 = vld [vmem:[%s358 + $0xc0] sm:$0xff]
        %v606 = vld [vmem:[%s358 + $0xc8] sm:$0xff]
        %v607 = vld [vmem:[%s358 + $0xd0] sm:$0xff]
        %v608 = vld [vmem:[%s358 + $0xd8] sm:$0x3]
        %v609 = vld [vmem:[%s358 + $0xe0] sm:$0xff]
        %v610 = vld [vmem:[%s358 + $0xe8] sm:$0xff]
        %v611 = vld [vmem:[%s358 + $0xf0] sm:$0xff]
        %v612 = vld [vmem:[%s358 + $0xf8] sm:$0xff]
        %v613 = vld [vmem:[%s358 + $0x100] sm:$0xff]
        %v614 = vld [vmem:[%s358 + $0x108] sm:$0xff]
        %v615 = vld [vmem:[%s358 + $0x110] sm:$0x3]
        %v616 = vld [vmem:[%s358 + $0x118] sm:$0xff]
        %v617 = vld [vmem:[%s358 + $0x120] sm:$0xff]
        %v618 = vld [vmem:[%s358 + $0x128] sm:$0xff]
        %v619 = vld [vmem:[%s358 + $0x130] sm:$0xff]
        %v620 = vld [vmem:[%s358 + $0x138] sm:$0xff]
        %v621 = vld [vmem:[%s358 + $0x140] sm:$0xff]
        %v622 = vld [vmem:[%s358 + $0x148] sm:$0x3]
        %v623 = vld [vmem:[%s358 + $0x150] sm:$0xff]
        %v624 = vld [vmem:[%s358 + $0x158] sm:$0xff]
        %v625 = vld [vmem:[%s358 + $0x160] sm:$0xff]
        %v626 = vld [vmem:[%s358 + $0x168] sm:$0xff]
        %v627 = vld [vmem:[%s358 + $0x170] sm:$0xff]
        %v628 = vld [vmem:[%s358 + $0x178] sm:$0xff]
        %v629 = vld [vmem:[%s358 + $0x180] sm:$0x3]
        %v630 = vld [vmem:[%s358 + $0x188] sm:$0xff]
        %v631 = vld [vmem:[%s358 + $0x190] sm:$0xff]
        %v632 = vld [vmem:[%s358 + $0x198] sm:$0xff]
        %v633 = vld [vmem:[%s358 + $0x1a0] sm:$0xff]
        %v634 = vld [vmem:[%s358 + $0x1a8] sm:$0xff]
        %v635 = vld [vmem:[%s358 + $0x1b0] sm:$0xff]
        %v636 = vld [vmem:[%s358 + $0x1b8] sm:$0x3]
        %v637 = vld [vmem:[%s358 + $0x1c0] sm:$0xff]
        %v638 = vld [vmem:[%s358 + $0x1c8] sm:$0xff]
        %v639 = vld [vmem:[%s358 + $0x1d0] sm:$0xff]
        %v640 = vld [vmem:[%s358 + $0x1d8] sm:$0xff]
        %v641 = vld [vmem:[%s358 + $0x1e0] sm:$0xff]
        %v642 = vld [vmem:[%s358 + $0x1e8] sm:$0xff]
        %v643 = vld [vmem:[%s358 + $0x1f0] sm:$0x3]
        %v644 = vld [vmem:[%s358 + $0x1f8] sm:$0xff]
        %v645 = vld [vmem:[%s358 + $0x200] sm:$0xff]
        %v646 = vld [vmem:[%s358 + $0x208] sm:$0xff]
        %v647 = vld [vmem:[%s358 + $0x210] sm:$0xff]
        %v648 = vld [vmem:[%s358 + $0x218] sm:$0xff]
        %v649 = vld [vmem:[%s358 + $0x220] sm:$0xff]
        %v650 = vld [vmem:[%s358 + $0x228] sm:$0x3]
        %s651 = sld [smem:[#allocation2]]
        %s652 = sld [smem:[#allocation3]]
        %s653 = sld [smem:[#allocation4]]
        %vm654 = vcmask 588800
        %v656 = vsel %vm654, %v362, 0
        %v659 = vsel %vm654, %v364, 0
        %v662 = vsel %vm654, %v366, 0
        %v665 = vsel %vm654, %v368, 0
        %v668 = vsel %vm654, %v370, 0
        %v671 = vsel %vm654, %v372, 0
        %v674 = vsel %vm654, %v374, 0
        %v677 = vsel %vm654, %v502, 0
        %v680 = vsel %vm654, %v504, 0
        %682 = vmatprep.subr.mxu0 %v677
        %683 = vmatpush1.xpose.msra.mxu0 %v501
        %684 = vmatprep.subr.mxu0 %v680
        %685 = vmatpush1.xpose.msra.mxu0 %v503
        %686 = vmatprep.subr.mxu0 0.0
        %687 = vmatpush1.xpose.msra.mxu0 0.0
        %688 = vmatprep.subr.mxu0 0.0
        %689 = vmatpush1.xpose.msra.mxu0 0.0
        %690 = vmatprep.subr.mxu0 0.0
        %691 = vmatpush1.xpose.msra.mxu0 0.0
        %692 = vmatprep.subr.mxu0 0.0
        %693 = vmatpush1.xpose.msra.mxu0 0.0
        %694 = vmatprep.subr.mxu0 0.0
        %695 = vmatpush1.xpose.msra.mxu0 0.0
        %696 = vmatprep.subr.mxu0 0.0
        %697 = vmatpush1.xpose.msra.mxu0 0.0
        %698 = vmatprep.subr.mxu0 0.0
        %699 = vmatpush1.xpose.msra.mxu0 0.0
        %700 = vmatprep.subr.mxu0 0.0
        %701 = vmatpush1.xpose.msra.mxu0 0.0
        %702 = vmatprep.subr.mxu0 0.0
        %703 = vmatpush1.xpose.msra.mxu0 0.0
        %704 = vmatprep.subr.mxu0 0.0
        %705 = vmatpush1.xpose.msra.mxu0 0.0
        %706 = vmatprep.subr.mxu0 0.0
        %707 = vmatpush1.xpose.msra.mxu0 0.0
        %708 = vmatprep.subr.mxu0 0.0
        %709 = vmatpush1.xpose.msra.mxu0 0.0
        %710 = vmatprep.subr.mxu0 0.0
        %711 = vmatpush1.xpose.msra.mxu0 0.0
        %712 = vmatprep.subr.mxu0 0.0
        %713 = vmatpush1.xpose.msra.mxu0 0.0
        %714 = vmatprep.subr.mxu0 0.0
        %715 = vmatpush1.xpose.msra.mxu0 0.0
        %716 = vmatprep.subr.mxu0 0.0
        %717 = vmatpush1.xpose.msra.mxu0 0.0
        %718 = vmatprep.subr.mxu0 0.0
        %719 = vmatpush1.xpose.msra.mxu0 0.0
        %720 = vmatprep.subr.mxu0 0.0
        %721 = vmatpush1.xpose.msra.mxu0 0.0
        %722 = vmatprep.subr.mxu0 0.0
        %723 = vmatpush1.xpose.msra.mxu0 0.0
        %724 = vmatprep.subr.mxu0 0.0
        %725 = vmatpush1.xpose.msra.mxu0 0.0
        %726 = vmatprep.subr.mxu0 0.0
        %727 = vmatpush1.xpose.msra.mxu0 0.0
        %728 = vmatprep.subr.mxu0 0.0
        %729 = vmatpush1.xpose.msra.mxu0 0.0
        %730 = vmatprep.subr.mxu0 0.0
        %731 = vmatpush1.xpose.msra.mxu0 0.0
        %732 = vmatprep.subr.mxu0 0.0
        %733 = vmatpush1.xpose.msra.mxu0 0.0
        %734 = vmatprep.subr.mxu0 0.0
        %735 = vmatpush1.xpose.msra.mxu0 0.0
        %736 = vmatprep.subr.mxu0 0.0
        %737 = vmatpush1.xpose.msra.mxu0 0.0
        %738 = vmatprep.subr.mxu0 0.0
        %739 = vmatpush1.xpose.msra.mxu0 0.0
        %740 = vmatprep.subr.mxu0 0.0
        %741 = vmatpush1.xpose.msra.mxu0 0.0
        %742 = vmatprep.subr.mxu0 0.0
        %743 = vmatpush1.xpose.msra.mxu0 0.0
        %744 = vmatprep.subr.mxu0 0.0
        %745 = vmatpush1.xpose.msra.mxu0 0.0
        %746 = vmatprep.mubr.f32.mxu0 %v656
        %747 = vmatmul.mubr.f32.gmra.mrb[0].mxu0 %v361
        %v748 = vpop.f32.mrb[0].mxu0
        %v749 = vadd.f32 0.0, %v748
        %v750 = vpop.f32.mrb[0].mxu0
        %751 = vmatprep.mubr.f32.mxu0 %v659
        %752 = vmatmul.mubr.f32.gmra.mrb[0].mxu0 %v363
        %v753 = vpop.f32.mrb[0].mxu0
        %v754 = vadd.f32 0.0, %v753
        %v755 = vpop.f32.mrb[0].mxu0
        %756 = vmatprep.mubr.f32.mxu0 %v662
        %757 = vmatmul.mubr.f32.gmra.mrb[0].mxu0 %v365
        %v758 = vpop.f32.mrb[0].mxu0
        %v759 = vadd.f32 0.0, %v758
        %v760 = vpop.f32.mrb[0].mxu0
        %761 = vmatprep.mubr.f32.mxu0 %v665
        %762 = vmatmul.mubr.f32.gmra.mrb[0].mxu0 %v367
        %v763 = vpop.f32.mrb[0].mxu0
        %v764 = vadd.f32 0.0, %v763
        %v765 = vpop.f32.mrb[0].mxu0
        %766 = vmatprep.mubr.f32.mxu0 %v668
        %767 = vmatmul.mubr.f32.gmra.mrb[0].mxu0 %v369
        %v768 = vpop.f32.mrb[0].mxu0
        %v769 = vadd.f32 0.0, %v768
        %v770 = vpop.f32.mrb[0].mxu0
        %771 = vmatprep.mubr.f32.mxu0 %v671
        %772 = vmatmul.mubr.f32.gmra.mrb[0].mxu0 %v371
        %v773 = vpop.f32.mrb[0].mxu0
        %v774 = vadd.f32 0.0, %v773
        %v775 = vpop.f32.mrb[0].mxu0
        %776 = vmatprep.mubr.f32.mxu0 %v674
        %777 = vmatmul.mubr.f32.gmra.mrb[0].mxu0 %v373
        %v778 = vpop.f32.mrb[0].mxu0
        %v779 = vadd.f32 0.0, %v778
        %v780 = vpop.f32.mrb[0].mxu0
        %781 = vdwg.mxu0
        %v783 = vsel %vm654, %v376, 0
        %v786 = vsel %vm654, %v378, 0
        %v789 = vsel %vm654, %v380, 0
        %v792 = vsel %vm654, %v382, 0
        %v795 = vsel %vm654, %v384, 0
        %v798 = vsel %vm654, %v386, 0
        %v801 = vsel %vm654, %v388, 0
        %v804 = vsel %vm654, %v506, 0
        %v807 = vsel %vm654, %v508, 0
        %809 = vmatprep.subr.mxu0 %v804
        %810 = vmatpush1.xpose.msra.mxu0 %v505
        %811 = vmatprep.subr.mxu0 %v807
        %812 = vmatpush1.xpose.msra.mxu0 %v507
        %813 = vmatprep.subr.mxu0 0.0
        %814 = vmatpush1.xpose.msra.mxu0 0.0
        %815 = vmatprep.subr.mxu0 0.0
        %816 = vmatpush1.xpose.msra.mxu0 0.0
        %817 = vmatprep.subr.mxu0 0.0
        %818 = vmatpush1.xpose.msra.mxu0 0.0
        %819 = vmatprep.subr.mxu0 0.0
        %820 = vmatpush1.xpose.msra.mxu0 0.0
        %821 = vmatprep.subr.mxu0 0.0
        %822 = vmatpush1.xpose.msra.mxu0 0.0
        %823 = vmatprep.subr.mxu0 0.0
        %824 = vmatpush1.xpose.msra.mxu0 0.0
        %825 = vmatprep.subr.mxu0 0.0
        %826 = vmatpush1.xpose.msra.mxu0 0.0
        %827 = vmatprep.subr.mxu0 0.0
        %828 = vmatpush1.xpose.msra.mxu0 0.0
        %829 = vmatprep.subr.mxu0 0.0
        %830 = vmatpush1.xpose.msra.mxu0 0.0
        %831 = vmatprep.subr.mxu0 0.0
        %832 = vmatpush1.xpose.msra.mxu0 0.0
        %833 = vmatprep.subr.mxu0 0.0
        %834 = vmatpush1.xpose.msra.mxu0 0.0
        %835 = vmatprep.subr.mxu0 0.0
        %836 = vmatpush1.xpose.msra.mxu0 0.0
        %837 = vmatprep.subr.mxu0 0.0
        %838 = vmatpush1.xpose.msra.mxu0 0.0
        %839 = vmatprep.subr.mxu0 0.0
        %840 = vmatpush1.xpose.msra.mxu0 0.0
        %841 = vmatprep.subr.mxu0 0.0
        %842 = vmatpush1.xpose.msra.mxu0 0.0
        %843 = vmatprep.subr.mxu0 0.0
        %844 = vmatpush1.xpose.msra.mxu0 0.0
        %845 = vmatprep.subr.mxu0 0.0
        %846 = vmatpush1.xpose.msra.mxu0 0.0
        %847 = vmatprep.subr.mxu0 0.0
        %848 = vmatpush1.xpose.msra.mxu0 0.0
        %849 = vmatprep.subr.mxu0 0.0
        %850 = vmatpush1.xpose.msra.mxu0 0.0
        %851 = vmatprep.subr.mxu0 0.0
        %852 = vmatpush1.xpose.msra.mxu0 0.0
        %853 = vmatprep.subr.mxu0 0.0
        %854 = vmatpush1.xpose.msra.mxu0 0.0
        %855 = vmatprep.subr.mxu0 0.0
        %856 = vmatpush1.xpose.msra.mxu0 0.0
        %857 = vmatprep.subr.mxu0 0.0
        %858 = vmatpush1.xpose.msra.mxu0 0.0
        %859 = vmatprep.subr.mxu0 0.0
        %860 = vmatpush1.xpose.msra.mxu0 0.0
        %861 = vmatprep.subr.mxu0 0.0
        %862 = vmatpush1.xpose.msra.mxu0 0.0
        %863 = vmatprep.subr.mxu0 0.0
        %864 = vmatpush1.xpose.msra.mxu0 0.0
        %865 = vmatprep.subr.mxu0 0.0
        %866 = vmatpush1.xpose.msra.mxu0 0.0
        %867 = vmatprep.subr.mxu0 0.0
        %868 = vmatpush1.xpose.msra.mxu0 0.0
        %869 = vmatprep.subr.mxu0 0.0
        %870 = vmatpush1.xpose.msra.mxu0 0.0
        %871 = vmatprep.subr.mxu0 0.0
        %872 = vmatpush1.xpose.msra.mxu0 0.0
        %873 = vmatprep.mubr.f32.mxu0 %v783
        %874 = vmatmul.mubr.f32.gmra.mrb[0].mxu0 %v375
        %v875 = vpop.f32.mrb[0].mxu0
        %v876 = vadd.f32 0.0, %v875
        %v877 = vpop.f32.mrb[0].mxu0
        %878 = vmatprep.mubr.f32.mxu0 %v786
        %879 = vmatmul.mubr.f32.gmra.mrb[0].mxu0 %v377
        %v880 = vpop.f32.mrb[0].mxu0
        %v881 = vadd.f32 0.0, %v880
        %v882 = vpop.f32.mrb[0].mxu0
        %883 = vmatprep.mubr.f32.mxu0 %v789
        %884 = vmatmul.mubr.f32.gmra.mrb[0].mxu0 %v379
        %v885 = vpop.f32.mrb[0].mxu0
        %v886 = vadd.f32 0.0, %v885
        %v887 = vpop.f32.mrb[0].mxu0
        %888 = vmatprep.mubr.f32.mxu0 %v792
        %889 = vmatmul.mubr.f32.gmra.mrb[0].mxu0 %v381
        %v890 = vpop.f32.mrb[0].mxu0
        %v891 = vadd.f32 0.0, %v890
        %v892 = vpop.f32.mrb[0].mxu0
        %893 = vmatprep.mubr.f32.mxu0 %v795
        %894 = vmatmul.mubr.f32.gmra.mrb[0].mxu0 %v383
        %v895 = vpop.f32.mrb[0].mxu0
        %v896 = vadd.f32 0.0, %v895
        %v897 = vpop.f32.mrb[0].mxu0
        %898 = vmatprep.mubr.f32.mxu0 %v798
        %899 = vmatmul.mubr.f32.gmra.mrb[0].mxu0 %v385
        %v900 = vpop.f32.mrb[0].mxu0
        %v901 = vadd.f32 0.0, %v900
        %v902 = vpop.f32.mrb[0].mxu0
        %903 = vmatprep.mubr.f32.mxu0 %v801
        %904 = vmatmul.mubr.f32.gmra.mrb[0].mxu0 %v387
        %v905 = vpop.f32.mrb[0].mxu0
        %v906 = vadd.f32 0.0, %v905
        %v907 = vpop.f32.mrb[0].mxu0
        %908 = vdwg.mxu0
        %v910 = vsel %vm654, %v390, 0
        %v913 = vsel %vm654, %v392, 0
        %v916 = vsel %vm654, %v394, 0
        %v919 = vsel %vm654, %v396, 0
        %v922 = vsel %vm654, %v398, 0
        %v925 = vsel %vm654, %v400, 0
        %v928 = vsel %vm654, %v402, 0
        %v931 = vsel %vm654, %v510, 0
        %v934 = vsel %vm654, %v512, 0
        %936 = vmatprep.subr.mxu0 %v931
        %937 = vmatpush1.xpose.msra.mxu0 %v509
        %938 = vmatprep.subr.mxu0 %v934
        %939 = vmatpush1.xpose.msra.mxu0 %v511
        %940 = vmatprep.subr.mxu0 0.0
        %941 = vmatpush1.xpose.msra.mxu0 0.0
        %942 = vmatprep.subr.mxu0 0.0
        %943 = vmatpush1.xpose.msra.mxu0 0.0
        %944 = vmatprep.subr.mxu0 0.0
        %945 = vmatpush1.xpose.msra.mxu0 0.0
        %946 = vmatprep.subr.mxu0 0.0
        %947 = vmatpush1.xpose.msra.mxu0 0.0
        %948 = vmatprep.subr.mxu0 0.0
        %949 = vmatpush1.xpose.msra.mxu0 0.0
        %950 = vmatprep.subr.mxu0 0.0
        %951 = vmatpush1.xpose.msra.mxu0 0.0
        %952 = vmatprep.subr.mxu0 0.0
        %953 = vmatpush1.xpose.msra.mxu0 0.0
        %954 = vmatprep.subr.mxu0 0.0
        %955 = vmatpush1.xpose.msra.mxu0 0.0
        %956 = vmatprep.subr.mxu0 0.0
        %957 = vmatpush1.xpose.msra.mxu0 0.0
        %958 = vmatprep.subr.mxu0 0.0
        %959 = vmatpush1.xpose.msra.mxu0 0.0
        %960 = vmatprep.subr.mxu0 0.0
        %961 = vmatpush1.xpose.msra.mxu0 0.0
        %962 = vmatprep.subr.mxu0 0.0
        %963 = vmatpush1.xpose.msra.mxu0 0.0
        %964 = vmatprep.subr.mxu0 0.0
        %965 = vmatpush1.xpose.msra.mxu0 0.0
        %966 = vmatprep.subr.mxu0 0.0
        %967 = vmatpush1.xpose.msra.mxu0 0.0
        %968 = vmatprep.subr.mxu0 0.0
        %969 = vmatpush1.xpose.msra.mxu0 0.0
        %970 = vmatprep.subr.mxu0 0.0
        %971 = vmatpush1.xpose.msra.mxu0 0.0
        %972 = vmatprep.subr.mxu0 0.0
        %973 = vmatpush1.xpose.msra.mxu0 0.0
        %974 = vmatprep.subr.mxu0 0.0
        %975 = vmatpush1.xpose.msra.mxu0 0.0
        %976 = vmatprep.subr.mxu0 0.0
        %977 = vmatpush1.xpose.msra.mxu0 0.0
        %978 = vmatprep.subr.mxu0 0.0
        %979 = vmatpush1.xpose.msra.mxu0 0.0
        %980 = vmatprep.subr.mxu0 0.0
        %981 = vmatpush1.xpose.msra.mxu0 0.0
        %982 = vmatprep.subr.mxu0 0.0
        %983 = vmatpush1.xpose.msra.mxu0 0.0
        %984 = vmatprep.subr.mxu0 0.0
        %985 = vmatpush1.xpose.msra.mxu0 0.0
        %986 = vmatprep.subr.mxu0 0.0
        %987 = vmatpush1.xpose.msra.mxu0 0.0
        %988 = vmatprep.subr.mxu0 0.0
        %989 = vmatpush1.xpose.msra.mxu0 0.0
        %990 = vmatprep.subr.mxu0 0.0
        %991 = vmatpush1.xpose.msra.mxu0 0.0
        %992 = vmatprep.subr.mxu0 0.0
        %993 = vmatpush1.xpose.msra.mxu0 0.0
        %994 = vmatprep.subr.mxu0 0.0
        %995 = vmatpush1.xpose.msra.mxu0 0.0
        %996 = vmatprep.subr.mxu0 0.0
        %997 = vmatpush1.xpose.msra.mxu0 0.0
        %998 = vmatprep.subr.mxu0 0.0
        %999 = vmatpush1.xpose.msra.mxu0 0.0
        %1000 = vmatprep.mubr.f32.mxu0 %v910
        %1001 = vmatmul.mubr.f32.gmra.mrb[0].mxu0 %v389
        %v1002 = vpop.f32.mrb[0].mxu0
        %v1003 = vadd.f32 0.0, %v1002
        %v1004 = vpop.f32.mrb[0].mxu0
        %1005 = vmatprep.mubr.f32.mxu0 %v913
        %1006 = vmatmul.mubr.f32.gmra.mrb[0].mxu0 %v391
        %v1007 = vpop.f32.mrb[0].mxu0
        %v1008 = vadd.f32 0.0, %v1007
        %v1009 = vpop.f32.mrb[0].mxu0
        %1010 = vmatprep.mubr.f32.mxu0 %v916
        %1011 = vmatmul.mubr.f32.gmra.mrb[0].mxu0 %v393
        %v1012 = vpop.f32.mrb[0].mxu0
        %v1013 = vadd.f32 0.0, %v1012
        %v1014 = vpop.f32.mrb[0].mxu0
        %1015 = vmatprep.mubr.f32.mxu0 %v919
        %1016 = vmatmul.mubr.f32.gmra.mrb[0].mxu0 %v395
        %v1017 = vpop.f32.mrb[0].mxu0
        %v1018 = vadd.f32 0.0, %v1017
        %v1019 = vpop.f32.mrb[0].mxu0
        %1020 = vmatprep.mubr.f32.mxu0 %v922
        %1021 = vmatmul.mubr.f32.gmra.mrb[0].mxu0 %v397
        %v1022 = vpop.f32.mrb[0].mxu0
        %v1023 = vadd.f32 0.0, %v1022
        %v1024 = vpop.f32.mrb[0].mxu0
        %1025 = vmatprep.mubr.f32.mxu0 %v925
        %1026 = vmatmul.mubr.f32.gmra.mrb[0].mxu0 %v399
        %v1027 = vpop.f32.mrb[0].mxu0
        %v1028 = vadd.f32 0.0, %v1027
        %v1029 = vpop.f32.mrb[0].mxu0
        %1030 = vmatprep.mubr.f32.mxu0 %v928
        %1031 = vmatmul.mubr.f32.gmra.mrb[0].mxu0 %v401
        %v1032 = vpop.f32.mrb[0].mxu0
        %v1033 = vadd.f32 0.0, %v1032
        %v1034 = vpop.f32.mrb[0].mxu0
        %1035 = vdwg.mxu0
        %v1037 = vsel %vm654, %v404, 0
        %v1040 = vsel %vm654, %v406, 0
        %v1043 = vsel %vm654, %v408, 0
        %v1046 = vsel %vm654, %v410, 0
        %v1049 = vsel %vm654, %v412, 0
        %v1052 = vsel %vm654, %v414, 0
        %v1055 = vsel %vm654, %v416, 0
        %v1058 = vsel %vm654, %v514, 0
        %v1061 = vsel %vm654, %v516, 0
        %1063 = vmatprep.subr.mxu0 %v1058
        %1064 = vmatpush1.xpose.msra.mxu0 %v513
        %1065 = vmatprep.subr.mxu0 %v1061
        %1066 = vmatpush1.xpose.msra.mxu0 %v515
        %1067 = vmatprep.subr.mxu0 0.0
        %1068 = vmatpush1.xpose.msra.mxu0 0.0
        %1069 = vmatprep.subr.mxu0 0.0
        %1070 = vmatpush1.xpose.msra.mxu0 0.0
        %1071 = vmatprep.subr.mxu0 0.0
        %1072 = vmatpush1.xpose.msra.mxu0 0.0
        %1073 = vmatprep.subr.mxu0 0.0
        %1074 = vmatpush1.xpose.msra.mxu0 0.0
        %1075 = vmatprep.subr.mxu0 0.0
        %1076 = vmatpush1.xpose.msra.mxu0 0.0
        %1077 = vmatprep.subr.mxu0 0.0
        %1078 = vmatpush1.xpose.msra.mxu0 0.0
        %1079 = vmatprep.subr.mxu0 0.0
        %1080 = vmatpush1.xpose.msra.mxu0 0.0
        %1081 = vmatprep.subr.mxu0 0.0
        %1082 = vmatpush1.xpose.msra.mxu0 0.0
        %1083 = vmatprep.subr.mxu0 0.0
        %1084 = vmatpush1.xpose.msra.mxu0 0.0
        %1085 = vmatprep.subr.mxu0 0.0
        %1086 = vmatpush1.xpose.msra.mxu0 0.0
        %1087 = vmatprep.subr.mxu0 0.0
        %1088 = vmatpush1.xpose.msra.mxu0 0.0
        %1089 = vmatprep.subr.mxu0 0.0
        %1090 = vmatpush1.xpose.msra.mxu0 0.0
        %1091 = vmatprep.subr.mxu0 0.0
        %1092 = vmatpush1.xpose.msra.mxu0 0.0
        %1093 = vmatprep.subr.mxu0 0.0
        %1094 = vmatpush1.xpose.msra.mxu0 0.0
        %1095 = vmatprep.subr.mxu0 0.0
        %1096 = vmatpush1.xpose.msra.mxu0 0.0
        %1097 = vmatprep.subr.mxu0 0.0
        %1098 = vmatpush1.xpose.msra.mxu0 0.0
        %1099 = vmatprep.subr.mxu0 0.0
        %1100 = vmatpush1.xpose.msra.mxu0 0.0
        %1101 = vmatprep.subr.mxu0 0.0
        %1102 = vmatpush1.xpose.msra.mxu0 0.0
        %1103 = vmatprep.subr.mxu0 0.0
        %1104 = vmatpush1.xpose.msra.mxu0 0.0
        %1105 = vmatprep.subr.mxu0 0.0
        %1106 = vmatpush1.xpose.msra.mxu0 0.0
        %1107 = vmatprep.subr.mxu0 0.0
        %1108 = vmatpush1.xpose.msra.mxu0 0.0
        %1109 = vmatprep.subr.mxu0 0.0
        %1110 = vmatpush1.xpose.msra.mxu0 0.0
        %1111 = vmatprep.subr.mxu0 0.0
        %1112 = vmatpush1.xpose.msra.mxu0 0.0
        %1113 = vmatprep.subr.mxu0 0.0
        %1114 = vmatpush1.xpose.msra.mxu0 0.0
        %1115 = vmatprep.subr.mxu0 0.0
        %1116 = vmatpush1.xpose.msra.mxu0 0.0
        %1117 = vmatprep.subr.mxu0 0.0
        %1118 = vmatpush1.xpose.msra.mxu0 0.0
        %1119 = vmatprep.subr.mxu0 0.0
        %1120 = vmatpush1.xpose.msra.mxu0 0.0
        %1121 = vmatprep.subr.mxu0 0.0
        %1122 = vmatpush1.xpose.msra.mxu0 0.0
        %1123 = vmatprep.subr.mxu0 0.0
        %1124 = vmatpush1.xpose.msra.mxu0 0.0
        %1125 = vmatprep.subr.mxu0 0.0
        %1126 = vmatpush1.xpose.msra.mxu0 0.0
        %1127 = vmatprep.mubr.f32.mxu0 %v1037
        %1128 = vmatmul.mubr.f32.gmra.mrb[0].mxu0 %v403
        %v1129 = vpop.f32.mrb[0].mxu0
        %v1130 = vadd.f32 0.0, %v1129
        %v1131 = vpop.f32.mrb[0].mxu0
        %1132 = vmatprep.mubr.f32.mxu0 %v1040
        %1133 = vmatmul.mubr.f32.gmra.mrb[0].mxu0 %v405
        %v1134 = vpop.f32.mrb[0].mxu0
        %v1135 = vadd.f32 0.0, %v1134
        %v1136 = vpop.f32.mrb[0].mxu0
        %1137 = vmatprep.mubr.f32.mxu0 %v1043
        %1138 = vmatmul.mubr.f32.gmra.mrb[0].mxu0 %v407
        %v1139 = vpop.f32.mrb[0].mxu0
        %v1140 = vadd.f32 0.0, %v1139
        %v1141 = vpop.f32.mrb[0].mxu0
        %1142 = vmatprep.mubr.f32.mxu0 %v1046
        %1143 = vmatmul.mubr.f32.gmra.mrb[0].mxu0 %v409
        %v1144 = vpop.f32.mrb[0].mxu0
        %v1145 = vadd.f32 0.0, %v1144
        %v1146 = vpop.f32.mrb[0].mxu0
        %1147 = vmatprep.mubr.f32.mxu0 %v1049
        %1148 = vmatmul.mubr.f32.gmra.mrb[0].mxu0 %v411
        %v1149 = vpop.f32.mrb[0].mxu0
        %v1150 = vadd.f32 0.0, %v1149
        %v1151 = vpop.f32.mrb[0].mxu0
        %1152 = vmatprep.mubr.f32.mxu0 %v1052
        %1153 = vmatmul.mubr.f32.gmra.mrb[0].mxu0 %v413
        %v1154 = vpop.f32.mrb[0].mxu0
        %v1155 = vadd.f32 0.0, %v1154
        %v1156 = vpop.f32.mrb[0].mxu0
        %1157 = vmatprep.mubr.f32.mxu0 %v1055
        %1158 = vmatmul.mubr.f32.gmra.mrb[0].mxu0 %v415
        %v1159 = vpop.f32.mrb[0].mxu0
        %v1160 = vadd.f32 0.0, %v1159
        %v1161 = vpop.f32.mrb[0].mxu0
        %1162 = vdwg.mxu0
        %v1164 = vsel %vm654, %v418, 0
        %v1167 = vsel %vm654, %v420, 0
        %v1170 = vsel %vm654, %v422, 0
        %v1173 = vsel %vm654, %v424, 0
        %v1176 = vsel %vm654, %v426, 0
        %v1179 = vsel %vm654, %v428, 0
        %v1182 = vsel %vm654, %v430, 0
        %v1185 = vsel %vm654, %v518, 0
        %v1188 = vsel %vm654, %v520, 0
        %1190 = vmatprep.subr.mxu0 %v1185
        %1191 = vmatpush1.xpose.msra.mxu0 %v517
        %1192 = vmatprep.subr.mxu0 %v1188
        %1193 = vmatpush1.xpose.msra.mxu0 %v519
        %1194 = vmatprep.subr.mxu0 0.0
        %1195 = vmatpush1.xpose.msra.mxu0 0.0
        %1196 = vmatprep.subr.mxu0 0.0
        %1197 = vmatpush1.xpose.msra.mxu0 0.0
        %1198 = vmatprep.subr.mxu0 0.0
        %1199 = vmatpush1.xpose.msra.mxu0 0.0
        %1200 = vmatprep.subr.mxu0 0.0
        %1201 = vmatpush1.xpose.msra.mxu0 0.0
        %1202 = vmatprep.subr.mxu0 0.0
        %1203 = vmatpush1.xpose.msra.mxu0 0.0
        %1204 = vmatprep.subr.mxu0 0.0
        %1205 = vmatpush1.xpose.msra.mxu0 0.0
        %1206 = vmatprep.subr.mxu0 0.0
        %1207 = vmatpush1.xpose.msra.mxu0 0.0
        %1208 = vmatprep.subr.mxu0 0.0
        %1209 = vmatpush1.xpose.msra.mxu0 0.0
        %1210 = vmatprep.subr.mxu0 0.0
        %1211 = vmatpush1.xpose.msra.mxu0 0.0
        %1212 = vmatprep.subr.mxu0 0.0
        %1213 = vmatpush1.xpose.msra.mxu0 0.0
        %1214 = vmatprep.subr.mxu0 0.0
        %1215 = vmatpush1.xpose.msra.mxu0 0.0
        %1216 = vmatprep.subr.mxu0 0.0
        %1217 = vmatpush1.xpose.msra.mxu0 0.0
        %1218 = vmatprep.subr.mxu0 0.0
        %1219 = vmatpush1.xpose.msra.mxu0 0.0
        %1220 = vmatprep.subr.mxu0 0.0
        %1221 = vmatpush1.xpose.msra.mxu0 0.0
        %1222 = vmatprep.subr.mxu0 0.0
        %1223 = vmatpush1.xpose.msra.mxu0 0.0
        %1224 = vmatprep.subr.mxu0 0.0
        %1225 = vmatpush1.xpose.msra.mxu0 0.0
        %1226 = vmatprep.subr.mxu0 0.0
        %1227 = vmatpush1.xpose.msra.mxu0 0.0
        %1228 = vmatprep.subr.mxu0 0.0
        %1229 = vmatpush1.xpose.msra.mxu0 0.0
        %1230 = vmatprep.subr.mxu0 0.0
        %1231 = vmatpush1.xpose.msra.mxu0 0.0
        %1232 = vmatprep.subr.mxu0 0.0
        %1233 = vmatpush1.xpose.msra.mxu0 0.0
        %1234 = vmatprep.subr.mxu0 0.0
        %1235 = vmatpush1.xpose.msra.mxu0 0.0
        %1236 = vmatprep.subr.mxu0 0.0
        %1237 = vmatpush1.xpose.msra.mxu0 0.0
        %1238 = vmatprep.subr.mxu0 0.0
        %1239 = vmatpush1.xpose.msra.mxu0 0.0
        %1240 = vmatprep.subr.mxu0 0.0
        %1241 = vmatpush1.xpose.msra.mxu0 0.0
        %1242 = vmatprep.subr.mxu0 0.0
        %1243 = vmatpush1.xpose.msra.mxu0 0.0
        %1244 = vmatprep.subr.mxu0 0.0
        %1245 = vmatpush1.xpose.msra.mxu0 0.0
        %1246 = vmatprep.subr.mxu0 0.0
        %1247 = vmatpush1.xpose.msra.mxu0 0.0
        %1248 = vmatprep.subr.mxu0 0.0
        %1249 = vmatpush1.xpose.msra.mxu0 0.0
        %1250 = vmatprep.subr.mxu0 0.0
        %1251 = vmatpush1.xpose.msra.mxu0 0.0
        %1252 = vmatprep.subr.mxu0 0.0
        %1253 = vmatpush1.xpose.msra.mxu0 0.0
        %1254 = vmatprep.mubr.f32.mxu0 %v1164
        %1255 = vmatmul.mubr.f32.gmra.mrb[0].mxu0 %v417
        %v1256 = vpop.f32.mrb[0].mxu0
        %v1257 = vadd.f32 0.0, %v1256
        %v1258 = vpop.f32.mrb[0].mxu0
        %1259 = vmatprep.mubr.f32.mxu0 %v1167
        %1260 = vmatmul.mubr.f32.gmra.mrb[0].mxu0 %v419
        %v1261 = vpop.f32.mrb[0].mxu0
        %v1262 = vadd.f32 0.0, %v1261
        %v1263 = vpop.f32.mrb[0].mxu0
        %1264 = vmatprep.mubr.f32.mxu0 %v1170
        %1265 = vmatmul.mubr.f32.gmra.mrb[0].mxu0 %v421
        %v1266 = vpop.f32.mrb[0].mxu0
        %v1267 = vadd.f32 0.0, %v1266
        %v1268 = vpop.f32.mrb[0].mxu0
        %1269 = vmatprep.mubr.f32.mxu0 %v1173
        %1270 = vmatmul.mubr.f32.gmra.mrb[0].mxu0 %v423
        %v1271 = vpop.f32.mrb[0].mxu0
        %v1272 = vadd.f32 0.0, %v1271
        %v1273 = vpop.f32.mrb[0].mxu0
        %1274 = vmatprep.mubr.f32.mxu0 %v1176
        %1275 = vmatmul.mubr.f32.gmra.mrb[0].mxu0 %v425
        %v1276 = vpop.f32.mrb[0].mxu0
        %v1277 = vadd.f32 0.0, %v1276
        %v1278 = vpop.f32.mrb[0].mxu0
        %1279 = vmatprep.mubr.f32.mxu0 %v1179
        %1280 = vmatmul.mubr.f32.gmra.mrb[0].mxu0 %v427
        %v1281 = vpop.f32.mrb[0].mxu0
        %v1282 = vadd.f32 0.0, %v1281
        %v1283 = vpop.f32.mrb[0].mxu0
        %1284 = vmatprep.mubr.f32.mxu0 %v1182
        %1285 = vmatmul.mubr.f32.gmra.mrb[0].mxu0 %v429
        %v1286 = vpop.f32.mrb[0].mxu0
        %v1287 = vadd.f32 0.0, %v1286
        %v1288 = vpop.f32.mrb[0].mxu0
        %1289 = vdwg.mxu0
        %v1291 = vsel %vm654, %v432, 0
        %v1294 = vsel %vm654, %v434, 0
        %v1297 = vsel %vm654, %v436, 0
        %v1300 = vsel %vm654, %v438, 0
        %v1303 = vsel %vm654, %v440, 0
        %v1306 = vsel %vm654, %v442, 0
        %v1309 = vsel %vm654, %v444, 0
        %v1312 = vsel %vm654, %v522, 0
        %v1315 = vsel %vm654, %v524, 0
        %1317 = vmatprep.subr.mxu0 %v1312
        %1318 = vmatpush1.xpose.msra.mxu0 %v521
        %1319 = vmatprep.subr.mxu0 %v1315
        %1320 = vmatpush1.xpose.msra.mxu0 %v523
        %1321 = vmatprep.subr.mxu0 0.0
        %1322 = vmatpush1.xpose.msra.mxu0 0.0
        %1323 = vmatprep.subr.mxu0 0.0
        %1324 = vmatpush1.xpose.msra.mxu0 0.0
        %1325 = vmatprep.subr.mxu0 0.0
        %1326 = vmatpush1.xpose.msra.mxu0 0.0
        %1327 = vmatprep.subr.mxu0 0.0
        %1328 = vmatpush1.xpose.msra.mxu0 0.0
        %1329 = vmatprep.subr.mxu0 0.0
        %1330 = vmatpush1.xpose.msra.mxu0 0.0
        %1331 = vmatprep.subr.mxu0 0.0
        %1332 = vmatpush1.xpose.msra.mxu0 0.0
        %1333 = vmatprep.subr.mxu0 0.0
        %1334 = vmatpush1.xpose.msra.mxu0 0.0
        %1335 = vmatprep.subr.mxu0 0.0
        %1336 = vmatpush1.xpose.msra.mxu0 0.0
        %1337 = vmatprep.subr.mxu0 0.0
        %1338 = vmatpush1.xpose.msra.mxu0 0.0
        %1339 = vmatprep.subr.mxu0 0.0
        %1340 = vmatpush1.xpose.msra.mxu0 0.0
        %1341 = vmatprep.subr.mxu0 0.0
        %1342 = vmatpush1.xpose.msra.mxu0 0.0
        %1343 = vmatprep.subr.mxu0 0.0
        %1344 = vmatpush1.xpose.msra.mxu0 0.0
        %1345 = vmatprep.subr.mxu0 0.0
        %1346 = vmatpush1.xpose.msra.mxu0 0.0
        %1347 = vmatprep.subr.mxu0 0.0
        %1348 = vmatpush1.xpose.msra.mxu0 0.0
        %1349 = vmatprep.subr.mxu0 0.0
        %1350 = vmatpush1.xpose.msra.mxu0 0.0
        %1351 = vmatprep.subr.mxu0 0.0
        %1352 = vmatpush1.xpose.msra.mxu0 0.0
        %1353 = vmatprep.subr.mxu0 0.0
        %1354 = vmatpush1.xpose.msra.mxu0 0.0
        %1355 = vmatprep.subr.mxu0 0.0
        %1356 = vmatpush1.xpose.msra.mxu0 0.0
        %1357 = vmatprep.subr.mxu0 0.0
        %1358 = vmatpush1.xpose.msra.mxu0 0.0
        %1359 = vmatprep.subr.mxu0 0.0
        %1360 = vmatpush1.xpose.msra.mxu0 0.0
        %1361 = vmatprep.subr.mxu0 0.0
        %1362 = vmatpush1.xpose.msra.mxu0 0.0
        %1363 = vmatprep.subr.mxu0 0.0
        %1364 = vmatpush1.xpose.msra.mxu0 0.0
        %1365 = vmatprep.subr.mxu0 0.0
        %1366 = vmatpush1.xpose.msra.mxu0 0.0
        %1367 = vmatprep.subr.mxu0 0.0
        %1368 = vmatpush1.xpose.msra.mxu0 0.0
        %1369 = vmatprep.subr.mxu0 0.0
        %1370 = vmatpush1.xpose.msra.mxu0 0.0
        %1371 = vmatprep.subr.mxu0 0.0
        %1372 = vmatpush1.xpose.msra.mxu0 0.0
        %1373 = vmatprep.subr.mxu0 0.0
        %1374 = vmatpush1.xpose.msra.mxu0 0.0
        %1375 = vmatprep.subr.mxu0 0.0
        %1376 = vmatpush1.xpose.msra.mxu0 0.0
        %1377 = vmatprep.subr.mxu0 0.0
        %1378 = vmatpush1.xpose.msra.mxu0 0.0
        %1379 = vmatprep.subr.mxu0 0.0
        %1380 = vmatpush1.xpose.msra.mxu0 0.0
        %1381 = vmatprep.mubr.f32.mxu0 %v1291
        %1382 = vmatmul.mubr.f32.gmra.mrb[0].mxu0 %v431
        %v1383 = vpop.f32.mrb[0].mxu0
        %v1384 = vadd.f32 0.0, %v1383
        %v1385 = vpop.f32.mrb[0].mxu0
        %1386 = vmatprep.mubr.f32.mxu0 %v1294
        %1387 = vmatmul.mubr.f32.gmra.mrb[0].mxu0 %v433
        %v1388 = vpop.f32.mrb[0].mxu0
        %v1389 = vadd.f32 0.0, %v1388
        %v1390 = vpop.f32.mrb[0].mxu0
        %1391 = vmatprep.mubr.f32.mxu0 %v1297
        %1392 = vmatmul.mubr.f32.gmra.mrb[0].mxu0 %v435
        %v1393 = vpop.f32.mrb[0].mxu0
        %v1394 = vadd.f32 0.0, %v1393
        %v1395 = vpop.f32.mrb[0].mxu0
        %1396 = vmatprep.mubr.f32.mxu0 %v1300
        %1397 = vmatmul.mubr.f32.gmra.mrb[0].mxu0 %v437
        %v1398 = vpop.f32.mrb[0].mxu0
        %v1399 = vadd.f32 0.0, %v1398
        %v1400 = vpop.f32.mrb[0].mxu0
        %1401 = vmatprep.mubr.f32.mxu0 %v1303
        %1402 = vmatmul.mubr.f32.gmra.mrb[0].mxu0 %v439
        %v1403 = vpop.f32.mrb[0].mxu0
        %v1404 = vadd.f32 0.0, %v1403
        %v1405 = vpop.f32.mrb[0].mxu0
        %1406 = vmatprep.mubr.f32.mxu0 %v1306
        %1407 = vmatmul.mubr.f32.gmra.mrb[0].mxu0 %v441
        %v1408 = vpop.f32.mrb[0].mxu0
        %v1409 = vadd.f32 0.0, %v1408
        %v1410 = vpop.f32.mrb[0].mxu0
        %1411 = vmatprep.mubr.f32.mxu0 %v1309
        %1412 = vmatmul.mubr.f32.gmra.mrb[0].mxu0 %v443
        %v1413 = vpop.f32.mrb[0].mxu0
        %v1414 = vadd.f32 0.0, %v1413
        %v1415 = vpop.f32.mrb[0].mxu0
        %1416 = vdwg.mxu0
        %v1418 = vsel %vm654, %v446, 0
        %v1421 = vsel %vm654, %v448, 0
        %v1424 = vsel %vm654, %v450, 0
        %v1427 = vsel %vm654, %v452, 0
        %v1430 = vsel %vm654, %v454, 0
        %v1433 = vsel %vm654, %v456, 0
        %v1436 = vsel %vm654, %v458, 0
        %v1439 = vsel %vm654, %v526, 0
        %v1442 = vsel %vm654, %v528, 0
        %1444 = vmatprep.subr.mxu0 %v1439
        %1445 = vmatpush1.xpose.msra.mxu0 %v525
        %1446 = vmatprep.subr.mxu0 %v1442
        %1447 = vmatpush1.xpose.msra.mxu0 %v527
        %1448 = vmatprep.subr.mxu0 0.0
        %1449 = vmatpush1.xpose.msra.mxu0 0.0
        %1450 = vmatprep.subr.mxu0 0.0
        %1451 = vmatpush1.xpose.msra.mxu0 0.0
        %1452 = vmatprep.subr.mxu0 0.0
        %1453 = vmatpush1.xpose.msra.mxu0 0.0
        %1454 = vmatprep.subr.mxu0 0.0
        %1455 = vmatpush1.xpose.msra.mxu0 0.0
        %1456 = vmatprep.subr.mxu0 0.0
        %1457 = vmatpush1.xpose.msra.mxu0 0.0
        %1458 = vmatprep.subr.mxu0 0.0
        %1459 = vmatpush1.xpose.msra.mxu0 0.0
        %1460 = vmatprep.subr.mxu0 0.0
        %1461 = vmatpush1.xpose.msra.mxu0 0.0
        %1462 = vmatprep.subr.mxu0 0.0
        %1463 = vmatpush1.xpose.msra.mxu0 0.0
        %1464 = vmatprep.subr.mxu0 0.0
        %1465 = vmatpush1.xpose.msra.mxu0 0.0
        %1466 = vmatprep.subr.mxu0 0.0
        %1467 = vmatpush1.xpose.msra.mxu0 0.0
        %1468 = vmatprep.subr.mxu0 0.0
        %1469 = vmatpush1.xpose.msra.mxu0 0.0
        %1470 = vmatprep.subr.mxu0 0.0
        %1471 = vmatpush1.xpose.msra.mxu0 0.0
        %1472 = vmatprep.subr.mxu0 0.0
        %1473 = vmatpush1.xpose.msra.mxu0 0.0
        %1474 = vmatprep.subr.mxu0 0.0
        %1475 = vmatpush1.xpose.msra.mxu0 0.0
        %1476 = vmatprep.subr.mxu0 0.0
        %1477 = vmatpush1.xpose.msra.mxu0 0.0
        %1478 = vmatprep.subr.mxu0 0.0
        %1479 = vmatpush1.xpose.msra.mxu0 0.0
        %1480 = vmatprep.subr.mxu0 0.0
        %1481 = vmatpush1.xpose.msra.mxu0 0.0
        %1482 = vmatprep.subr.mxu0 0.0
        %1483 = vmatpush1.xpose.msra.mxu0 0.0
        %1484 = vmatprep.subr.mxu0 0.0
        %1485 = vmatpush1.xpose.msra.mxu0 0.0
        %1486 = vmatprep.subr.mxu0 0.0
        %1487 = vmatpush1.xpose.msra.mxu0 0.0
        %1488 = vmatprep.subr.mxu0 0.0
        %1489 = vmatpush1.xpose.msra.mxu0 0.0
        %1490 = vmatprep.subr.mxu0 0.0
        %1491 = vmatpush1.xpose.msra.mxu0 0.0
        %1492 = vmatprep.subr.mxu0 0.0
        %1493 = vmatpush1.xpose.msra.mxu0 0.0
        %1494 = vmatprep.subr.mxu0 0.0
        %1495 = vmatpush1.xpose.msra.mxu0 0.0
        %1496 = vmatprep.subr.mxu0 0.0
        %1497 = vmatpush1.xpose.msra.mxu0 0.0
        %1498 = vmatprep.subr.mxu0 0.0
        %1499 = vmatpush1.xpose.msra.mxu0 0.0
        %1500 = vmatprep.subr.mxu0 0.0
        %1501 = vmatpush1.xpose.msra.mxu0 0.0
        %1502 = vmatprep.subr.mxu0 0.0
        %1503 = vmatpush1.xpose.msra.mxu0 0.0
        %1504 = vmatprep.subr.mxu0 0.0
        %1505 = vmatpush1.xpose.msra.mxu0 0.0
        %1506 = vmatprep.subr.mxu0 0.0
        %1507 = vmatpush1.xpose.msra.mxu0 0.0
        %1508 = vmatprep.mubr.f32.mxu0 %v1418
        %1509 = vmatmul.mubr.f32.gmra.mrb[0].mxu0 %v445
        %v1510 = vpop.f32.mrb[0].mxu0
        %v1511 = vadd.f32 0.0, %v1510
        %v1512 = vpop.f32.mrb[0].mxu0
        %1513 = vmatprep.mubr.f32.mxu0 %v1421
        %1514 = vmatmul.mubr.f32.gmra.mrb[0].mxu0 %v447
        %v1515 = vpop.f32.mrb[0].mxu0
        %v1516 = vadd.f32 0.0, %v1515
        %v1517 = vpop.f32.mrb[0].mxu0
        %1518 = vmatprep.mubr.f32.mxu0 %v1424
        %1519 = vmatmul.mubr.f32.gmra.mrb[0].mxu0 %v449
        %v1520 = vpop.f32.mrb[0].mxu0
        %v1521 = vadd.f32 0.0, %v1520
        %v1522 = vpop.f32.mrb[0].mxu0
        %1523 = vmatprep.mubr.f32.mxu0 %v1427
        %1524 = vmatmul.mubr.f32.gmra.mrb[0].mxu0 %v451
        %v1525 = vpop.f32.mrb[0].mxu0
        %v1526 = vadd.f32 0.0, %v1525
        %v1527 = vpop.f32.mrb[0].mxu0
        %1528 = vmatprep.mubr.f32.mxu0 %v1430
        %1529 = vmatmul.mubr.f32.gmra.mrb[0].mxu0 %v453
        %v1530 = vpop.f32.mrb[0].mxu0
        %v1531 = vadd.f32 0.0, %v1530
        %v1532 = vpop.f32.mrb[0].mxu0
        %1533 = vmatprep.mubr.f32.mxu0 %v1433
        %1534 = vmatmul.mubr.f32.gmra.mrb[0].mxu0 %v455
        %v1535 = vpop.f32.mrb[0].mxu0
        %v1536 = vadd.f32 0.0, %v1535
        %v1537 = vpop.f32.mrb[0].mxu0
        %1538 = vmatprep.mubr.f32.mxu0 %v1436
        %1539 = vmatmul.mubr.f32.gmra.mrb[0].mxu0 %v457
        %v1540 = vpop.f32.mrb[0].mxu0
        %v1541 = vadd.f32 0.0, %v1540
        %v1542 = vpop.f32.mrb[0].mxu0
        %1543 = vdwg.mxu0
        %v1545 = vsel %vm654, %v460, 0
        %v1548 = vsel %vm654, %v462, 0
        %v1551 = vsel %vm654, %v464, 0
        %v1554 = vsel %vm654, %v466, 0
        %v1557 = vsel %vm654, %v468, 0
        %v1560 = vsel %vm654, %v470, 0
        %v1563 = vsel %vm654, %v472, 0
        %v1566 = vsel %vm654, %v530, 0
        %v1569 = vsel %vm654, %v532, 0
        %1571 = vmatprep.subr.mxu0 %v1566
        %1572 = vmatpush1.xpose.msra.mxu0 %v529
        %1573 = vmatprep.subr.mxu0 %v1569
        %1574 = vmatpush1.xpose.msra.mxu0 %v531
        %1575 = vmatprep.subr.mxu0 0.0
        %1576 = vmatpush1.xpose.msra.mxu0 0.0
        %1577 = vmatprep.subr.mxu0 0.0
        %1578 = vmatpush1.xpose.msra.mxu0 0.0
        %1579 = vmatprep.subr.mxu0 0.0
        %1580 = vmatpush1.xpose.msra.mxu0 0.0
        %1581 = vmatprep.subr.mxu0 0.0
        %1582 = vmatpush1.xpose.msra.mxu0 0.0
        %1583 = vmatprep.subr.mxu0 0.0
        %1584 = vmatpush1.xpose.msra.mxu0 0.0
        %1585 = vmatprep.subr.mxu0 0.0
        %1586 = vmatpush1.xpose.msra.mxu0 0.0
        %1587 = vmatprep.subr.mxu0 0.0
        %1588 = vmatpush1.xpose.msra.mxu0 0.0
        %1589 = vmatprep.subr.mxu0 0.0
        %1590 = vmatpush1.xpose.msra.mxu0 0.0
        %1591 = vmatprep.subr.mxu0 0.0
        %1592 = vmatpush1.xpose.msra.mxu0 0.0
        %1593 = vmatprep.subr.mxu0 0.0
        %1594 = vmatpush1.xpose.msra.mxu0 0.0
        %1595 = vmatprep.subr.mxu0 0.0
        %1596 = vmatpush1.xpose.msra.mxu0 0.0
        %1597 = vmatprep.subr.mxu0 0.0
        %1598 = vmatpush1.xpose.msra.mxu0 0.0
        %1599 = vmatprep.subr.mxu0 0.0
        %1600 = vmatpush1.xpose.msra.mxu0 0.0
        %1601 = vmatprep.subr.mxu0 0.0
        %1602 = vmatpush1.xpose.msra.mxu0 0.0
        %1603 = vmatprep.subr.mxu0 0.0
        %1604 = vmatpush1.xpose.msra.mxu0 0.0
        %1605 = vmatprep.subr.mxu0 0.0
        %1606 = vmatpush1.xpose.msra.mxu0 0.0
        %1607 = vmatprep.subr.mxu0 0.0
        %1608 = vmatpush1.xpose.msra.mxu0 0.0
        %1609 = vmatprep.subr.mxu0 0.0
        %1610 = vmatpush1.xpose.msra.mxu0 0.0
        %1611 = vmatprep.subr.mxu0 0.0
        %1612 = vmatpush1.xpose.msra.mxu0 0.0
        %1613 = vmatprep.subr.mxu0 0.0
        %1614 = vmatpush1.xpose.msra.mxu0 0.0
        %1615 = vmatprep.subr.mxu0 0.0
        %1616 = vmatpush1.xpose.msra.mxu0 0.0
        %1617 = vmatprep.subr.mxu0 0.0
        %1618 = vmatpush1.xpose.msra.mxu0 0.0
        %1619 = vmatprep.subr.mxu0 0.0
        %1620 = vmatpush1.xpose.msra.mxu0 0.0
        %1621 = vmatprep.subr.mxu0 0.0
        %1622 = vmatpush1.xpose.msra.mxu0 0.0
        %1623 = vmatprep.subr.mxu0 0.0
        %1624 = vmatpush1.xpose.msra.mxu0 0.0
        %1625 = vmatprep.subr.mxu0 0.0
        %1626 = vmatpush1.xpose.msra.mxu0 0.0
        %1627 = vmatprep.subr.mxu0 0.0
        %1628 = vmatpush1.xpose.msra.mxu0 0.0
        %1629 = vmatprep.subr.mxu0 0.0
        %1630 = vmatpush1.xpose.msra.mxu0 0.0
        %1631 = vmatprep.subr.mxu0 0.0
        %1632 = vmatpush1.xpose.msra.mxu0 0.0
        %1633 = vmatprep.subr.mxu0 0.0
        %1634 = vmatpush1.xpose.msra.mxu0 0.0
        %1635 = vmatprep.mubr.f32.mxu0 %v1545
        %1636 = vmatmul.mubr.f32.gmra.mrb[0].mxu0 %v459
        %v1637 = vpop.f32.mrb[0].mxu0
        %v1638 = vadd.f32 0.0, %v1637
        %v1639 = vpop.f32.mrb[0].mxu0
        %1640 = vmatprep.mubr.f32.mxu0 %v1548
        %1641 = vmatmul.mubr.f32.gmra.mrb[0].mxu0 %v461
        %v1642 = vpop.f32.mrb[0].mxu0
        %v1643 = vadd.f32 0.0, %v1642
        %v1644 = vpop.f32.mrb[0].mxu0
        %1645 = vmatprep.mubr.f32.mxu0 %v1551
        %1646 = vmatmul.mubr.f32.gmra.mrb[0].mxu0 %v463
        %v1647 = vpop.f32.mrb[0].mxu0
        %v1648 = vadd.f32 0.0, %v1647
        %v1649 = vpop.f32.mrb[0].mxu0
        %1650 = vmatprep.mubr.f32.mxu0 %v1554
        %1651 = vmatmul.mubr.f32.gmra.mrb[0].mxu0 %v465
        %v1652 = vpop.f32.mrb[0].mxu0
        %v1653 = vadd.f32 0.0, %v1652
        %v1654 = vpop.f32.mrb[0].mxu0
        %1655 = vmatprep.mubr.f32.mxu0 %v1557
        %1656 = vmatmul.mubr.f32.gmra.mrb[0].mxu0 %v467
        %v1657 = vpop.f32.mrb[0].mxu0
        %v1658 = vadd.f32 0.0, %v1657
        %v1659 = vpop.f32.mrb[0].mxu0
        %1660 = vmatprep.mubr.f32.mxu0 %v1560
        %1661 = vmatmul.mubr.f32.gmra.mrb[0].mxu0 %v469
        %v1662 = vpop.f32.mrb[0].mxu0
        %v1663 = vadd.f32 0.0, %v1662
        %v1664 = vpop.f32.mrb[0].mxu0
        %1665 = vmatprep.mubr.f32.mxu0 %v1563
        %1666 = vmatmul.mubr.f32.gmra.mrb[0].mxu0 %v471
        %v1667 = vpop.f32.mrb[0].mxu0
        %v1668 = vadd.f32 0.0, %v1667
        %v1669 = vpop.f32.mrb[0].mxu0
        %1670 = vdwg.mxu0
        %v1672 = vsel %vm654, %v474, 0
        %v1675 = vsel %vm654, %v476, 0
        %v1678 = vsel %vm654, %v478, 0
        %v1681 = vsel %vm654, %v480, 0
        %v1684 = vsel %vm654, %v482, 0
        %v1687 = vsel %vm654, %v484, 0
        %v1690 = vsel %vm654, %v486, 0
        %v1693 = vsel %vm654, %v534, 0
        %v1696 = vsel %vm654, %v536, 0
        %1698 = vmatprep.subr.mxu0 %v1693
        %1699 = vmatpush1.xpose.msra.mxu0 %v533
        %1700 = vmatprep.subr.mxu0 %v1696
        %1701 = vmatpush1.xpose.msra.mxu0 %v535
        %1702 = vmatprep.subr.mxu0 0.0
        %1703 = vmatpush1.xpose.msra.mxu0 0.0
        %1704 = vmatprep.subr.mxu0 0.0
        %1705 = vmatpush1.xpose.msra.mxu0 0.0
        %1706 = vmatprep.subr.mxu0 0.0
        %1707 = vmatpush1.xpose.msra.mxu0 0.0
        %1708 = vmatprep.subr.mxu0 0.0
        %1709 = vmatpush1.xpose.msra.mxu0 0.0
        %1710 = vmatprep.subr.mxu0 0.0
        %1711 = vmatpush1.xpose.msra.mxu0 0.0
        %1712 = vmatprep.subr.mxu0 0.0
        %1713 = vmatpush1.xpose.msra.mxu0 0.0
        %1714 = vmatprep.subr.mxu0 0.0
        %1715 = vmatpush1.xpose.msra.mxu0 0.0
        %1716 = vmatprep.subr.mxu0 0.0
        %1717 = vmatpush1.xpose.msra.mxu0 0.0
        %1718 = vmatprep.subr.mxu0 0.0
        %1719 = vmatpush1.xpose.msra.mxu0 0.0
        %1720 = vmatprep.subr.mxu0 0.0
        %1721 = vmatpush1.xpose.msra.mxu0 0.0
        %1722 = vmatprep.subr.mxu0 0.0
        %1723 = vmatpush1.xpose.msra.mxu0 0.0
        %1724 = vmatprep.subr.mxu0 0.0
        %1725 = vmatpush1.xpose.msra.mxu0 0.0
        %1726 = vmatprep.subr.mxu0 0.0
        %1727 = vmatpush1.xpose.msra.mxu0 0.0
        %1728 = vmatprep.subr.mxu0 0.0
        %1729 = vmatpush1.xpose.msra.mxu0 0.0
        %1730 = vmatprep.subr.mxu0 0.0
        %1731 = vmatpush1.xpose.msra.mxu0 0.0
        %1732 = vmatprep.subr.mxu0 0.0
        %1733 = vmatpush1.xpose.msra.mxu0 0.0
        %1734 = vmatprep.subr.mxu0 0.0
        %1735 = vmatpush1.xpose.msra.mxu0 0.0
        %1736 = vmatprep.subr.mxu0 0.0
        %1737 = vmatpush1.xpose.msra.mxu0 0.0
        %1738 = vmatprep.subr.mxu0 0.0
        %1739 = vmatpush1.xpose.msra.mxu0 0.0
        %1740 = vmatprep.subr.mxu0 0.0
        %1741 = vmatpush1.xpose.msra.mxu0 0.0
        %1742 = vmatprep.subr.mxu0 0.0
        %1743 = vmatpush1.xpose.msra.mxu0 0.0
        %1744 = vmatprep.subr.mxu0 0.0
        %1745 = vmatpush1.xpose.msra.mxu0 0.0
        %1746 = vmatprep.subr.mxu0 0.0
        %1747 = vmatpush1.xpose.msra.mxu0 0.0
        %1748 = vmatprep.subr.mxu0 0.0
        %1749 = vmatpush1.xpose.msra.mxu0 0.0
        %1750 = vmatprep.subr.mxu0 0.0
        %1751 = vmatpush1.xpose.msra.mxu0 0.0
        %1752 = vmatprep.subr.mxu0 0.0
        %1753 = vmatpush1.xpose.msra.mxu0 0.0
        %1754 = vmatprep.subr.mxu0 0.0
        %1755 = vmatpush1.xpose.msra.mxu0 0.0
        %1756 = vmatprep.subr.mxu0 0.0
        %1757 = vmatpush1.xpose.msra.mxu0 0.0
        %1758 = vmatprep.subr.mxu0 0.0
        %1759 = vmatpush1.xpose.msra.mxu0 0.0
        %1760 = vmatprep.subr.mxu0 0.0
        %1761 = vmatpush1.xpose.msra.mxu0 0.0
        %1762 = vmatprep.mubr.f32.mxu0 %v1672
        %1763 = vmatmul.mubr.f32.gmra.mrb[0].mxu0 %v473
        %v1764 = vpop.f32.mrb[0].mxu0
        %v1765 = vadd.f32 0.0, %v1764
        %v1766 = vpop.f32.mrb[0].mxu0
        %1767 = vmatprep.mubr.f32.mxu0 %v1675
        %1768 = vmatmul.mubr.f32.gmra.mrb[0].mxu0 %v475
        %v1769 = vpop.f32.mrb[0].mxu0
        %v1770 = vadd.f32 0.0, %v1769
        %v1771 = vpop.f32.mrb[0].mxu0
        %1772 = vmatprep.mubr.f32.mxu0 %v1678
        %1773 = vmatmul.mubr.f32.gmra.mrb[0].mxu0 %v477
        %v1774 = vpop.f32.mrb[0].mxu0
        %v1775 = vadd.f32 0.0, %v1774
        %v1776 = vpop.f32.mrb[0].mxu0
        %1777 = vmatprep.mubr.f32.mxu0 %v1681
        %1778 = vmatmul.mubr.f32.gmra.mrb[0].mxu0 %v479
        %v1779 = vpop.f32.mrb[0].mxu0
        %v1780 = vadd.f32 0.0, %v1779
        %v1781 = vpop.f32.mrb[0].mxu0
        %1782 = vmatprep.mubr.f32.mxu0 %v1684
        %1783 = vmatmul.mubr.f32.gmra.mrb[0].mxu0 %v481
        %v1784 = vpop.f32.mrb[0].mxu0
        %v1785 = vadd.f32 0.0, %v1784
        %v1786 = vpop.f32.mrb[0].mxu0
        %1787 = vmatprep.mubr.f32.mxu0 %v1687
        %1788 = vmatmul.mubr.f32.gmra.mrb[0].mxu0 %v483
        %v1789 = vpop.f32.mrb[0].mxu0
        %v1790 = vadd.f32 0.0, %v1789
        %v1791 = vpop.f32.mrb[0].mxu0
        %1792 = vmatprep.mubr.f32.mxu0 %v1690
        %1793 = vmatmul.mubr.f32.gmra.mrb[0].mxu0 %v485
        %v1794 = vpop.f32.mrb[0].mxu0
        %v1795 = vadd.f32 0.0, %v1794
        %v1796 = vpop.f32.mrb[0].mxu0
        %1797 = vdwg.mxu0
        %v1799 = vsel %vm654, %v488, 0
        %v1802 = vsel %vm654, %v490, 0
        %v1805 = vsel %vm654, %v492, 0
        %v1808 = vsel %vm654, %v494, 0
        %v1811 = vsel %vm654, %v496, 0
        %v1814 = vsel %vm654, %v498, 0
        %v1817 = vsel %vm654, %v500, 0
        %v1820 = vsel %vm654, %v538, 0
        %v1823 = vsel %vm654, %v540, 0
        %1825 = vmatprep.subr.mxu0 %v1820
        %1826 = vmatpush1.xpose.msra.mxu0 %v537
        %1827 = vmatprep.subr.mxu0 %v1823
        %1828 = vmatpush1.xpose.msra.mxu0 %v539
        %1829 = vmatprep.subr.mxu0 0.0
        %1830 = vmatpush1.xpose.msra.mxu0 0.0
        %1831 = vmatprep.subr.mxu0 0.0
        %1832 = vmatpush1.xpose.msra.mxu0 0.0
        %1833 = vmatprep.subr.mxu0 0.0
        %1834 = vmatpush1.xpose.msra.mxu0 0.0
        %1835 = vmatprep.subr.mxu0 0.0
        %1836 = vmatpush1.xpose.msra.mxu0 0.0
        %1837 = vmatprep.subr.mxu0 0.0
        %1838 = vmatpush1.xpose.msra.mxu0 0.0
        %1839 = vmatprep.subr.mxu0 0.0
        %1840 = vmatpush1.xpose.msra.mxu0 0.0
        %1841 = vmatprep.subr.mxu0 0.0
        %1842 = vmatpush1.xpose.msra.mxu0 0.0
        %1843 = vmatprep.subr.mxu0 0.0
        %1844 = vmatpush1.xpose.msra.mxu0 0.0
        %1845 = vmatprep.subr.mxu0 0.0
        %1846 = vmatpush1.xpose.msra.mxu0 0.0
        %1847 = vmatprep.subr.mxu0 0.0
        %1848 = vmatpush1.xpose.msra.mxu0 0.0
        %1849 = vmatprep.subr.mxu0 0.0
        %1850 = vmatpush1.xpose.msra.mxu0 0.0
        %1851 = vmatprep.subr.mxu0 0.0
        %1852 = vmatpush1.xpose.msra.mxu0 0.0
        %1853 = vmatprep.subr.mxu0 0.0
        %1854 = vmatpush1.xpose.msra.mxu0 0.0
        %1855 = vmatprep.subr.mxu0 0.0
        %1856 = vmatpush1.xpose.msra.mxu0 0.0
        %1857 = vmatprep.subr.mxu0 0.0
        %1858 = vmatpush1.xpose.msra.mxu0 0.0
        %1859 = vmatprep.subr.mxu0 0.0
        %1860 = vmatpush1.xpose.msra.mxu0 0.0
        %1861 = vmatprep.subr.mxu0 0.0
        %1862 = vmatpush1.xpose.msra.mxu0 0.0
        %1863 = vmatprep.subr.mxu0 0.0
        %1864 = vmatpush1.xpose.msra.mxu0 0.0
        %1865 = vmatprep.subr.mxu0 0.0
        %1866 = vmatpush1.xpose.msra.mxu0 0.0
        %1867 = vmatprep.subr.mxu0 0.0
        %1868 = vmatpush1.xpose.msra.mxu0 0.0
        %1869 = vmatprep.subr.mxu0 0.0
        %1870 = vmatpush1.xpose.msra.mxu0 0.0
        %1871 = vmatprep.subr.mxu0 0.0
        %1872 = vmatpush1.xpose.msra.mxu0 0.0
        %1873 = vmatprep.subr.mxu0 0.0
        %1874 = vmatpush1.xpose.msra.mxu0 0.0
        %1875 = vmatprep.subr.mxu0 0.0
        %1876 = vmatpush1.xpose.msra.mxu0 0.0
        %1877 = vmatprep.subr.mxu0 0.0
        %1878 = vmatpush1.xpose.msra.mxu0 0.0
        %1879 = vmatprep.subr.mxu0 0.0
        %1880 = vmatpush1.xpose.msra.mxu0 0.0
        %1881 = vmatprep.subr.mxu0 0.0
        %1882 = vmatpush1.xpose.msra.mxu0 0.0
        %1883 = vmatprep.subr.mxu0 0.0
        %1884 = vmatpush1.xpose.msra.mxu0 0.0
        %1885 = vmatprep.subr.mxu0 0.0
        %1886 = vmatpush1.xpose.msra.mxu0 0.0
        %1887 = vmatprep.subr.mxu0 0.0
        %1888 = vmatpush1.xpose.msra.mxu0 0.0
        %1889 = vmatprep.mubr.f32.mxu0 %v1799
        %1890 = vmatmul.mubr.f32.gmra.mrb[0].mxu0 %v487
        %v1891 = vpop.f32.mrb[0].mxu0
        %v1892 = vadd.f32 0.0, %v1891
        %v1893 = vpop.f32.mrb[0].mxu0
        %1894 = vmatprep.mubr.f32.mxu0 %v1802
        %1895 = vmatmul.mubr.f32.gmra.mrb[0].mxu0 %v489
        %v1896 = vpop.f32.mrb[0].mxu0
        %v1897 = vadd.f32 0.0, %v1896
        %v1898 = vpop.f32.mrb[0].mxu0
        %1899 = vmatprep.mubr.f32.mxu0 %v1805
        %1900 = vmatmul.mubr.f32.gmra.mrb[0].mxu0 %v491
        %v1901 = vpop.f32.mrb[0].mxu0
        %v1902 = vadd.f32 0.0, %v1901
        %v1903 = vpop.f32.mrb[0].mxu0
        %1904 = vmatprep.mubr.f32.mxu0 %v1808
        %1905 = vmatmul.mubr.f32.gmra.mrb[0].mxu0 %v493
        %v1906 = vpop.f32.mrb[0].mxu0
        %v1907 = vadd.f32 0.0, %v1906
        %v1908 = vpop.f32.mrb[0].mxu0
        %1909 = vmatprep.mubr.f32.mxu0 %v1811
        %1910 = vmatmul.mubr.f32.gmra.mrb[0].mxu0 %v495
        %v1911 = vpop.f32.mrb[0].mxu0
        %v1912 = vadd.f32 0.0, %v1911
        %v1913 = vpop.f32.mrb[0].mxu0
        %1914 = vmatprep.mubr.f32.mxu0 %v1814
        %1915 = vmatmul.mubr.f32.gmra.mrb[0].mxu0 %v497
        %v1916 = vpop.f32.mrb[0].mxu0
        %v1917 = vadd.f32 0.0, %v1916
        %v1918 = vpop.f32.mrb[0].mxu0
        %1919 = vmatprep.mubr.f32.mxu0 %v1817
        %1920 = vmatmul.mubr.f32.gmra.mrb[0].mxu0 %v499
        %v1921 = vpop.f32.mrb[0].mxu0
        %v1922 = vadd.f32 0.0, %v1921
        %v1923 = vpop.f32.mrb[0].mxu0
        %1924 = vdwg.mxu0
        %v1925 = vstv %s651
        %v1926 = vmul.f32 %v749, %v1925
        %v1927 = vmul.f32 %v754, %v1925
        %v1928 = vmul.f32 %v759, %v1925
        %v1929 = vmul.f32 %v764, %v1925
        %v1930 = vmul.f32 %v769, %v1925
        %v1931 = vmul.f32 %v774, %v1925
        %v1932 = vmul.f32 %v779, %v1925
        %v1933 = vmul.f32 %v876, %v1925
        %v1934 = vmul.f32 %v881, %v1925
        %v1935 = vmul.f32 %v886, %v1925
        %v1936 = vmul.f32 %v891, %v1925
        %v1937 = vmul.f32 %v896, %v1925
        %v1938 = vmul.f32 %v901, %v1925
        %v1939 = vmul.f32 %v906, %v1925
        %v1940 = vmul.f32 %v1003, %v1925
        %v1941 = vmul.f32 %v1008, %v1925
        %v1942 = vmul.f32 %v1013, %v1925
        %v1943 = vmul.f32 %v1018, %v1925
        %v1944 = vmul.f32 %v1023, %v1925
        %v1945 = vmul.f32 %v1028, %v1925
        %v1946 = vmul.f32 %v1033, %v1925
        %v1947 = vmul.f32 %v1130, %v1925
        %v1948 = vmul.f32 %v1135, %v1925
        %v1949 = vmul.f32 %v1140, %v1925
        %v1950 = vmul.f32 %v1145, %v1925
        %v1951 = vmul.f32 %v1150, %v1925
        %v1952 = vmul.f32 %v1155, %v1925
        %v1953 = vmul.f32 %v1160, %v1925
        %v1954 = vmul.f32 %v1257, %v1925
        %v1955 = vmul.f32 %v1262, %v1925
        %v1956 = vmul.f32 %v1267, %v1925
        %v1957 = vmul.f32 %v1272, %v1925
        %v1958 = vmul.f32 %v1277, %v1925
        %v1959 = vmul.f32 %v1282, %v1925
        %v1960 = vmul.f32 %v1287, %v1925
        %v1961 = vmul.f32 %v1384, %v1925
        %v1962 = vmul.f32 %v1389, %v1925
        %v1963 = vmul.f32 %v1394, %v1925
        %v1964 = vmul.f32 %v1399, %v1925
        %v1965 = vmul.f32 %v1404, %v1925
        %v1966 = vmul.f32 %v1409, %v1925
        %v1967 = vmul.f32 %v1414, %v1925
        %v1968 = vmul.f32 %v1511, %v1925
        %v1969 = vmul.f32 %v1516, %v1925
        %v1970 = vmul.f32 %v1521, %v1925
        %v1971 = vmul.f32 %v1526, %v1925
        %v1972 = vmul.f32 %v1531, %v1925
        %v1973 = vmul.f32 %v1536, %v1925
        %v1974 = vmul.f32 %v1541, %v1925
        %v1975 = vmul.f32 %v1638, %v1925
        %v1976 = vmul.f32 %v1643, %v1925
        %v1977 = vmul.f32 %v1648, %v1925
        %v1978 = vmul.f32 %v1653, %v1925
        %v1979 = vmul.f32 %v1658, %v1925
        %v1980 = vmul.f32 %v1663, %v1925
        %v1981 = vmul.f32 %v1668, %v1925
        %v1982 = vmul.f32 %v1765, %v1925
        %v1983 = vmul.f32 %v1770, %v1925
        %v1984 = vmul.f32 %v1775, %v1925
        %v1985 = vmul.f32 %v1780, %v1925
        %v1986 = vmul.f32 %v1785, %v1925
        %v1987 = vmul.f32 %v1790, %v1925
        %v1988 = vmul.f32 %v1795, %v1925
        %v1989 = vmul.f32 %v1892, %v1925
        %v1990 = vmul.f32 %v1897, %v1925
        %v1991 = vmul.f32 %v1902, %v1925
        %v1992 = vmul.f32 %v1907, %v1925
        %v1993 = vmul.f32 %v1912, %v1925
        %v1994 = vmul.f32 %v1917, %v1925
        %v1995 = vmul.f32 %v1922, %v1925
        %vm1996 = vcmask 105472
        %v1997 = vsel %vm1996, %v1926, -inf
        %1998 = vmax.xlane.f32.xlu0 %v1997
        %v1999 = vpop.xlane.xlu0 %1998
        %v2000 = vsel %vm1996, %v1927, -inf
        %2001 = vmax.xlane.f32.xlu0 %v2000
        %v2002 = vpop.xlane.xlu0 %2001
        %v2003 = vsel %vm1996, %v1928, -inf
        %2004 = vmax.xlane.f32.xlu0 %v2003
        %v2005 = vpop.xlane.xlu0 %2004
        %v2006 = vsel %vm1996, %v1929, -inf
        %2007 = vmax.xlane.f32.xlu0 %v2006
        %v2008 = vpop.xlane.xlu0 %2007
        %v2009 = vsel %vm1996, %v1930, -inf
        %2010 = vmax.xlane.f32.xlu0 %v2009
        %v2011 = vpop.xlane.xlu0 %2010
        %v2012 = vsel %vm1996, %v1931, -inf
        %2013 = vmax.xlane.f32.xlu0 %v2012
        %v2014 = vpop.xlane.xlu0 %2013
        %vm2015 = vcmask 99328
        %v2016 = vsel %vm2015, %v1932, -inf
        %2017 = vmax.xlane.f32.xlu0 %v2016
        %v2018 = vpop.xlane.xlu0 %2017
        %v2019 = vsel %vm1996, %v1933, -inf
        %2020 = vmax.xlane.f32.xlu0 %v2019
        %v2021 = vpop.xlane.xlu0 %2020
        %v2022 = vsel %vm1996, %v1934, -inf
        %2023 = vmax.xlane.f32.xlu0 %v2022
        %v2024 = vpop.xlane.xlu0 %2023
        %v2025 = vsel %vm1996, %v1935, -inf
        %2026 = vmax.xlane.f32.xlu0 %v2025
        %v2027 = vpop.xlane.xlu0 %2026
        %v2028 = vsel %vm1996, %v1936, -inf
        %2029 = vmax.xlane.f32.xlu0 %v2028
        %v2030 = vpop.xlane.xlu0 %2029
        %v2031 = vsel %vm1996, %v1937, -inf
        %2032 = vmax.xlane.f32.xlu0 %v2031
        %v2033 = vpop.xlane.xlu0 %2032
        %v2034 = vsel %vm1996, %v1938, -inf
        %2035 = vmax.xlane.f32.xlu0 %v2034
        %v2036 = vpop.xlane.xlu0 %2035
        %v2037 = vsel %vm2015, %v1939, -inf
        %2038 = vmax.xlane.f32.xlu0 %v2037
        %v2039 = vpop.xlane.xlu0 %2038
        %v2040 = vsel %vm1996, %v1940, -inf
        %2041 = vmax.xlane.f32.xlu0 %v2040
        %v2042 = vpop.xlane.xlu0 %2041
        %v2043 = vsel %vm1996, %v1941, -inf
        %2044 = vmax.xlane.f32.xlu0 %v2043
        %v2045 = vpop.xlane.xlu0 %2044
        %v2046 = vsel %vm1996, %v1942, -inf
        %2047 = vmax.xlane.f32.xlu0 %v2046
        %v2048 = vpop.xlane.xlu0 %2047
        %v2049 = vsel %vm1996, %v1943, -inf
        %2050 = vmax.xlane.f32.xlu0 %v2049
        %v2051 = vpop.xlane.xlu0 %2050
        %v2052 = vsel %vm1996, %v1944, -inf
        %2053 = vmax.xlane.f32.xlu0 %v2052
        %v2054 = vpop.xlane.xlu0 %2053
        %v2055 = vsel %vm1996, %v1945, -inf
        %2056 = vmax.xlane.f32.xlu0 %v2055
        %v2057 = vpop.xlane.xlu0 %2056
        %v2058 = vsel %vm2015, %v1946, -inf
        %2059 = vmax.xlane.f32.xlu0 %v2058
        %v2060 = vpop.xlane.xlu0 %2059
        %v2061 = vsel %vm1996, %v1947, -inf
        %2062 = vmax.xlane.f32.xlu0 %v2061
        %v2063 = vpop.xlane.xlu0 %2062
        %v2064 = vsel %vm1996, %v1948, -inf
        %2065 = vmax.xlane.f32.xlu0 %v2064
        %v2066 = vpop.xlane.xlu0 %2065
        %v2067 = vsel %vm1996, %v1949, -inf
        %2068 = vmax.xlane.f32.xlu0 %v2067
        %v2069 = vpop.xlane.xlu0 %2068
        %v2070 = vsel %vm1996, %v1950, -inf
        %2071 = vmax.xlane.f32.xlu0 %v2070
        %v2072 = vpop.xlane.xlu0 %2071
        %v2073 = vsel %vm1996, %v1951, -inf
        %2074 = vmax.xlane.f32.xlu0 %v2073
        %v2075 = vpop.xlane.xlu0 %2074
        %v2076 = vsel %vm1996, %v1952, -inf
        %2077 = vmax.xlane.f32.xlu0 %v2076
        %v2078 = vpop.xlane.xlu0 %2077
        %v2079 = vsel %vm2015, %v1953, -inf
        %2080 = vmax.xlane.f32.xlu0 %v2079
        %v2081 = vpop.xlane.xlu0 %2080
        %v2082 = vsel %vm1996, %v1954, -inf
        %2083 = vmax.xlane.f32.xlu0 %v2082
        %v2084 = vpop.xlane.xlu0 %2083
        %v2085 = vsel %vm1996, %v1955, -inf
        %2086 = vmax.xlane.f32.xlu0 %v2085
        %v2087 = vpop.xlane.xlu0 %2086
        %v2088 = vsel %vm1996, %v1956, -inf
        %2089 = vmax.xlane.f32.xlu0 %v2088
        %v2090 = vpop.xlane.xlu0 %2089
        %v2091 = vsel %vm1996, %v1957, -inf
        %2092 = vmax.xlane.f32.xlu0 %v2091
        %v2093 = vpop.xlane.xlu0 %2092
        %v2094 = vsel %vm1996, %v1958, -inf
        %2095 = vmax.xlane.f32.xlu0 %v2094
        %v2096 = vpop.xlane.xlu0 %2095
        %v2097 = vsel %vm1996, %v1959, -inf
        %2098 = vmax.xlane.f32.xlu0 %v2097
        %v2099 = vpop.xlane.xlu0 %2098
        %v2100 = vsel %vm2015, %v1960, -inf
        %2101 = vmax.xlane.f32.xlu0 %v2100
        %v2102 = vpop.xlane.xlu0 %2101
        %v2103 = vsel %vm1996, %v1961, -inf
        %2104 = vmax.xlane.f32.xlu0 %v2103
        %v2105 = vpop.xlane.xlu0 %2104
        %v2106 = vsel %vm1996, %v1962, -inf
        %2107 = vmax.xlane.f32.xlu0 %v2106
        %v2108 = vpop.xlane.xlu0 %2107
        %v2109 = vsel %vm1996, %v1963, -inf
        %2110 = vmax.xlane.f32.xlu0 %v2109
        %v2111 = vpop.xlane.xlu0 %2110
        %v2112 = vsel %vm1996, %v1964, -inf
        %2113 = vmax.xlane.f32.xlu0 %v2112
        %v2114 = vpop.xlane.xlu0 %2113
        %v2115 = vsel %vm1996, %v1965, -inf
        %2116 = vmax.xlane.f32.xlu0 %v2115
        %v2117 = vpop.xlane.xlu0 %2116
        %v2118 = vsel %vm1996, %v1966, -inf
        %2119 = vmax.xlane.f32.xlu0 %v2118
        %v2120 = vpop.xlane.xlu0 %2119
        %v2121 = vsel %vm2015, %v1967, -inf
        %2122 = vmax.xlane.f32.xlu0 %v2121
        %v2123 = vpop.xlane.xlu0 %2122
        %v2124 = vsel %vm1996, %v1968, -inf
        %2125 = vmax.xlane.f32.xlu0 %v2124
        %v2126 = vpop.xlane.xlu0 %2125
        %v2127 = vsel %vm1996, %v1969, -inf
        %2128 = vmax.xlane.f32.xlu0 %v2127
        %v2129 = vpop.xlane.xlu0 %2128
        %v2130 = vsel %vm1996, %v1970, -inf
        %2131 = vmax.xlane.f32.xlu0 %v2130
        %v2132 = vpop.xlane.xlu0 %2131
        %v2133 = vsel %vm1996, %v1971, -inf
        %2134 = vmax.xlane.f32.xlu0 %v2133
        %v2135 = vpop.xlane.xlu0 %2134
        %v2136 = vsel %vm1996, %v1972, -inf
        %2137 = vmax.xlane.f32.xlu0 %v2136
        %v2138 = vpop.xlane.xlu0 %2137
        %v2139 = vsel %vm1996, %v1973, -inf
        %2140 = vmax.xlane.f32.xlu0 %v2139
        %v2141 = vpop.xlane.xlu0 %2140
        %v2142 = vsel %vm2015, %v1974, -inf
        %2143 = vmax.xlane.f32.xlu0 %v2142
        %v2144 = vpop.xlane.xlu0 %2143
        %v2145 = vsel %vm1996, %v1975, -inf
        %2146 = vmax.xlane.f32.xlu0 %v2145
        %v2147 = vpop.xlane.xlu0 %2146
        %v2148 = vsel %vm1996, %v1976, -inf
        %2149 = vmax.xlane.f32.xlu0 %v2148
        %v2150 = vpop.xlane.xlu0 %2149
        %v2151 = vsel %vm1996, %v1977, -inf
        %2152 = vmax.xlane.f32.xlu0 %v2151
        %v2153 = vpop.xlane.xlu0 %2152
        %v2154 = vsel %vm1996, %v1978, -inf
        %2155 = vmax.xlane.f32.xlu0 %v2154
        %v2156 = vpop.xlane.xlu0 %2155
        %v2157 = vsel %vm1996, %v1979, -inf
        %2158 = vmax.xlane.f32.xlu0 %v2157
        %v2159 = vpop.xlane.xlu0 %2158
        %v2160 = vsel %vm1996, %v1980, -inf
        %2161 = vmax.xlane.f32.xlu0 %v2160
        %v2162 = vpop.xlane.xlu0 %2161
        %v2163 = vsel %vm2015, %v1981, -inf
        %2164 = vmax.xlane.f32.xlu0 %v2163
        %v2165 = vpop.xlane.xlu0 %2164
        %v2166 = vsel %vm1996, %v1982, -inf
        %2167 = vmax.xlane.f32.xlu0 %v2166
        %v2168 = vpop.xlane.xlu0 %2167
        %v2169 = vsel %vm1996, %v1983, -inf
        %2170 = vmax.xlane.f32.xlu0 %v2169
        %v2171 = vpop.xlane.xlu0 %2170
        %v2172 = vsel %vm1996, %v1984, -inf
        %2173 = vmax.xlane.f32.xlu0 %v2172
        %v2174 = vpop.xlane.xlu0 %2173
        %v2175 = vsel %vm1996, %v1985, -inf
        %2176 = vmax.xlane.f32.xlu0 %v2175
        %v2177 = vpop.xlane.xlu0 %2176
        %v2178 = vsel %vm1996, %v1986, -inf
        %2179 = vmax.xlane.f32.xlu0 %v2178
        %v2180 = vpop.xlane.xlu0 %2179
        %v2181 = vsel %vm1996, %v1987, -inf
        %2182 = vmax.xlane.f32.xlu0 %v2181
        %v2183 = vpop.xlane.xlu0 %2182
        %v2184 = vsel %vm2015, %v1988, -inf
        %2185 = vmax.xlane.f32.xlu0 %v2184
        %v2186 = vpop.xlane.xlu0 %2185
        %v2187 = vsel %vm1996, %v1989, -inf
        %2188 = vmax.xlane.f32.xlu0 %v2187
        %v2189 = vpop.xlane.xlu0 %2188
        %v2190 = vsel %vm1996, %v1990, -inf
        %2191 = vmax.xlane.f32.xlu0 %v2190
        %v2192 = vpop.xlane.xlu0 %2191
        %v2193 = vsel %vm1996, %v1991, -inf
        %2194 = vmax.xlane.f32.xlu0 %v2193
        %v2195 = vpop.xlane.xlu0 %2194
        %v2196 = vsel %vm1996, %v1992, -inf
        %2197 = vmax.xlane.f32.xlu0 %v2196
        %v2198 = vpop.xlane.xlu0 %2197
        %v2199 = vsel %vm1996, %v1993, -inf
        %2200 = vmax.xlane.f32.xlu0 %v2199
        %v2201 = vpop.xlane.xlu0 %2200
        %v2202 = vsel %vm1996, %v1994, -inf
        %2203 = vmax.xlane.f32.xlu0 %v2202
        %v2204 = vpop.xlane.xlu0 %2203
        %v2205 = vsel %vm2015, %v1995, -inf
        %2206 = vmax.xlane.f32.xlu0 %v2205
        %v2207 = vpop.xlane.xlu0 %2206
        %v2208 = vsub.f32 %v1926, %v1999
        %v2209 = vsub.f32 %v1927, %v2002
        %v2210 = vsub.f32 %v1928, %v2005
        %v2211 = vsub.f32 %v1929, %v2008
        %v2212 = vsub.f32 %v1930, %v2011
        %v2213 = vsub.f32 %v1931, %v2014
        %v2214 = vsub.f32 %v1932, %v2018
        %v2215 = vsub.f32 %v1933, %v2021
        %v2216 = vsub.f32 %v1934, %v2024
        %v2217 = vsub.f32 %v1935, %v2027
        %v2218 = vsub.f32 %v1936, %v2030
        %v2219 = vsub.f32 %v1937, %v2033
        %v2220 = vsub.f32 %v1938, %v2036
        %v2221 = vsub.f32 %v1939, %v2039
        %v2222 = vsub.f32 %v1940, %v2042
        %v2223 = vsub.f32 %v1941, %v2045
        %v2224 = vsub.f32 %v1942, %v2048
        %v2225 = vsub.f32 %v1943, %v2051
        %v2226 = vsub.f32 %v1944, %v2054
        %v2227 = vsub.f32 %v1945, %v2057
        %v2228 = vsub.f32 %v1946, %v2060
        %v2229 = vsub.f32 %v1947, %v2063
        %v2230 = vsub.f32 %v1948, %v2066
        %v2231 = vsub.f32 %v1949, %v2069
        %v2232 = vsub.f32 %v1950, %v2072
        %v2233 = vsub.f32 %v1951, %v2075
        %v2234 = vsub.f32 %v1952, %v2078
        %v2235 = vsub.f32 %v1953, %v2081
        %v2236 = vsub.f32 %v1954, %v2084
        %v2237 = vsub.f32 %v1955, %v2087
        %v2238 = vsub.f32 %v1956, %v2090
        %v2239 = vsub.f32 %v1957, %v2093
        %v2240 = vsub.f32 %v1958, %v2096
        %v2241 = vsub.f32 %v1959, %v2099
        %v2242 = vsub.f32 %v1960, %v2102
        %v2243 = vsub.f32 %v1961, %v2105
        %v2244 = vsub.f32 %v1962, %v2108
        %v2245 = vsub.f32 %v1963, %v2111
        %v2246 = vsub.f32 %v1964, %v2114
        %v2247 = vsub.f32 %v1965, %v2117
        %v2248 = vsub.f32 %v1966, %v2120
        %v2249 = vsub.f32 %v1967, %v2123
        %v2250 = vsub.f32 %v1968, %v2126
        %v2251 = vsub.f32 %v1969, %v2129
        %v2252 = vsub.f32 %v1970, %v2132
        %v2253 = vsub.f32 %v1971, %v2135
        %v2254 = vsub.f32 %v1972, %v2138
        %v2255 = vsub.f32 %v1973, %v2141
        %v2256 = vsub.f32 %v1974, %v2144
        %v2257 = vsub.f32 %v1975, %v2147
        %v2258 = vsub.f32 %v1976, %v2150
        %v2259 = vsub.f32 %v1977, %v2153
        %v2260 = vsub.f32 %v1978, %v2156
        %v2261 = vsub.f32 %v1979, %v2159
        %v2262 = vsub.f32 %v1980, %v2162
        %v2263 = vsub.f32 %v1981, %v2165
        %v2264 = vsub.f32 %v1982, %v2168
        %v2265 = vsub.f32 %v1983, %v2171
        %v2266 = vsub.f32 %v1984, %v2174
        %v2267 = vsub.f32 %v1985, %v2177
        %v2268 = vsub.f32 %v1986, %v2180
        %v2269 = vsub.f32 %v1987, %v2183
        %v2270 = vsub.f32 %v1988, %v2186
        %v2271 = vsub.f32 %v1989, %v2189
        %v2272 = vsub.f32 %v1990, %v2192
        %v2273 = vsub.f32 %v1991, %v2195
        %v2274 = vsub.f32 %v1992, %v2198
        %v2275 = vsub.f32 %v1993, %v2201
        %v2276 = vsub.f32 %v1994, %v2204
        %v2277 = vsub.f32 %v1995, %v2207
        %v2278 = vmul.f32 %v2208, 1.442695
        %v2279 = vpow.pop %v2278
        %v2280 = vmul.f32 %v2209, 1.442695
        %v2281 = vpow.pop %v2280
        %v2282 = vmul.f32 %v2210, 1.442695
        %v2283 = vpow.pop %v2282
        %v2284 = vmul.f32 %v2211, 1.442695
        %v2285 = vpow.pop %v2284
        %v2286 = vmul.f32 %v2212, 1.442695
        %v2287 = vpow.pop %v2286
        %v2288 = vmul.f32 %v2213, 1.442695
        %v2289 = vpow.pop %v2288
        %v2290 = vmul.f32 %v2214, 1.442695
        %v2291 = vpow.pop %v2290
        %v2292 = vmul.f32 %v2215, 1.442695
        %v2293 = vpow.pop %v2292
        %v2294 = vmul.f32 %v2216, 1.442695
        %v2295 = vpow.pop %v2294
        %v2296 = vmul.f32 %v2217, 1.442695
        %v2297 = vpow.pop %v2296
        %v2298 = vmul.f32 %v2218, 1.442695
        %v2299 = vpow.pop %v2298
        %v2300 = vmul.f32 %v2219, 1.442695
        %v2301 = vpow.pop %v2300
        %v2302 = vmul.f32 %v2220, 1.442695
        %v2303 = vpow.pop %v2302
        %v2304 = vmul.f32 %v2221, 1.442695
        %v2305 = vpow.pop %v2304
        %v2306 = vmul.f32 %v2222, 1.442695
        %v2307 = vpow.pop %v2306
        %v2308 = vmul.f32 %v2223, 1.442695
        %v2309 = vpow.pop %v2308
        %v2310 = vmul.f32 %v2224, 1.442695
        %v2311 = vpow.pop %v2310
        %v2312 = vmul.f32 %v2225, 1.442695
        %v2313 = vpow.pop %v2312
        %v2314 = vmul.f32 %v2226, 1.442695
        %v2315 = vpow.pop %v2314
        %v2316 = vmul.f32 %v2227, 1.442695
        %v2317 = vpow.pop %v2316
        %v2318 = vmul.f32 %v2228, 1.442695
        %v2319 = vpow.pop %v2318
        %v2320 = vmul.f32 %v2229, 1.442695
        %v2321 = vpow.pop %v2320
        %v2322 = vmul.f32 %v2230, 1.442695
        %v2323 = vpow.pop %v2322
        %v2324 = vmul.f32 %v2231, 1.442695
        %v2325 = vpow.pop %v2324
        %v2326 = vmul.f32 %v2232, 1.442695
        %v2327 = vpow.pop %v2326
        %v2328 = vmul.f32 %v2233, 1.442695
        %v2329 = vpow.pop %v2328
        %v2330 = vmul.f32 %v2234, 1.442695
        %v2331 = vpow.pop %v2330
        %v2332 = vmul.f32 %v2235, 1.442695
        %v2333 = vpow.pop %v2332
        %v2334 = vmul.f32 %v2236, 1.442695
        %v2335 = vpow.pop %v2334
        %v2336 = vmul.f32 %v2237, 1.442695
        %v2337 = vpow.pop %v2336
        %v2338 = vmul.f32 %v2238, 1.442695
        %v2339 = vpow.pop %v2338
        %v2340 = vmul.f32 %v2239, 1.442695
        %v2341 = vpow.pop %v2340
        %v2342 = vmul.f32 %v2240, 1.442695
        %v2343 = vpow.pop %v2342
        %v2344 = vmul.f32 %v2241, 1.442695
        %v2345 = vpow.pop %v2344
        %v2346 = vmul.f32 %v2242, 1.442695
        %v2347 = vpow.pop %v2346
        %v2348 = vmul.f32 %v2243, 1.442695
        %v2349 = vpow.pop %v2348
        %v2350 = vmul.f32 %v2244, 1.442695
        %v2351 = vpow.pop %v2350
        %v2352 = vmul.f32 %v2245, 1.442695
        %v2353 = vpow.pop %v2352
        %v2354 = vmul.f32 %v2246, 1.442695
        %v2355 = vpow.pop %v2354
        %v2356 = vmul.f32 %v2247, 1.442695
        %v2357 = vpow.pop %v2356
        %v2358 = vmul.f32 %v2248, 1.442695
        %v2359 = vpow.pop %v2358
        %v2360 = vmul.f32 %v2249, 1.442695
        %v2361 = vpow.pop %v2360
        %v2362 = vmul.f32 %v2250, 1.442695
        %v2363 = vpow.pop %v2362
        %v2364 = vmul.f32 %v2251, 1.442695
        %v2365 = vpow.pop %v2364
        %v2366 = vmul.f32 %v2252, 1.442695
        %v2367 = vpow.pop %v2366
        %v2368 = vmul.f32 %v2253, 1.442695
        %v2369 = vpow.pop %v2368
        %v2370 = vmul.f32 %v2254, 1.442695
        %v2371 = vpow.pop %v2370
        %v2372 = vmul.f32 %v2255, 1.442695
        %v2373 = vpow.pop %v2372
        %v2374 = vmul.f32 %v2256, 1.442695
        %v2375 = vpow.pop %v2374
        %v2376 = vmul.f32 %v2257, 1.442695
        %v2377 = vpow.pop %v2376
        %v2378 = vmul.f32 %v2258, 1.442695
        %v2379 = vpow.pop %v2378
        %v2380 = vmul.f32 %v2259, 1.442695
        %v2381 = vpow.pop %v2380
        %v2382 = vmul.f32 %v2260, 1.442695
        %v2383 = vpow.pop %v2382
        %v2384 = vmul.f32 %v2261, 1.442695
        %v2385 = vpow.pop %v2384
        %v2386 = vmul.f32 %v2262, 1.442695
        %v2387 = vpow.pop %v2386
        %v2388 = vmul.f32 %v2263, 1.442695
        %v2389 = vpow.pop %v2388
        %v2390 = vmul.f32 %v2264, 1.442695
        %v2391 = vpow.pop %v2390
        %v2392 = vmul.f32 %v2265, 1.442695
        %v2393 = vpow.pop %v2392
        %v2394 = vmul.f32 %v2266, 1.442695
        %v2395 = vpow.pop %v2394
        %v2396 = vmul.f32 %v2267, 1.442695
        %v2397 = vpow.pop %v2396
        %v2398 = vmul.f32 %v2268, 1.442695
        %v2399 = vpow.pop %v2398
        %v2400 = vmul.f32 %v2269, 1.442695
        %v2401 = vpow.pop %v2400
        %v2402 = vmul.f32 %v2270, 1.442695
        %v2403 = vpow.pop %v2402
        %v2404 = vmul.f32 %v2271, 1.442695
        %v2405 = vpow.pop %v2404
        %v2406 = vmul.f32 %v2272, 1.442695
        %v2407 = vpow.pop %v2406
        %v2408 = vmul.f32 %v2273, 1.442695
        %v2409 = vpow.pop %v2408
        %v2410 = vmul.f32 %v2274, 1.442695
        %v2411 = vpow.pop %v2410
        %v2412 = vmul.f32 %v2275, 1.442695
        %v2413 = vpow.pop %v2412
        %v2414 = vmul.f32 %v2276, 1.442695
        %v2415 = vpow.pop %v2414
        %v2416 = vmul.f32 %v2277, 1.442695
        %v2417 = vpow.pop %v2416
        %v2418 = vsel %vm1996, %v2279, 0.0
        %2419 = vadd.xlane.f32.xlu0 %v2418
        %v2420 = vpop.xlane.xlu0 %2419
        %v2421 = vsel %vm1996, %v2281, 0.0
        %2422 = vadd.xlane.f32.xlu0 %v2421
        %v2423 = vpop.xlane.xlu0 %2422
        %v2424 = vsel %vm1996, %v2283, 0.0
        %2425 = vadd.xlane.f32.xlu0 %v2424
        %v2426 = vpop.xlane.xlu0 %2425
        %v2427 = vsel %vm1996, %v2285, 0.0
        %2428 = vadd.xlane.f32.xlu0 %v2427
        %v2429 = vpop.xlane.xlu0 %2428
        %v2430 = vsel %vm1996, %v2287, 0.0
        %2431 = vadd.xlane.f32.xlu0 %v2430
        %v2432 = vpop.xlane.xlu0 %2431
        %v2433 = vsel %vm1996, %v2289, 0.0
        %2434 = vadd.xlane.f32.xlu0 %v2433
        %v2435 = vpop.xlane.xlu0 %2434
        %v2436 = vsel %vm2015, %v2291, 0.0
        %2437 = vadd.xlane.f32.xlu0 %v2436
        %v2438 = vpop.xlane.xlu0 %2437
        %v2439 = vsel %vm1996, %v2293, 0.0
        %2440 = vadd.xlane.f32.xlu0 %v2439
        %v2441 = vpop.xlane.xlu0 %2440
        %v2442 = vsel %vm1996, %v2295, 0.0
        %2443 = vadd.xlane.f32.xlu0 %v2442
        %v2444 = vpop.xlane.xlu0 %2443
        %v2445 = vsel %vm1996, %v2297, 0.0
        %2446 = vadd.xlane.f32.xlu0 %v2445
        %v2447 = vpop.xlane.xlu0 %2446
        %v2448 = vsel %vm1996, %v2299, 0.0
        %2449 = vadd.xlane.f32.xlu0 %v2448
        %v2450 = vpop.xlane.xlu0 %2449
        %v2451 = vsel %vm1996, %v2301, 0.0
        %2452 = vadd.xlane.f32.xlu0 %v2451
        %v2453 = vpop.xlane.xlu0 %2452
        %v2454 = vsel %vm1996, %v2303, 0.0
        %2455 = vadd.xlane.f32.xlu0 %v2454
        %v2456 = vpop.xlane.xlu0 %2455
        %v2457 = vsel %vm2015, %v2305, 0.0
        %2458 = vadd.xlane.f32.xlu0 %v2457
        %v2459 = vpop.xlane.xlu0 %2458
        %v2460 = vsel %vm1996, %v2307, 0.0
        %2461 = vadd.xlane.f32.xlu0 %v2460
        %v2462 = vpop.xlane.xlu0 %2461
        %v2463 = vsel %vm1996, %v2309, 0.0
        %2464 = vadd.xlane.f32.xlu0 %v2463
        %v2465 = vpop.xlane.xlu0 %2464
        %v2466 = vsel %vm1996, %v2311, 0.0
        %2467 = vadd.xlane.f32.xlu0 %v2466
        %v2468 = vpop.xlane.xlu0 %2467
        %v2469 = vsel %vm1996, %v2313, 0.0
        %2470 = vadd.xlane.f32.xlu0 %v2469
        %v2471 = vpop.xlane.xlu0 %2470
        %v2472 = vsel %vm1996, %v2315, 0.0
        %2473 = vadd.xlane.f32.xlu0 %v2472
        %v2474 = vpop.xlane.xlu0 %2473
        %v2475 = vsel %vm1996, %v2317, 0.0
        %2476 = vadd.xlane.f32.xlu0 %v2475
        %v2477 = vpop.xlane.xlu0 %2476
        %v2478 = vsel %vm2015, %v2319, 0.0
        %2479 = vadd.xlane.f32.xlu0 %v2478
        %v2480 = vpop.xlane.xlu0 %2479
        %v2481 = vsel %vm1996, %v2321, 0.0
        %2482 = vadd.xlane.f32.xlu0 %v2481
        %v2483 = vpop.xlane.xlu0 %2482
        %v2484 = vsel %vm1996, %v2323, 0.0
        %2485 = vadd.xlane.f32.xlu0 %v2484
        %v2486 = vpop.xlane.xlu0 %2485
        %v2487 = vsel %vm1996, %v2325, 0.0
        %2488 = vadd.xlane.f32.xlu0 %v2487
        %v2489 = vpop.xlane.xlu0 %2488
        %v2490 = vsel %vm1996, %v2327, 0.0
        %2491 = vadd.xlane.f32.xlu0 %v2490
        %v2492 = vpop.xlane.xlu0 %2491
        %v2493 = vsel %vm1996, %v2329, 0.0
        %2494 = vadd.xlane.f32.xlu0 %v2493
        %v2495 = vpop.xlane.xlu0 %2494
        %v2496 = vsel %vm1996, %v2331, 0.0
        %2497 = vadd.xlane.f32.xlu0 %v2496
        %v2498 = vpop.xlane.xlu0 %2497
        %v2499 = vsel %vm2015, %v2333, 0.0
        %2500 = vadd.xlane.f32.xlu0 %v2499
        %v2501 = vpop.xlane.xlu0 %2500
        %v2502 = vsel %vm1996, %v2335, 0.0
        %2503 = vadd.xlane.f32.xlu0 %v2502
        %v2504 = vpop.xlane.xlu0 %2503
        %v2505 = vsel %vm1996, %v2337, 0.0
        %2506 = vadd.xlane.f32.xlu0 %v2505
        %v2507 = vpop.xlane.xlu0 %2506
        %v2508 = vsel %vm1996, %v2339, 0.0
        %2509 = vadd.xlane.f32.xlu0 %v2508
        %v2510 = vpop.xlane.xlu0 %2509
        %v2511 = vsel %vm1996, %v2341, 0.0
        %2512 = vadd.xlane.f32.xlu0 %v2511
        %v2513 = vpop.xlane.xlu0 %2512
        %v2514 = vsel %vm1996, %v2343, 0.0
        %2515 = vadd.xlane.f32.xlu0 %v2514
        %v2516 = vpop.xlane.xlu0 %2515
        %v2517 = vsel %vm1996, %v2345, 0.0
        %2518 = vadd.xlane.f32.xlu0 %v2517
        %v2519 = vpop.xlane.xlu0 %2518
        %v2520 = vsel %vm2015, %v2347, 0.0
        %2521 = vadd.xlane.f32.xlu0 %v2520
        %v2522 = vpop.xlane.xlu0 %2521
        %v2523 = vsel %vm1996, %v2349, 0.0
        %2524 = vadd.xlane.f32.xlu0 %v2523
        %v2525 = vpop.xlane.xlu0 %2524
        %v2526 = vsel %vm1996, %v2351, 0.0
        %2527 = vadd.xlane.f32.xlu0 %v2526
        %v2528 = vpop.xlane.xlu0 %2527
        %v2529 = vsel %vm1996, %v2353, 0.0
        %2530 = vadd.xlane.f32.xlu0 %v2529
        %v2531 = vpop.xlane.xlu0 %2530
        %v2532 = vsel %vm1996, %v2355, 0.0
        %2533 = vadd.xlane.f32.xlu0 %v2532
        %v2534 = vpop.xlane.xlu0 %2533
        %v2535 = vsel %vm1996, %v2357, 0.0
        %2536 = vadd.xlane.f32.xlu0 %v2535
        %v2537 = vpop.xlane.xlu0 %2536
        %v2538 = vsel %vm1996, %v2359, 0.0
        %2539 = vadd.xlane.f32.xlu0 %v2538
        %v2540 = vpop.xlane.xlu0 %2539
        %v2541 = vsel %vm2015, %v2361, 0.0
        %2542 = vadd.xlane.f32.xlu0 %v2541
        %v2543 = vpop.xlane.xlu0 %2542
        %v2544 = vsel %vm1996, %v2363, 0.0
        %2545 = vadd.xlane.f32.xlu0 %v2544
        %v2546 = vpop.xlane.xlu0 %2545
        %v2547 = vsel %vm1996, %v2365, 0.0
        %2548 = vadd.xlane.f32.xlu0 %v2547
        %v2549 = vpop.xlane.xlu0 %2548
        %v2550 = vsel %vm1996, %v2367, 0.0
        %2551 = vadd.xlane.f32.xlu0 %v2550
        %v2552 = vpop.xlane.xlu0 %2551
        %v2553 = vsel %vm1996, %v2369, 0.0
        %2554 = vadd.xlane.f32.xlu0 %v2553
        %v2555 = vpop.xlane.xlu0 %2554
        %v2556 = vsel %vm1996, %v2371, 0.0
        %2557 = vadd.xlane.f32.xlu0 %v2556
        %v2558 = vpop.xlane.xlu0 %2557
        %v2559 = vsel %vm1996, %v2373, 0.0
        %2560 = vadd.xlane.f32.xlu0 %v2559
        %v2561 = vpop.xlane.xlu0 %2560
        %v2562 = vsel %vm2015, %v2375, 0.0
        %2563 = vadd.xlane.f32.xlu0 %v2562
        %v2564 = vpop.xlane.xlu0 %2563
        %v2565 = vsel %vm1996, %v2377, 0.0
        %2566 = vadd.xlane.f32.xlu0 %v2565
        %v2567 = vpop.xlane.xlu0 %2566
        %v2568 = vsel %vm1996, %v2379, 0.0
        %2569 = vadd.xlane.f32.xlu0 %v2568
        %v2570 = vpop.xlane.xlu0 %2569
        %v2571 = vsel %vm1996, %v2381, 0.0
        %2572 = vadd.xlane.f32.xlu0 %v2571
        %v2573 = vpop.xlane.xlu0 %2572
        %v2574 = vsel %vm1996, %v2383, 0.0
        %2575 = vadd.xlane.f32.xlu0 %v2574
        %v2576 = vpop.xlane.xlu0 %2575
        %v2577 = vsel %vm1996, %v2385, 0.0
        %2578 = vadd.xlane.f32.xlu0 %v2577
        %v2579 = vpop.xlane.xlu0 %2578
        %v2580 = vsel %vm1996, %v2387, 0.0
        %2581 = vadd.xlane.f32.xlu0 %v2580
        %v2582 = vpop.xlane.xlu0 %2581
        %v2583 = vsel %vm2015, %v2389, 0.0
        %2584 = vadd.xlane.f32.xlu0 %v2583
        %v2585 = vpop.xlane.xlu0 %2584
        %v2586 = vsel %vm1996, %v2391, 0.0
        %2587 = vadd.xlane.f32.xlu0 %v2586
        %v2588 = vpop.xlane.xlu0 %2587
        %v2589 = vsel %vm1996, %v2393, 0.0
        %2590 = vadd.xlane.f32.xlu0 %v2589
        %v2591 = vpop.xlane.xlu0 %2590
        %v2592 = vsel %vm1996, %v2395, 0.0
        %2593 = vadd.xlane.f32.xlu0 %v2592
        %v2594 = vpop.xlane.xlu0 %2593
        %v2595 = vsel %vm1996, %v2397, 0.0
        %2596 = vadd.xlane.f32.xlu0 %v2595
        %v2597 = vpop.xlane.xlu0 %2596
        %v2598 = vsel %vm1996, %v2399, 0.0
        %2599 = vadd.xlane.f32.xlu0 %v2598
        %v2600 = vpop.xlane.xlu0 %2599
        %v2601 = vsel %vm1996, %v2401, 0.0
        %2602 = vadd.xlane.f32.xlu0 %v2601
        %v2603 = vpop.xlane.xlu0 %2602
        %v2604 = vsel %vm2015, %v2403, 0.0
        %2605 = vadd.xlane.f32.xlu0 %v2604
        %v2606 = vpop.xlane.xlu0 %2605
        %v2607 = vsel %vm1996, %v2405, 0.0
        %2608 = vadd.xlane.f32.xlu0 %v2607
        %v2609 = vpop.xlane.xlu0 %2608
        %v2610 = vsel %vm1996, %v2407, 0.0
        %2611 = vadd.xlane.f32.xlu0 %v2610
        %v2612 = vpop.xlane.xlu0 %2611
        %v2613 = vsel %vm1996, %v2409, 0.0
        %2614 = vadd.xlane.f32.xlu0 %v2613
        %v2615 = vpop.xlane.xlu0 %2614
        %v2616 = vsel %vm1996, %v2411, 0.0
        %2617 = vadd.xlane.f32.xlu0 %v2616
        %v2618 = vpop.xlane.xlu0 %2617
        %v2619 = vsel %vm1996, %v2413, 0.0
        %2620 = vadd.xlane.f32.xlu0 %v2619
        %v2621 = vpop.xlane.xlu0 %2620
        %v2622 = vsel %vm1996, %v2415, 0.0
        %2623 = vadd.xlane.f32.xlu0 %v2622
        %v2624 = vpop.xlane.xlu0 %2623
        %v2625 = vsel %vm2015, %v2417, 0.0
        %2626 = vadd.xlane.f32.xlu0 %v2625
        %v2627 = vpop.xlane.xlu0 %2626
        %v2628 = vrcp.pop %v2420
        %v2629 = vmul.f32 1.0, %v2628
        %v2630 = vrcp.pop %v2423
        %v2631 = vmul.f32 1.0, %v2630
        %v2632 = vrcp.pop %v2426
        %v2633 = vmul.f32 1.0, %v2632
        %v2634 = vrcp.pop %v2429
        %v2635 = vmul.f32 1.0, %v2634
        %v2636 = vrcp.pop %v2432
        %v2637 = vmul.f32 1.0, %v2636
        %v2638 = vrcp.pop %v2435
        %v2639 = vmul.f32 1.0, %v2638
        %v2640 = vrcp.pop %v2438
        %v2641 = vmul.f32 1.0, %v2640
        %v2642 = vrcp.pop %v2441
        %v2643 = vmul.f32 1.0, %v2642
        %v2644 = vrcp.pop %v2444
        %v2645 = vmul.f32 1.0, %v2644
        %v2646 = vrcp.pop %v2447
        %v2647 = vmul.f32 1.0, %v2646
        %v2648 = vrcp.pop %v2450
        %v2649 = vmul.f32 1.0, %v2648
        %v2650 = vrcp.pop %v2453
        %v2651 = vmul.f32 1.0, %v2650
        %v2652 = vrcp.pop %v2456
        %v2653 = vmul.f32 1.0, %v2652
        %v2654 = vrcp.pop %v2459
        %v2655 = vmul.f32 1.0, %v2654
        %v2656 = vrcp.pop %v2462
        %v2657 = vmul.f32 1.0, %v2656
        %v2658 = vrcp.pop %v2465
        %v2659 = vmul.f32 1.0, %v2658
        %v2660 = vrcp.pop %v2468
        %v2661 = vmul.f32 1.0, %v2660
        %v2662 = vrcp.pop %v2471
        %v2663 = vmul.f32 1.0, %v2662
        %v2664 = vrcp.pop %v2474
        %v2665 = vmul.f32 1.0, %v2664
        %v2666 = vrcp.pop %v2477
        %v2667 = vmul.f32 1.0, %v2666
        %v2668 = vrcp.pop %v2480
        %v2669 = vmul.f32 1.0, %v2668
        %v2670 = vrcp.pop %v2483
        %v2671 = vmul.f32 1.0, %v2670
        %v2672 = vrcp.pop %v2486
        %v2673 = vmul.f32 1.0, %v2672
        %v2674 = vrcp.pop %v2489
        %v2675 = vmul.f32 1.0, %v2674
        %v2676 = vrcp.pop %v2492
        %v2677 = vmul.f32 1.0, %v2676
        %v2678 = vrcp.pop %v2495
        %v2679 = vmul.f32 1.0, %v2678
        %v2680 = vrcp.pop %v2498
        %v2681 = vmul.f32 1.0, %v2680
        %v2682 = vrcp.pop %v2501
        %v2683 = vmul.f32 1.0, %v2682
        %v2684 = vrcp.pop %v2504
        %v2685 = vmul.f32 1.0, %v2684
        %v2686 = vrcp.pop %v2507
        %v2687 = vmul.f32 1.0, %v2686
        %v2688 = vrcp.pop %v2510
        %v2689 = vmul.f32 1.0, %v2688
        %v2690 = vrcp.pop %v2513
        %v2691 = vmul.f32 1.0, %v2690
        %v2692 = vrcp.pop %v2516
        %v2693 = vmul.f32 1.0, %v2692
        %v2694 = vrcp.pop %v2519
        %v2695 = vmul.f32 1.0, %v2694
        %v2696 = vrcp.pop %v2522
        %v2697 = vmul.f32 1.0, %v2696
        %v2698 = vrcp.pop %v2525
        %v2699 = vmul.f32 1.0, %v2698
        %v2700 = vrcp.pop %v2528
        %v2701 = vmul.f32 1.0, %v2700
        %v2702 = vrcp.pop %v2531
        %v2703 = vmul.f32 1.0, %v2702
        %v2704 = vrcp.pop %v2534
        %v2705 = vmul.f32 1.0, %v2704
        %v2706 = vrcp.pop %v2537
        %v2707 = vmul.f32 1.0, %v2706
        %v2708 = vrcp.pop %v2540
        %v2709 = vmul.f32 1.0, %v2708
        %v2710 = vrcp.pop %v2543
        %v2711 = vmul.f32 1.0, %v2710
        %v2712 = vrcp.pop %v2546
        %v2713 = vmul.f32 1.0, %v2712
        %v2714 = vrcp.pop %v2549
        %v2715 = vmul.f32 1.0, %v2714
        %v2716 = vrcp.pop %v2552
        %v2717 = vmul.f32 1.0, %v2716
        %v2718 = vrcp.pop %v2555
        %v2719 = vmul.f32 1.0, %v2718
        %v2720 = vrcp.pop %v2558
        %v2721 = vmul.f32 1.0, %v2720
        %v2722 = vrcp.pop %v2561
        %v2723 = vmul.f32 1.0, %v2722
        %v2724 = vrcp.pop %v2564
        %v2725 = vmul.f32 1.0, %v2724
        %v2726 = vrcp.pop %v2567
        %v2727 = vmul.f32 1.0, %v2726
        %v2728 = vrcp.pop %v2570
        %v2729 = vmul.f32 1.0, %v2728
        %v2730 = vrcp.pop %v2573
        %v2731 = vmul.f32 1.0, %v2730
        %v2732 = vrcp.pop %v2576
        %v2733 = vmul.f32 1.0, %v2732
        %v2734 = vrcp.pop %v2579
        %v2735 = vmul.f32 1.0, %v2734
        %v2736 = vrcp.pop %v2582
        %v2737 = vmul.f32 1.0, %v2736
        %v2738 = vrcp.pop %v2585
        %v2739 = vmul.f32 1.0, %v2738
        %v2740 = vrcp.pop %v2588
        %v2741 = vmul.f32 1.0, %v2740
        %v2742 = vrcp.pop %v2591
        %v2743 = vmul.f32 1.0, %v2742
        %v2744 = vrcp.pop %v2594
        %v2745 = vmul.f32 1.0, %v2744
        %v2746 = vrcp.pop %v2597
        %v2747 = vmul.f32 1.0, %v2746
        %v2748 = vrcp.pop %v2600
        %v2749 = vmul.f32 1.0, %v2748
        %v2750 = vrcp.pop %v2603
        %v2751 = vmul.f32 1.0, %v2750
        %v2752 = vrcp.pop %v2606
        %v2753 = vmul.f32 1.0, %v2752
        %v2754 = vrcp.pop %v2609
        %v2755 = vmul.f32 1.0, %v2754
        %v2756 = vrcp.pop %v2612
        %v2757 = vmul.f32 1.0, %v2756
        %v2758 = vrcp.pop %v2615
        %v2759 = vmul.f32 1.0, %v2758
        %v2760 = vrcp.pop %v2618
        %v2761 = vmul.f32 1.0, %v2760
        %v2762 = vrcp.pop %v2621
        %v2763 = vmul.f32 1.0, %v2762
        %v2764 = vrcp.pop %v2624
        %v2765 = vmul.f32 1.0, %v2764
        %v2766 = vrcp.pop %v2627
        %v2767 = vmul.f32 1.0, %v2766
        %v2768 = vstv %s653
        %vm2769 = vcmp.ge.u32.totalorder %v581, %v2768
        %vm2770 = vcmp.ge.u32.totalorder %v582, %v2768
        %vm2771 = vcmp.ge.u32.totalorder %v583, %v2768
        %vm2772 = vcmp.ge.u32.totalorder %v584, %v2768
        %vm2773 = vcmp.ge.u32.totalorder %v585, %v2768
        %vm2774 = vcmp.ge.u32.totalorder %v586, %v2768
        %vm2775 = vcmp.ge.u32.totalorder %v587, %v2768
        %vm2776 = vcmp.ge.u32.totalorder %v588, %v2768
        %vm2777 = vcmp.ge.u32.totalorder %v589, %v2768
        %vm2778 = vcmp.ge.u32.totalorder %v590, %v2768
        %vm2779 = vcmp.ge.u32.totalorder %v591, %v2768
        %vm2780 = vcmp.ge.u32.totalorder %v592, %v2768
        %vm2781 = vcmp.ge.u32.totalorder %v593, %v2768
        %vm2782 = vcmp.ge.u32.totalorder %v594, %v2768
        %vm2783 = vcmp.ge.u32.totalorder %v595, %v2768
        %vm2784 = vcmp.ge.u32.totalorder %v596, %v2768
        %vm2785 = vcmp.ge.u32.totalorder %v597, %v2768
        %vm2786 = vcmp.ge.u32.totalorder %v598, %v2768
        %vm2787 = vcmp.ge.u32.totalorder %v599, %v2768
        %vm2788 = vcmp.ge.u32.totalorder %v600, %v2768
        %vm2789 = vcmp.ge.u32.totalorder %v601, %v2768
        %vm2790 = vcmp.ge.u32.totalorder %v602, %v2768
        %vm2791 = vcmp.ge.u32.totalorder %v603, %v2768
        %vm2792 = vcmp.ge.u32.totalorder %v604, %v2768
        %vm2793 = vcmp.ge.u32.totalorder %v605, %v2768
        %vm2794 = vcmp.ge.u32.totalorder %v606, %v2768
        %vm2795 = vcmp.ge.u32.totalorder %v607, %v2768
        %vm2796 = vcmp.ge.u32.totalorder %v608, %v2768
        %vm2797 = vcmp.ge.u32.totalorder %v609, %v2768
        %vm2798 = vcmp.ge.u32.totalorder %v610, %v2768
        %vm2799 = vcmp.ge.u32.totalorder %v611, %v2768
        %vm2800 = vcmp.ge.u32.totalorder %v612, %v2768
        %vm2801 = vcmp.ge.u32.totalorder %v613, %v2768
        %vm2802 = vcmp.ge.u32.totalorder %v614, %v2768
        %vm2803 = vcmp.ge.u32.totalorder %v615, %v2768
        %vm2804 = vcmp.ge.u32.totalorder %v616, %v2768
        %vm2805 = vcmp.ge.u32.totalorder %v617, %v2768
        %vm2806 = vcmp.ge.u32.totalorder %v618, %v2768
        %vm2807 = vcmp.ge.u32.totalorder %v619, %v2768
        %vm2808 = vcmp.ge.u32.totalorder %v620, %v2768
        %vm2809 = vcmp.ge.u32.totalorder %v621, %v2768
        %vm2810 = vcmp.ge.u32.totalorder %v622, %v2768
        %vm2811 = vcmp.ge.u32.totalorder %v623, %v2768
        %vm2812 = vcmp.ge.u32.totalorder %v624, %v2768
        %vm2813 = vcmp.ge.u32.totalorder %v625, %v2768
        %vm2814 = vcmp.ge.u32.totalorder %v626, %v2768
        %vm2815 = vcmp.ge.u32.totalorder %v627, %v2768
        %vm2816 = vcmp.ge.u32.totalorder %v628, %v2768
        %vm2817 = vcmp.ge.u32.totalorder %v629, %v2768
        %vm2818 = vcmp.ge.u32.totalorder %v630, %v2768
        %vm2819 = vcmp.ge.u32.totalorder %v631, %v2768
        %vm2820 = vcmp.ge.u32.totalorder %v632, %v2768
        %vm2821 = vcmp.ge.u32.totalorder %v633, %v2768
        %vm2822 = vcmp.ge.u32.totalorder %v634, %v2768
        %vm2823 = vcmp.ge.u32.totalorder %v635, %v2768
        %vm2824 = vcmp.ge.u32.totalorder %v636, %v2768
        %vm2825 = vcmp.ge.u32.totalorder %v637, %v2768
        %vm2826 = vcmp.ge.u32.totalorder %v638, %v2768
        %vm2827 = vcmp.ge.u32.totalorder %v639, %v2768
        %vm2828 = vcmp.ge.u32.totalorder %v640, %v2768
        %vm2829 = vcmp.ge.u32.totalorder %v641, %v2768
        %vm2830 = vcmp.ge.u32.totalorder %v642, %v2768
        %vm2831 = vcmp.ge.u32.totalorder %v643, %v2768
        %vm2832 = vcmp.ge.u32.totalorder %v644, %v2768
        %vm2833 = vcmp.ge.u32.totalorder %v645, %v2768
        %vm2834 = vcmp.ge.u32.totalorder %v646, %v2768
        %vm2835 = vcmp.ge.u32.totalorder %v647, %v2768
        %vm2836 = vcmp.ge.u32.totalorder %v648, %v2768
        %vm2837 = vcmp.ge.u32.totalorder %v649, %v2768
        %vm2838 = vcmp.ge.u32.totalorder %v650, %v2768
        %v2839 = vstv %s652
        %v2840 = vmul.f32 %v2629, %v2839
        %v2841 = vmul.f32 %v2631, %v2839
        %v2842 = vmul.f32 %v2633, %v2839
        %v2843 = vmul.f32 %v2635, %v2839
        %v2844 = vmul.f32 %v2637, %v2839
        %v2845 = vmul.f32 %v2639, %v2839
        %v2846 = vmul.f32 %v2641, %v2839
        %v2847 = vmul.f32 %v2643, %v2839
        %v2848 = vmul.f32 %v2645, %v2839
        %v2849 = vmul.f32 %v2647, %v2839
        %v2850 = vmul.f32 %v2649, %v2839
        %v2851 = vmul.f32 %v2651, %v2839
        %v2852 = vmul.f32 %v2653, %v2839
        %v2853 = vmul.f32 %v2655, %v2839
        %v2854 = vmul.f32 %v2657, %v2839
        %v2855 = vmul.f32 %v2659, %v2839
        %v2856 = vmul.f32 %v2661, %v2839
        %v2857 = vmul.f32 %v2663, %v2839
        %v2858 = vmul.f32 %v2665, %v2839
        %v2859 = vmul.f32 %v2667, %v2839
        %v2860 = vmul.f32 %v2669, %v2839
        %v2861 = vmul.f32 %v2671, %v2839
        %v2862 = vmul.f32 %v2673, %v2839
        %v2863 = vmul.f32 %v2675, %v2839
        %v2864 = vmul.f32 %v2677, %v2839
        %v2865 = vmul.f32 %v2679, %v2839
        %v2866 = vmul.f32 %v2681, %v2839
        %v2867 = vmul.f32 %v2683, %v2839
        %v2868 = vmul.f32 %v2685, %v2839
        %v2869 = vmul.f32 %v2687, %v2839
        %v2870 = vmul.f32 %v2689, %v2839
        %v2871 = vmul.f32 %v2691, %v2839
        %v2872 = vmul.f32 %v2693, %v2839
        %v2873 = vmul.f32 %v2695, %v2839
        %v2874 = vmul.f32 %v2697, %v2839
        %v2875 = vmul.f32 %v2699, %v2839
        %v2876 = vmul.f32 %v2701, %v2839
        %v2877 = vmul.f32 %v2703, %v2839
        %v2878 = vmul.f32 %v2705, %v2839
        %v2879 = vmul.f32 %v2707, %v2839
        %v2880 = vmul.f32 %v2709, %v2839
        %v2881 = vmul.f32 %v2711, %v2839
        %v2882 = vmul.f32 %v2713, %v2839
        %v2883 = vmul.f32 %v2715, %v2839
        %v2884 = vmul.f32 %v2717, %v2839
        %v2885 = vmul.f32 %v2719, %v2839
        %v2886 = vmul.f32 %v2721, %v2839
        %v2887 = vmul.f32 %v2723, %v2839
        %v2888 = vmul.f32 %v2725, %v2839
        %v2889 = vmul.f32 %v2727, %v2839
        %v2890 = vmul.f32 %v2729, %v2839
        %v2891 = vmul.f32 %v2731, %v2839
        %v2892 = vmul.f32 %v2733, %v2839
        %v2893 = vmul.f32 %v2735, %v2839
        %v2894 = vmul.f32 %v2737, %v2839
        %v2895 = vmul.f32 %v2739, %v2839
        %v2896 = vmul.f32 %v2741, %v2839
        %v2897 = vmul.f32 %v2743, %v2839
        %v2898 = vmul.f32 %v2745, %v2839
        %v2899 = vmul.f32 %v2747, %v2839
        %v2900 = vmul.f32 %v2749, %v2839
        %v2901 = vmul.f32 %v2751, %v2839
        %v2902 = vmul.f32 %v2753, %v2839
        %v2903 = vmul.f32 %v2755, %v2839
        %v2904 = vmul.f32 %v2757, %v2839
        %v2905 = vmul.f32 %v2759, %v2839
        %v2906 = vmul.f32 %v2761, %v2839
        %v2907 = vmul.f32 %v2763, %v2839
        %v2908 = vmul.f32 %v2765, %v2839
        %v2909 = vmul.f32 %v2767, %v2839
        %v2910 = vmul.f32 %v2279, %v2840
        %v2911 = vmul.f32 %v2281, %v2841
        %v2912 = vmul.f32 %v2283, %v2842
        %v2913 = vmul.f32 %v2285, %v2843
        %v2914 = vmul.f32 %v2287, %v2844
        %v2915 = vmul.f32 %v2289, %v2845
        %v2916 = vmul.f32 %v2291, %v2846
        %v2917 = vmul.f32 %v2293, %v2847
        %v2918 = vmul.f32 %v2295, %v2848
        %v2919 = vmul.f32 %v2297, %v2849
        %v2920 = vmul.f32 %v2299, %v2850
        %v2921 = vmul.f32 %v2301, %v2851
        %v2922 = vmul.f32 %v2303, %v2852
        %v2923 = vmul.f32 %v2305, %v2853
        %v2924 = vmul.f32 %v2307, %v2854
        %v2925 = vmul.f32 %v2309, %v2855
        %v2926 = vmul.f32 %v2311, %v2856
        %v2927 = vmul.f32 %v2313, %v2857
        %v2928 = vmul.f32 %v2315, %v2858
        %v2929 = vmul.f32 %v2317, %v2859
        %v2930 = vmul.f32 %v2319, %v2860
        %v2931 = vmul.f32 %v2321, %v2861
        %v2932 = vmul.f32 %v2323, %v2862
        %v2933 = vmul.f32 %v2325, %v2863
        %v2934 = vmul.f32 %v2327, %v2864
        %v2935 = vmul.f32 %v2329, %v2865
        %v2936 = vmul.f32 %v2331, %v2866
        %v2937 = vmul.f32 %v2333, %v2867
        %v2938 = vmul.f32 %v2335, %v2868
        %v2939 = vmul.f32 %v2337, %v2869
        %v2940 = vmul.f32 %v2339, %v2870
        %v2941 = vmul.f32 %v2341, %v2871
        %v2942 = vmul.f32 %v2343, %v2872
        %v2943 = vmul.f32 %v2345, %v2873
        %v2944 = vmul.f32 %v2347, %v2874
        %v2945 = vmul.f32 %v2349, %v2875
        %v2946 = vmul.f32 %v2351, %v2876
        %v2947 = vmul.f32 %v2353, %v2877
        %v2948 = vmul.f32 %v2355, %v2878
        %v2949 = vmul.f32 %v2357, %v2879
        %v2950 = vmul.f32 %v2359, %v2880
        %v2951 = vmul.f32 %v2361, %v2881
        %v2952 = vmul.f32 %v2363, %v2882
        %v2953 = vmul.f32 %v2365, %v2883
        %v2954 = vmul.f32 %v2367, %v2884
        %v2955 = vmul.f32 %v2369, %v2885
        %v2956 = vmul.f32 %v2371, %v2886
        %v2957 = vmul.f32 %v2373, %v2887
        %v2958 = vmul.f32 %v2375, %v2888
        %v2959 = vmul.f32 %v2377, %v2889
        %v2960 = vmul.f32 %v2379, %v2890
        %v2961 = vmul.f32 %v2381, %v2891
        %v2962 = vmul.f32 %v2383, %v2892
        %v2963 = vmul.f32 %v2385, %v2893
        %v2964 = vmul.f32 %v2387, %v2894
        %v2965 = vmul.f32 %v2389, %v2895
        %v2966 = vmul.f32 %v2391, %v2896
        %v2967 = vmul.f32 %v2393, %v2897
        %v2968 = vmul.f32 %v2395, %v2898
        %v2969 = vmul.f32 %v2397, %v2899
        %v2970 = vmul.f32 %v2399, %v2900
        %v2971 = vmul.f32 %v2401, %v2901
        %v2972 = vmul.f32 %v2403, %v2902
        %v2973 = vmul.f32 %v2405, %v2903
        %v2974 = vmul.f32 %v2407, %v2904
        %v2975 = vmul.f32 %v2409, %v2905
        %v2976 = vmul.f32 %v2411, %v2906
        %v2977 = vmul.f32 %v2413, %v2907
        %v2978 = vmul.f32 %v2415, %v2908
        %v2979 = vmul.f32 %v2417, %v2909
        %v2980 = vsel %vm2769, %v2910, 0.0
        %v2981 = vsel %vm2770, %v2911, 0.0
        %v2982 = vsel %vm2771, %v2912, 0.0
        %v2983 = vsel %vm2772, %v2913, 0.0
        %v2984 = vsel %vm2773, %v2914, 0.0
        %v2985 = vsel %vm2774, %v2915, 0.0
        %v2986 = vsel %vm2775, %v2916, 0.0
        %v2987 = vsel %vm2776, %v2917, 0.0
        %v2988 = vsel %vm2777, %v2918, 0.0
        %v2989 = vsel %vm2778, %v2919, 0.0
        %v2990 = vsel %vm2779, %v2920, 0.0
        %v2991 = vsel %vm2780, %v2921, 0.0
        %v2992 = vsel %vm2781, %v2922, 0.0
        %v2993 = vsel %vm2782, %v2923, 0.0
        %v2994 = vsel %vm2783, %v2924, 0.0
        %v2995 = vsel %vm2784, %v2925, 0.0
        %v2996 = vsel %vm2785, %v2926, 0.0
        %v2997 = vsel %vm2786, %v2927, 0.0
        %v2998 = vsel %vm2787, %v2928, 0.0
        %v2999 = vsel %vm2788, %v2929, 0.0
        %v3000 = vsel %vm2789, %v2930, 0.0
        %v3001 = vsel %vm2790, %v2931, 0.0
        %v3002 = vsel %vm2791, %v2932, 0.0
        %v3003 = vsel %vm2792, %v2933, 0.0
        %v3004 = vsel %vm2793, %v2934, 0.0
        %v3005 = vsel %vm2794, %v2935, 0.0
        %v3006 = vsel %vm2795, %v2936, 0.0
        %v3007 = vsel %vm2796, %v2937, 0.0
        %v3008 = vsel %vm2797, %v2938, 0.0
        %v3009 = vsel %vm2798, %v2939, 0.0
        %v3010 = vsel %vm2799, %v2940, 0.0
        %v3011 = vsel %vm2800, %v2941, 0.0
        %v3012 = vsel %vm2801, %v2942, 0.0
        %v3013 = vsel %vm2802, %v2943, 0.0
        %v3014 = vsel %vm2803, %v2944, 0.0
        %v3015 = vsel %vm2804, %v2945, 0.0
        %v3016 = vsel %vm2805, %v2946, 0.0
        %v3017 = vsel %vm2806, %v2947, 0.0
        %v3018 = vsel %vm2807, %v2948, 0.0
        %v3019 = vsel %vm2808, %v2949, 0.0
        %v3020 = vsel %vm2809, %v2950, 0.0
        %v3021 = vsel %vm2810, %v2951, 0.0
        %v3022 = vsel %vm2811, %v2952, 0.0
        %v3023 = vsel %vm2812, %v2953, 0.0
        %v3024 = vsel %vm2813, %v2954, 0.0
        %v3025 = vsel %vm2814, %v2955, 0.0
        %v3026 = vsel %vm2815, %v2956, 0.0
        %v3027 = vsel %vm2816, %v2957, 0.0
        %v3028 = vsel %vm2817, %v2958, 0.0
        %v3029 = vsel %vm2818, %v2959, 0.0
        %v3030 = vsel %vm2819, %v2960, 0.0
        %v3031 = vsel %vm2820, %v2961, 0.0
        %v3032 = vsel %vm2821, %v2962, 0.0
        %v3033 = vsel %vm2822, %v2963, 0.0
        %v3034 = vsel %vm2823, %v2964, 0.0
        %v3035 = vsel %vm2824, %v2965, 0.0
        %v3036 = vsel %vm2825, %v2966, 0.0
        %v3037 = vsel %vm2826, %v2967, 0.0
        %v3038 = vsel %vm2827, %v2968, 0.0
        %v3039 = vsel %vm2828, %v2969, 0.0
        %v3040 = vsel %vm2829, %v2970, 0.0
        %v3041 = vsel %vm2830, %v2971, 0.0
        %v3042 = vsel %vm2831, %v2972, 0.0
        %v3043 = vsel %vm2832, %v2973, 0.0
        %v3044 = vsel %vm2833, %v2974, 0.0
        %v3045 = vsel %vm2834, %v2975, 0.0
        %v3046 = vsel %vm2835, %v2976, 0.0
        %v3047 = vsel %vm2836, %v2977, 0.0
        %v3048 = vsel %vm2837, %v2978, 0.0
        %v3049 = vsel %vm2838, %v2979, 0.0
        %v3051 = vsel %vm1996, %v2980, 0
        %v3054 = vsel %vm1996, %v2981, 0
        %v3057 = vsel %vm1996, %v2982, 0
        %v3060 = vsel %vm1996, %v2983, 0
        %v3063 = vsel %vm1996, %v2984, 0
        %v3066 = vsel %vm1996, %v2985, 0
        %v3069 = vsel %vm1996, %v2986, 0
        %vm3071 = vcmask 1044480
        %v3073 = vsel %vm3071, %v543, 0
        %v3076 = vsel %vm3071, %v544, 0
        %3078 = vmatprep.subr.mxu0 %v542
        %3079 = vmatpush1.msra.mxu0 %v541
        %3080 = vmatprep.subr.mxu0 %v3076
        %3081 = vmatpush1.msra.mxu0 %v3073
        %3082 = vmatprep.subr.mxu0 0.0
        %3083 = vmatpush1.msra.mxu0 0.0
        %3084 = vmatprep.subr.mxu0 0.0
        %3085 = vmatpush1.msra.mxu0 0.0
        %3086 = vmatprep.subr.mxu0 0.0
        %3087 = vmatpush1.msra.mxu0 0.0
        %3088 = vmatprep.subr.mxu0 0.0
        %3089 = vmatpush1.msra.mxu0 0.0
        %3090 = vmatprep.subr.mxu0 0.0
        %3091 = vmatpush1.msra.mxu0 0.0
        %3092 = vmatprep.subr.mxu0 0.0
        %3093 = vmatpush1.msra.mxu0 0.0
        %3094 = vmatprep.subr.mxu0 0.0
        %3095 = vmatpush1.msra.mxu0 0.0
        %3096 = vmatprep.subr.mxu0 0.0
        %3097 = vmatpush1.msra.mxu0 0.0
        %3098 = vmatprep.subr.mxu0 0.0
        %3099 = vmatpush1.msra.mxu0 0.0
        %3100 = vmatprep.subr.mxu0 0.0
        %3101 = vmatpush1.msra.mxu0 0.0
        %3102 = vmatprep.subr.mxu0 0.0
        %3103 = vmatpush1.msra.mxu0 0.0
        %3104 = vmatprep.subr.mxu0 0.0
        %3105 = vmatpush1.msra.mxu0 0.0
        %3106 = vmatprep.subr.mxu0 0.0
        %3107 = vmatpush1.msra.mxu0 0.0
        %3108 = vmatprep.subr.mxu0 0.0
        %3109 = vmatpush1.msra.mxu0 0.0
        %3110 = vmatprep.subr.mxu0 0.0
        %3111 = vmatpush1.msra.mxu0 0.0
        %3112 = vmatprep.subr.mxu0 0.0
        %3113 = vmatpush1.msra.mxu0 0.0
        %3114 = vmatprep.subr.mxu0 0.0
        %3115 = vmatpush1.msra.mxu0 0.0
        %3116 = vmatprep.subr.mxu0 0.0
        %3117 = vmatpush1.msra.mxu0 0.0
        %3118 = vmatprep.subr.mxu0 0.0
        %3119 = vmatpush1.msra.mxu0 0.0
        %3120 = vmatprep.subr.mxu0 0.0
        %3121 = vmatpush1.msra.mxu0 0.0
        %3122 = vmatprep.subr.mxu0 0.0
        %3123 = vmatpush1.msra.mxu0 0.0
        %3124 = vmatprep.subr.mxu0 0.0
        %3125 = vmatpush1.msra.mxu0 0.0
        %3126 = vmatprep.subr.mxu0 0.0
        %3127 = vmatpush1.msra.mxu0 0.0
        %3128 = vmatprep.subr.mxu0 0.0
        %3129 = vmatpush1.msra.mxu0 0.0
        %3130 = vmatprep.subr.mxu0 0.0
        %3131 = vmatpush1.msra.mxu0 0.0
        %3132 = vmatprep.subr.mxu0 0.0
        %3133 = vmatpush1.msra.mxu0 0.0
        %3134 = vmatprep.subr.mxu0 0.0
        %3135 = vmatpush1.msra.mxu0 0.0
        %3136 = vmatprep.subr.mxu0 0.0
        %3137 = vmatpush1.msra.mxu0 0.0
        %3138 = vmatprep.subr.mxu0 0.0
        %3139 = vmatpush1.msra.mxu0 0.0
        %3140 = vmatprep.subr.mxu0 0.0
        %3141 = vmatpush1.msra.mxu0 0.0
        %3142 = vmatprep.mubr.f32.mxu0 0.0
        %3143 = vmatmul.mubr.f32.gmra.mrb[0].mxu0 %v3051
        %v3144 = vpop.f32.mrb[0].mxu0
        %v3145 = vadd.f32 0.0, %v3144
        %v3146 = vpop.f32.mrb[0].mxu0
        %v3147 = vadd.f32 0.0, %v3146
        %3148 = vmatprep.mubr.f32.mxu0 0.0
        %3149 = vmatmul.mubr.f32.gmra.mrb[0].mxu0 %v3054
        %v3150 = vpop.f32.mrb[0].mxu0
        %v3151 = vadd.f32 0.0, %v3150
        %v3152 = vpop.f32.mrb[0].mxu0
        %v3153 = vadd.f32 0.0, %v3152
        %3154 = vmatprep.mubr.f32.mxu0 0.0
        %3155 = vmatmul.mubr.f32.gmra.mrb[0].mxu0 %v3057
        %v3156 = vpop.f32.mrb[0].mxu0
        %v3157 = vadd.f32 0.0, %v3156
        %v3158 = vpop.f32.mrb[0].mxu0
        %v3159 = vadd.f32 0.0, %v3158
        %3160 = vmatprep.mubr.f32.mxu0 0.0
        %3161 = vmatmul.mubr.f32.gmra.mrb[0].mxu0 %v3060
        %v3162 = vpop.f32.mrb[0].mxu0
        %v3163 = vadd.f32 0.0, %v3162
        %v3164 = vpop.f32.mrb[0].mxu0
        %v3165 = vadd.f32 0.0, %v3164
        %3166 = vmatprep.mubr.f32.mxu0 0.0
        %3167 = vmatmul.mubr.f32.gmra.mrb[0].mxu0 %v3063
        %v3168 = vpop.f32.mrb[0].mxu0
        %v3169 = vadd.f32 0.0, %v3168
        %v3170 = vpop.f32.mrb[0].mxu0
        %v3171 = vadd.f32 0.0, %v3170
        %3172 = vmatprep.mubr.f32.mxu0 0.0
        %3173 = vmatmul.mubr.f32.gmra.mrb[0].mxu0 %v3066
        %v3174 = vpop.f32.mrb[0].mxu0
        %v3175 = vadd.f32 0.0, %v3174
        %v3176 = vpop.f32.mrb[0].mxu0
        %v3177 = vadd.f32 0.0, %v3176
        %3178 = vmatprep.mubr.f32.mxu0 0.0
        %3179 = vmatmul.mubr.f32.gmra.mrb[0].mxu0 %v3069
        %v3180 = vpop.f32.mrb[0].mxu0
        %v3181 = vadd.f32 0.0, %v3180
        %v3182 = vpop.f32.mrb[0].mxu0
        %v3183 = vadd.f32 0.0, %v3182
        %3184 = vdwg.mxu0
        %v3186 = vsel %vm1996, %v2987, 0
        %v3189 = vsel %vm1996, %v2988, 0
        %v3192 = vsel %vm1996, %v2989, 0
        %v3195 = vsel %vm1996, %v2990, 0
        %v3198 = vsel %vm1996, %v2991, 0
        %v3201 = vsel %vm1996, %v2992, 0
        %v3204 = vsel %vm1996, %v2993, 0
        %v3207 = vsel %vm3071, %v547, 0
        %v3210 = vsel %vm3071, %v548, 0
        %3212 = vmatprep.subr.mxu0 %v546
        %3213 = vmatpush1.msra.mxu0 %v545
        %3214 = vmatprep.subr.mxu0 %v3210
        %3215 = vmatpush1.msra.mxu0 %v3207
        %3216 = vmatprep.subr.mxu0 0.0
        %3217 = vmatpush1.msra.mxu0 0.0
        %3218 = vmatprep.subr.mxu0 0.0
        %3219 = vmatpush1.msra.mxu0 0.0
        %3220 = vmatprep.subr.mxu0 0.0
        %3221 = vmatpush1.msra.mxu0 0.0
        %3222 = vmatprep.subr.mxu0 0.0
        %3223 = vmatpush1.msra.mxu0 0.0
        %3224 = vmatprep.subr.mxu0 0.0
        %3225 = vmatpush1.msra.mxu0 0.0
        %3226 = vmatprep.subr.mxu0 0.0
        %3227 = vmatpush1.msra.mxu0 0.0
        %3228 = vmatprep.subr.mxu0 0.0
        %3229 = vmatpush1.msra.mxu0 0.0
        %3230 = vmatprep.subr.mxu0 0.0
        %3231 = vmatpush1.msra.mxu0 0.0
        %3232 = vmatprep.subr.mxu0 0.0
        %3233 = vmatpush1.msra.mxu0 0.0
        %3234 = vmatprep.subr.mxu0 0.0
        %3235 = vmatpush1.msra.mxu0 0.0
        %3236 = vmatprep.subr.mxu0 0.0
        %3237 = vmatpush1.msra.mxu0 0.0
        %3238 = vmatprep.subr.mxu0 0.0
        %3239 = vmatpush1.msra.mxu0 0.0
        %3240 = vmatprep.subr.mxu0 0.0
        %3241 = vmatpush1.msra.mxu0 0.0
        %3242 = vmatprep.subr.mxu0 0.0
        %3243 = vmatpush1.msra.mxu0 0.0
        %3244 = vmatprep.subr.mxu0 0.0
        %3245 = vmatpush1.msra.mxu0 0.0
        %3246 = vmatprep.subr.mxu0 0.0
        %3247 = vmatpush1.msra.mxu0 0.0
        %3248 = vmatprep.subr.mxu0 0.0
        %3249 = vmatpush1.msra.mxu0 0.0
        %3250 = vmatprep.subr.mxu0 0.0
        %3251 = vmatpush1.msra.mxu0 0.0
        %3252 = vmatprep.subr.mxu0 0.0
        %3253 = vmatpush1.msra.mxu0 0.0
        %3254 = vmatprep.subr.mxu0 0.0
        %3255 = vmatpush1.msra.mxu0 0.0
        %3256 = vmatprep.subr.mxu0 0.0
        %3257 = vmatpush1.msra.mxu0 0.0
        %3258 = vmatprep.subr.mxu0 0.0
        %3259 = vmatpush1.msra.mxu0 0.0
        %3260 = vmatprep.subr.mxu0 0.0
        %3261 = vmatpush1.msra.mxu0 0.0
        %3262 = vmatprep.subr.mxu0 0.0
        %3263 = vmatpush1.msra.mxu0 0.0
        %3264 = vmatprep.subr.mxu0 0.0
        %3265 = vmatpush1.msra.mxu0 0.0
        %3266 = vmatprep.subr.mxu0 0.0
        %3267 = vmatpush1.msra.mxu0 0.0
        %3268 = vmatprep.subr.mxu0 0.0
        %3269 = vmatpush1.msra.mxu0 0.0
        %3270 = vmatprep.subr.mxu0 0.0
        %3271 = vmatpush1.msra.mxu0 0.0
        %3272 = vmatprep.subr.mxu0 0.0
        %3273 = vmatpush1.msra.mxu0 0.0
        %3274 = vmatprep.subr.mxu0 0.0
        %3275 = vmatpush1.msra.mxu0 0.0
        %3276 = vmatprep.mubr.f32.mxu0 0.0
        %3277 = vmatmul.mubr.f32.gmra.mrb[0].mxu0 %v3186
        %v3278 = vpop.f32.mrb[0].mxu0
        %v3279 = vadd.f32 0.0, %v3278
        %v3280 = vpop.f32.mrb[0].mxu0
        %v3281 = vadd.f32 0.0, %v3280
        %3282 = vmatprep.mubr.f32.mxu0 0.0
        %3283 = vmatmul.mubr.f32.gmra.mrb[0].mxu0 %v3189
        %v3284 = vpop.f32.mrb[0].mxu0
        %v3285 = vadd.f32 0.0, %v3284
        %v3286 = vpop.f32.mrb[0].mxu0
        %v3287 = vadd.f32 0.0, %v3286
        %3288 = vmatprep.mubr.f32.mxu0 0.0
        %3289 = vmatmul.mubr.f32.gmra.mrb[0].mxu0 %v3192
        %v3290 = vpop.f32.mrb[0].mxu0
        %v3291 = vadd.f32 0.0, %v3290
        %v3292 = vpop.f32.mrb[0].mxu0
        %v3293 = vadd.f32 0.0, %v3292
        %3294 = vmatprep.mubr.f32.mxu0 0.0
        %3295 = vmatmul.mubr.f32.gmra.mrb[0].mxu0 %v3195
        %v3296 = vpop.f32.mrb[0].mxu0
        %v3297 = vadd.f32 0.0, %v3296
        %v3298 = vpop.f32.mrb[0].mxu0
        %v3299 = vadd.f32 0.0, %v3298
        %3300 = vmatprep.mubr.f32.mxu0 0.0
        %3301 = vmatmul.mubr.f32.gmra.mrb[0].mxu0 %v3198
        %v3302 = vpop.f32.mrb[0].mxu0
        %v3303 = vadd.f32 0.0, %v3302
        %v3304 = vpop.f32.mrb[0].mxu0
        %v3305 = vadd.f32 0.0, %v3304
        %3306 = vmatprep.mubr.f32.mxu0 0.0
        %3307 = vmatmul.mubr.f32.gmra.mrb[0].mxu0 %v3201
        %v3308 = vpop.f32.mrb[0].mxu0
        %v3309 = vadd.f32 0.0, %v3308
        %v3310 = vpop.f32.mrb[0].mxu0
        %v3311 = vadd.f32 0.0, %v3310
        %3312 = vmatprep.mubr.f32.mxu0 0.0
        %3313 = vmatmul.mubr.f32.gmra.mrb[0].mxu0 %v3204
        %v3314 = vpop.f32.mrb[0].mxu0
        %v3315 = vadd.f32 0.0, %v3314
        %v3316 = vpop.f32.mrb[0].mxu0
        %v3317 = vadd.f32 0.0, %v3316
        %3318 = vdwg.mxu0
        %v3320 = vsel %vm1996, %v2994, 0
        %v3323 = vsel %vm1996, %v2995, 0
        %v3326 = vsel %vm1996, %v2996, 0
        %v3329 = vsel %vm1996, %v2997, 0
        %v3332 = vsel %vm1996, %v2998, 0
        %v3335 = vsel %vm1996, %v2999, 0
        %v3338 = vsel %vm1996, %v3000, 0
        %v3341 = vsel %vm3071, %v551, 0
        %v3344 = vsel %vm3071, %v552, 0
        %3346 = vmatprep.subr.mxu0 %v550
        %3347 = vmatpush1.msra.mxu0 %v549
        %3348 = vmatprep.subr.mxu0 %v3344
        %3349 = vmatpush1.msra.mxu0 %v3341
        %3350 = vmatprep.subr.mxu0 0.0
        %3351 = vmatpush1.msra.mxu0 0.0
        %3352 = vmatprep.subr.mxu0 0.0
        %3353 = vmatpush1.msra.mxu0 0.0
        %3354 = vmatprep.subr.mxu0 0.0
        %3355 = vmatpush1.msra.mxu0 0.0
        %3356 = vmatprep.subr.mxu0 0.0
        %3357 = vmatpush1.msra.mxu0 0.0
        %3358 = vmatprep.subr.mxu0 0.0
        %3359 = vmatpush1.msra.mxu0 0.0
        %3360 = vmatprep.subr.mxu0 0.0
        %3361 = vmatpush1.msra.mxu0 0.0
        %3362 = vmatprep.subr.mxu0 0.0
        %3363 = vmatpush1.msra.mxu0 0.0
        %3364 = vmatprep.subr.mxu0 0.0
        %3365 = vmatpush1.msra.mxu0 0.0
        %3366 = vmatprep.subr.mxu0 0.0
        %3367 = vmatpush1.msra.mxu0 0.0
        %3368 = vmatprep.subr.mxu0 0.0
        %3369 = vmatpush1.msra.mxu0 0.0
        %3370 = vmatprep.subr.mxu0 0.0
        %3371 = vmatpush1.msra.mxu0 0.0
        %3372 = vmatprep.subr.mxu0 0.0
        %3373 = vmatpush1.msra.mxu0 0.0
        %3374 = vmatprep.subr.mxu0 0.0
        %3375 = vmatpush1.msra.mxu0 0.0
        %3376 = vmatprep.subr.mxu0 0.0
        %3377 = vmatpush1.msra.mxu0 0.0
        %3378 = vmatprep.subr.mxu0 0.0
        %3379 = vmatpush1.msra.mxu0 0.0
        %3380 = vmatprep.subr.mxu0 0.0
        %3381 = vmatpush1.msra.mxu0 0.0
        %3382 = vmatprep.subr.mxu0 0.0
        %3383 = vmatpush1.msra.mxu0 0.0
        %3384 = vmatprep.subr.mxu0 0.0
        %3385 = vmatpush1.msra.mxu0 0.0
        %3386 = vmatprep.subr.mxu0 0.0
        %3387 = vmatpush1.msra.mxu0 0.0
        %3388 = vmatprep.subr.mxu0 0.0
        %3389 = vmatpush1.msra.mxu0 0.0
        %3390 = vmatprep.subr.mxu0 0.0
        %3391 = vmatpush1.msra.mxu0 0.0
        %3392 = vmatprep.subr.mxu0 0.0
        %3393 = vmatpush1.msra.mxu0 0.0
        %3394 = vmatprep.subr.mxu0 0.0
        %3395 = vmatpush1.msra.mxu0 0.0
        %3396 = vmatprep.subr.mxu0 0.0
        %3397 = vmatpush1.msra.mxu0 0.0
        %3398 = vmatprep.subr.mxu0 0.0
        %3399 = vmatpush1.msra.mxu0 0.0
        %3400 = vmatprep.subr.mxu0 0.0
        %3401 = vmatpush1.msra.mxu0 0.0
        %3402 = vmatprep.subr.mxu0 0.0
        %3403 = vmatpush1.msra.mxu0 0.0
        %3404 = vmatprep.subr.mxu0 0.0
        %3405 = vmatpush1.msra.mxu0 0.0
        %3406 = vmatprep.subr.mxu0 0.0
        %3407 = vmatpush1.msra.mxu0 0.0
        %3408 = vmatprep.subr.mxu0 0.0
        %3409 = vmatpush1.msra.mxu0 0.0
        %3410 = vmatprep.mubr.f32.mxu0 0.0
        %3411 = vmatmul.mubr.f32.gmra.mrb[0].mxu0 %v3320
        %v3412 = vpop.f32.mrb[0].mxu0
        %v3413 = vadd.f32 0.0, %v3412
        %v3414 = vpop.f32.mrb[0].mxu0
        %v3415 = vadd.f32 0.0, %v3414
        %3416 = vmatprep.mubr.f32.mxu0 0.0
        %3417 = vmatmul.mubr.f32.gmra.mrb[0].mxu0 %v3323
        %v3418 = vpop.f32.mrb[0].mxu0
        %v3419 = vadd.f32 0.0, %v3418
        %v3420 = vpop.f32.mrb[0].mxu0
        %v3421 = vadd.f32 0.0, %v3420
        %3422 = vmatprep.mubr.f32.mxu0 0.0
        %3423 = vmatmul.mubr.f32.gmra.mrb[0].mxu0 %v3326
        %v3424 = vpop.f32.mrb[0].mxu0
        %v3425 = vadd.f32 0.0, %v3424
        %v3426 = vpop.f32.mrb[0].mxu0
        %v3427 = vadd.f32 0.0, %v3426
        %3428 = vmatprep.mubr.f32.mxu0 0.0
        %3429 = vmatmul.mubr.f32.gmra.mrb[0].mxu0 %v3329
        %v3430 = vpop.f32.mrb[0].mxu0
        %v3431 = vadd.f32 0.0, %v3430
        %v3432 = vpop.f32.mrb[0].mxu0
        %v3433 = vadd.f32 0.0, %v3432
        %3434 = vmatprep.mubr.f32.mxu0 0.0
        %3435 = vmatmul.mubr.f32.gmra.mrb[0].mxu0 %v3332
        %v3436 = vpop.f32.mrb[0].mxu0
        %v3437 = vadd.f32 0.0, %v3436
        %v3438 = vpop.f32.mrb[0].mxu0
        %v3439 = vadd.f32 0.0, %v3438
        %3440 = vmatprep.mubr.f32.mxu0 0.0
        %3441 = vmatmul.mubr.f32.gmra.mrb[0].mxu0 %v3335
        %v3442 = vpop.f32.mrb[0].mxu0
        %v3443 = vadd.f32 0.0, %v3442
        %v3444 = vpop.f32.mrb[0].mxu0
        %v3445 = vadd.f32 0.0, %v3444
        %3446 = vmatprep.mubr.f32.mxu0 0.0
        %3447 = vmatmul.mubr.f32.gmra.mrb[0].mxu0 %v3338
        %v3448 = vpop.f32.mrb[0].mxu0
        %v3449 = vadd.f32 0.0, %v3448
        %v3450 = vpop.f32.mrb[0].mxu0
        %v3451 = vadd.f32 0.0, %v3450
        %3452 = vdwg.mxu0
        %v3454 = vsel %vm1996, %v3001, 0
        %v3457 = vsel %vm1996, %v3002, 0
        %v3460 = vsel %vm1996, %v3003, 0
        %v3463 = vsel %vm1996, %v3004, 0
        %v3466 = vsel %vm1996, %v3005, 0
        %v3469 = vsel %vm1996, %v3006, 0
        %v3472 = vsel %vm1996, %v3007, 0
        %v3475 = vsel %vm3071, %v555, 0
        %v3478 = vsel %vm3071, %v556, 0
        %3480 = vmatprep.subr.mxu0 %v554
        %3481 = vmatpush1.msra.mxu0 %v553
        %3482 = vmatprep.subr.mxu0 %v3478
        %3483 = vmatpush1.msra.mxu0 %v3475
        %3484 = vmatprep.subr.mxu0 0.0
        %3485 = vmatpush1.msra.mxu0 0.0
        %3486 = vmatprep.subr.mxu0 0.0
        %3487 = vmatpush1.msra.mxu0 0.0
        %3488 = vmatprep.subr.mxu0 0.0
        %3489 = vmatpush1.msra.mxu0 0.0
        %3490 = vmatprep.subr.mxu0 0.0
        %3491 = vmatpush1.msra.mxu0 0.0
        %3492 = vmatprep.subr.mxu0 0.0
        %3493 = vmatpush1.msra.mxu0 0.0
        %3494 = vmatprep.subr.mxu0 0.0
        %3495 = vmatpush1.msra.mxu0 0.0
        %3496 = vmatprep.subr.mxu0 0.0
        %3497 = vmatpush1.msra.mxu0 0.0
        %3498 = vmatprep.subr.mxu0 0.0
        %3499 = vmatpush1.msra.mxu0 0.0
        %3500 = vmatprep.subr.mxu0 0.0
        %3501 = vmatpush1.msra.mxu0 0.0
        %3502 = vmatprep.subr.mxu0 0.0
        %3503 = vmatpush1.msra.mxu0 0.0
        %3504 = vmatprep.subr.mxu0 0.0
        %3505 = vmatpush1.msra.mxu0 0.0
        %3506 = vmatprep.subr.mxu0 0.0
        %3507 = vmatpush1.msra.mxu0 0.0
        %3508 = vmatprep.subr.mxu0 0.0
        %3509 = vmatpush1.msra.mxu0 0.0
        %3510 = vmatprep.subr.mxu0 0.0
        %3511 = vmatpush1.msra.mxu0 0.0
        %3512 = vmatprep.subr.mxu0 0.0
        %3513 = vmatpush1.msra.mxu0 0.0
        %3514 = vmatprep.subr.mxu0 0.0
        %3515 = vmatpush1.msra.mxu0 0.0
        %3516 = vmatprep.subr.mxu0 0.0
        %3517 = vmatpush1.msra.mxu0 0.0
        %3518 = vmatprep.subr.mxu0 0.0
        %3519 = vmatpush1.msra.mxu0 0.0
        %3520 = vmatprep.subr.mxu0 0.0
        %3521 = vmatpush1.msra.mxu0 0.0
        %3522 = vmatprep.subr.mxu0 0.0
        %3523 = vmatpush1.msra.mxu0 0.0
        %3524 = vmatprep.subr.mxu0 0.0
        %3525 = vmatpush1.msra.mxu0 0.0
        %3526 = vmatprep.subr.mxu0 0.0
        %3527 = vmatpush1.msra.mxu0 0.0
        %3528 = vmatprep.subr.mxu0 0.0
        %3529 = vmatpush1.msra.mxu0 0.0
        %3530 = vmatprep.subr.mxu0 0.0
        %3531 = vmatpush1.msra.mxu0 0.0
        %3532 = vmatprep.subr.mxu0 0.0
        %3533 = vmatpush1.msra.mxu0 0.0
        %3534 = vmatprep.subr.mxu0 0.0
        %3535 = vmatpush1.msra.mxu0 0.0
        %3536 = vmatprep.subr.mxu0 0.0
        %3537 = vmatpush1.msra.mxu0 0.0
        %3538 = vmatprep.subr.mxu0 0.0
        %3539 = vmatpush1.msra.mxu0 0.0
        %3540 = vmatprep.subr.mxu0 0.0
        %3541 = vmatpush1.msra.mxu0 0.0
        %3542 = vmatprep.subr.mxu0 0.0
        %3543 = vmatpush1.msra.mxu0 0.0
        %3544 = vmatprep.mubr.f32.mxu0 0.0
        %3545 = vmatmul.mubr.f32.gmra.mrb[0].mxu0 %v3454
        %v3546 = vpop.f32.mrb[0].mxu0
        %v3547 = vadd.f32 0.0, %v3546
        %v3548 = vpop.f32.mrb[0].mxu0
        %v3549 = vadd.f32 0.0, %v3548
        %3550 = vmatprep.mubr.f32.mxu0 0.0
        %3551 = vmatmul.mubr.f32.gmra.mrb[0].mxu0 %v3457
        %v3552 = vpop.f32.mrb[0].mxu0
        %v3553 = vadd.f32 0.0, %v3552
        %v3554 = vpop.f32.mrb[0].mxu0
        %v3555 = vadd.f32 0.0, %v3554
        %3556 = vmatprep.mubr.f32.mxu0 0.0
        %3557 = vmatmul.mubr.f32.gmra.mrb[0].mxu0 %v3460
        %v3558 = vpop.f32.mrb[0].mxu0
        %v3559 = vadd.f32 0.0, %v3558
        %v3560 = vpop.f32.mrb[0].mxu0
        %v3561 = vadd.f32 0.0, %v3560
        %3562 = vmatprep.mubr.f32.mxu0 0.0
        %3563 = vmatmul.mubr.f32.gmra.mrb[0].mxu0 %v3463
        %v3564 = vpop.f32.mrb[0].mxu0
        %v3565 = vadd.f32 0.0, %v3564
        %v3566 = vpop.f32.mrb[0].mxu0
        %v3567 = vadd.f32 0.0, %v3566
        %3568 = vmatprep.mubr.f32.mxu0 0.0
        %3569 = vmatmul.mubr.f32.gmra.mrb[0].mxu0 %v3466
        %v3570 = vpop.f32.mrb[0].mxu0
        %v3571 = vadd.f32 0.0, %v3570
        %v3572 = vpop.f32.mrb[0].mxu0
        %v3573 = vadd.f32 0.0, %v3572
        %3574 = vmatprep.mubr.f32.mxu0 0.0
        %3575 = vmatmul.mubr.f32.gmra.mrb[0].mxu0 %v3469
        %v3576 = vpop.f32.mrb[0].mxu0
        %v3577 = vadd.f32 0.0, %v3576
        %v3578 = vpop.f32.mrb[0].mxu0
        %v3579 = vadd.f32 0.0, %v3578
        %3580 = vmatprep.mubr.f32.mxu0 0.0
        %3581 = vmatmul.mubr.f32.gmra.mrb[0].mxu0 %v3472
        %v3582 = vpop.f32.mrb[0].mxu0
        %v3583 = vadd.f32 0.0, %v3582
        %v3584 = vpop.f32.mrb[0].mxu0
        %v3585 = vadd.f32 0.0, %v3584
        %3586 = vdwg.mxu0
        %v3588 = vsel %vm1996, %v3008, 0
        %v3591 = vsel %vm1996, %v3009, 0
        %v3594 = vsel %vm1996, %v3010, 0
        %v3597 = vsel %vm1996, %v3011, 0
        %v3600 = vsel %vm1996, %v3012, 0
        %v3603 = vsel %vm1996, %v3013, 0
        %v3606 = vsel %vm1996, %v3014, 0
        %v3609 = vsel %vm3071, %v559, 0
        %v3612 = vsel %vm3071, %v560, 0
        %3614 = vmatprep.subr.mxu0 %v558
        %3615 = vmatpush1.msra.mxu0 %v557
        %3616 = vmatprep.subr.mxu0 %v3612
        %3617 = vmatpush1.msra.mxu0 %v3609
        %3618 = vmatprep.subr.mxu0 0.0
        %3619 = vmatpush1.msra.mxu0 0.0
        %3620 = vmatprep.subr.mxu0 0.0
        %3621 = vmatpush1.msra.mxu0 0.0
        %3622 = vmatprep.subr.mxu0 0.0
        %3623 = vmatpush1.msra.mxu0 0.0
        %3624 = vmatprep.subr.mxu0 0.0
        %3625 = vmatpush1.msra.mxu0 0.0
        %3626 = vmatprep.subr.mxu0 0.0
        %3627 = vmatpush1.msra.mxu0 0.0
        %3628 = vmatprep.subr.mxu0 0.0
        %3629 = vmatpush1.msra.mxu0 0.0
        %3630 = vmatprep.subr.mxu0 0.0
        %3631 = vmatpush1.msra.mxu0 0.0
        %3632 = vmatprep.subr.mxu0 0.0
        %3633 = vmatpush1.msra.mxu0 0.0
        %3634 = vmatprep.subr.mxu0 0.0
        %3635 = vmatpush1.msra.mxu0 0.0
        %3636 = vmatprep.subr.mxu0 0.0
        %3637 = vmatpush1.msra.mxu0 0.0
        %3638 = vmatprep.subr.mxu0 0.0
        %3639 = vmatpush1.msra.mxu0 0.0
        %3640 = vmatprep.subr.mxu0 0.0
        %3641 = vmatpush1.msra.mxu0 0.0
        %3642 = vmatprep.subr.mxu0 0.0
        %3643 = vmatpush1.msra.mxu0 0.0
        %3644 = vmatprep.subr.mxu0 0.0
        %3645 = vmatpush1.msra.mxu0 0.0
        %3646 = vmatprep.subr.mxu0 0.0
        %3647 = vmatpush1.msra.mxu0 0.0
        %3648 = vmatprep.subr.mxu0 0.0
        %3649 = vmatpush1.msra.mxu0 0.0
        %3650 = vmatprep.subr.mxu0 0.0
        %3651 = vmatpush1.msra.mxu0 0.0
        %3652 = vmatprep.subr.mxu0 0.0
        %3653 = vmatpush1.msra.mxu0 0.0
        %3654 = vmatprep.subr.mxu0 0.0
        %3655 = vmatpush1.msra.mxu0 0.0
        %3656 = vmatprep.subr.mxu0 0.0
        %3657 = vmatpush1.msra.mxu0 0.0
        %3658 = vmatprep.subr.mxu0 0.0
        %3659 = vmatpush1.msra.mxu0 0.0
        %3660 = vmatprep.subr.mxu0 0.0
        %3661 = vmatpush1.msra.mxu0 0.0
        %3662 = vmatprep.subr.mxu0 0.0
        %3663 = vmatpush1.msra.mxu0 0.0
        %3664 = vmatprep.subr.mxu0 0.0
        %3665 = vmatpush1.msra.mxu0 0.0
        %3666 = vmatprep.subr.mxu0 0.0
        %3667 = vmatpush1.msra.mxu0 0.0
        %3668 = vmatprep.subr.mxu0 0.0
        %3669 = vmatpush1.msra.mxu0 0.0
        %3670 = vmatprep.subr.mxu0 0.0
        %3671 = vmatpush1.msra.mxu0 0.0
        %3672 = vmatprep.subr.mxu0 0.0
        %3673 = vmatpush1.msra.mxu0 0.0
        %3674 = vmatprep.subr.mxu0 0.0
        %3675 = vmatpush1.msra.mxu0 0.0
        %3676 = vmatprep.subr.mxu0 0.0
        %3677 = vmatpush1.msra.mxu0 0.0
        %3678 = vmatprep.mubr.f32.mxu0 0.0
        %3679 = vmatmul.mubr.f32.gmra.mrb[0].mxu0 %v3588
        %v3680 = vpop.f32.mrb[0].mxu0
        %v3681 = vadd.f32 0.0, %v3680
        %v3682 = vpop.f32.mrb[0].mxu0
        %v3683 = vadd.f32 0.0, %v3682
        %3684 = vmatprep.mubr.f32.mxu0 0.0
        %3685 = vmatmul.mubr.f32.gmra.mrb[0].mxu0 %v3591
        %v3686 = vpop.f32.mrb[0].mxu0
        %v3687 = vadd.f32 0.0, %v3686
        %v3688 = vpop.f32.mrb[0].mxu0
        %v3689 = vadd.f32 0.0, %v3688
        %3690 = vmatprep.mubr.f32.mxu0 0.0
        %3691 = vmatmul.mubr.f32.gmra.mrb[0].mxu0 %v3594
        %v3692 = vpop.f32.mrb[0].mxu0
        %v3693 = vadd.f32 0.0, %v3692
        %v3694 = vpop.f32.mrb[0].mxu0
        %v3695 = vadd.f32 0.0, %v3694
        %3696 = vmatprep.mubr.f32.mxu0 0.0
        %3697 = vmatmul.mubr.f32.gmra.mrb[0].mxu0 %v3597
        %v3698 = vpop.f32.mrb[0].mxu0
        %v3699 = vadd.f32 0.0, %v3698
        %v3700 = vpop.f32.mrb[0].mxu0
        %v3701 = vadd.f32 0.0, %v3700
        %3702 = vmatprep.mubr.f32.mxu0 0.0
        %3703 = vmatmul.mubr.f32.gmra.mrb[0].mxu0 %v3600
        %v3704 = vpop.f32.mrb[0].mxu0
        %v3705 = vadd.f32 0.0, %v3704
        %v3706 = vpop.f32.mrb[0].mxu0
        %v3707 = vadd.f32 0.0, %v3706
        %3708 = vmatprep.mubr.f32.mxu0 0.0
        %3709 = vmatmul.mubr.f32.gmra.mrb[0].mxu0 %v3603
        %v3710 = vpop.f32.mrb[0].mxu0
        %v3711 = vadd.f32 0.0, %v3710
        %v3712 = vpop.f32.mrb[0].mxu0
        %v3713 = vadd.f32 0.0, %v3712
        %3714 = vmatprep.mubr.f32.mxu0 0.0
        %3715 = vmatmul.mubr.f32.gmra.mrb[0].mxu0 %v3606
        %v3716 = vpop.f32.mrb[0].mxu0
        %v3717 = vadd.f32 0.0, %v3716
        %v3718 = vpop.f32.mrb[0].mxu0
        %v3719 = vadd.f32 0.0, %v3718
        %3720 = vdwg.mxu0
        %v3722 = vsel %vm1996, %v3015, 0
        %v3725 = vsel %vm1996, %v3016, 0
        %v3728 = vsel %vm1996, %v3017, 0
        %v3731 = vsel %vm1996, %v3018, 0
        %v3734 = vsel %vm1996, %v3019, 0
        %v3737 = vsel %vm1996, %v3020, 0
        %v3740 = vsel %vm1996, %v3021, 0
        %v3743 = vsel %vm3071, %v563, 0
        %v3746 = vsel %vm3071, %v564, 0
        %3748 = vmatprep.subr.mxu0 %v562
        %3749 = vmatpush1.msra.mxu0 %v561
        %3750 = vmatprep.subr.mxu0 %v3746
        %3751 = vmatpush1.msra.mxu0 %v3743
        %3752 = vmatprep.subr.mxu0 0.0
        %3753 = vmatpush1.msra.mxu0 0.0
        %3754 = vmatprep.subr.mxu0 0.0
        %3755 = vmatpush1.msra.mxu0 0.0
        %3756 = vmatprep.subr.mxu0 0.0
        %3757 = vmatpush1.msra.mxu0 0.0
        %3758 = vmatprep.subr.mxu0 0.0
        %3759 = vmatpush1.msra.mxu0 0.0
        %3760 = vmatprep.subr.mxu0 0.0
        %3761 = vmatpush1.msra.mxu0 0.0
        %3762 = vmatprep.subr.mxu0 0.0
        %3763 = vmatpush1.msra.mxu0 0.0
        %3764 = vmatprep.subr.mxu0 0.0
        %3765 = vmatpush1.msra.mxu0 0.0
        %3766 = vmatprep.subr.mxu0 0.0
        %3767 = vmatpush1.msra.mxu0 0.0
        %3768 = vmatprep.subr.mxu0 0.0
        %3769 = vmatpush1.msra.mxu0 0.0
        %3770 = vmatprep.subr.mxu0 0.0
        %3771 = vmatpush1.msra.mxu0 0.0
        %3772 = vmatprep.subr.mxu0 0.0
        %3773 = vmatpush1.msra.mxu0 0.0
        %3774 = vmatprep.subr.mxu0 0.0
        %3775 = vmatpush1.msra.mxu0 0.0
        %3776 = vmatprep.subr.mxu0 0.0
        %3777 = vmatpush1.msra.mxu0 0.0
        %3778 = vmatprep.subr.mxu0 0.0
        %3779 = vmatpush1.msra.mxu0 0.0
        %3780 = vmatprep.subr.mxu0 0.0
        %3781 = vmatpush1.msra.mxu0 0.0
        %3782 = vmatprep.subr.mxu0 0.0
        %3783 = vmatpush1.msra.mxu0 0.0
        %3784 = vmatprep.subr.mxu0 0.0
        %3785 = vmatpush1.msra.mxu0 0.0
        %3786 = vmatprep.subr.mxu0 0.0
        %3787 = vmatpush1.msra.mxu0 0.0
        %3788 = vmatprep.subr.mxu0 0.0
        %3789 = vmatpush1.msra.mxu0 0.0
        %3790 = vmatprep.subr.mxu0 0.0
        %3791 = vmatpush1.msra.mxu0 0.0
        %3792 = vmatprep.subr.mxu0 0.0
        %3793 = vmatpush1.msra.mxu0 0.0
        %3794 = vmatprep.subr.mxu0 0.0
        %3795 = vmatpush1.msra.mxu0 0.0
        %3796 = vmatprep.subr.mxu0 0.0
        %3797 = vmatpush1.msra.mxu0 0.0
        %3798 = vmatprep.subr.mxu0 0.0
        %3799 = vmatpush1.msra.mxu0 0.0
        %3800 = vmatprep.subr.mxu0 0.0
        %3801 = vmatpush1.msra.mxu0 0.0
        %3802 = vmatprep.subr.mxu0 0.0
        %3803 = vmatpush1.msra.mxu0 0.0
        %3804 = vmatprep.subr.mxu0 0.0
        %3805 = vmatpush1.msra.mxu0 0.0
        %3806 = vmatprep.subr.mxu0 0.0
        %3807 = vmatpush1.msra.mxu0 0.0
        %3808 = vmatprep.subr.mxu0 0.0
        %3809 = vmatpush1.msra.mxu0 0.0
        %3810 = vmatprep.subr.mxu0 0.0
        %3811 = vmatpush1.msra.mxu0 0.0
        %3812 = vmatprep.mubr.f32.mxu0 0.0
        %3813 = vmatmul.mubr.f32.gmra.mrb[0].mxu0 %v3722
        %v3814 = vpop.f32.mrb[0].mxu0
        %v3815 = vadd.f32 0.0, %v3814
        %v3816 = vpop.f32.mrb[0].mxu0
        %v3817 = vadd.f32 0.0, %v3816
        %3818 = vmatprep.mubr.f32.mxu0 0.0
        %3819 = vmatmul.mubr.f32.gmra.mrb[0].mxu0 %v3725
        %v3820 = vpop.f32.mrb[0].mxu0
        %v3821 = vadd.f32 0.0, %v3820
        %v3822 = vpop.f32.mrb[0].mxu0
        %v3823 = vadd.f32 0.0, %v3822
        %3824 = vmatprep.mubr.f32.mxu0 0.0
        %3825 = vmatmul.mubr.f32.gmra.mrb[0].mxu0 %v3728
        %v3826 = vpop.f32.mrb[0].mxu0
        %v3827 = vadd.f32 0.0, %v3826
        %v3828 = vpop.f32.mrb[0].mxu0
        %v3829 = vadd.f32 0.0, %v3828
        %3830 = vmatprep.mubr.f32.mxu0 0.0
        %3831 = vmatmul.mubr.f32.gmra.mrb[0].mxu0 %v3731
        %v3832 = vpop.f32.mrb[0].mxu0
        %v3833 = vadd.f32 0.0, %v3832
        %v3834 = vpop.f32.mrb[0].mxu0
        %v3835 = vadd.f32 0.0, %v3834
        %3836 = vmatprep.mubr.f32.mxu0 0.0
        %3837 = vmatmul.mubr.f32.gmra.mrb[0].mxu0 %v3734
        %v3838 = vpop.f32.mrb[0].mxu0
        %v3839 = vadd.f32 0.0, %v3838
        %v3840 = vpop.f32.mrb[0].mxu0
        %v3841 = vadd.f32 0.0, %v3840
        %3842 = vmatprep.mubr.f32.mxu0 0.0
        %3843 = vmatmul.mubr.f32.gmra.mrb[0].mxu0 %v3737
        %v3844 = vpop.f32.mrb[0].mxu0
        %v3845 = vadd.f32 0.0, %v3844
        %v3846 = vpop.f32.mrb[0].mxu0
        %v3847 = vadd.f32 0.0, %v3846
        %3848 = vmatprep.mubr.f32.mxu0 0.0
        %3849 = vmatmul.mubr.f32.gmra.mrb[0].mxu0 %v3740
        %v3850 = vpop.f32.mrb[0].mxu0
        %v3851 = vadd.f32 0.0, %v3850
        %v3852 = vpop.f32.mrb[0].mxu0
        %v3853 = vadd.f32 0.0, %v3852
        %3854 = vdwg.mxu0
        %v3856 = vsel %vm1996, %v3022, 0
        %v3859 = vsel %vm1996, %v3023, 0
        %v3862 = vsel %vm1996, %v3024, 0
        %v3865 = vsel %vm1996, %v3025, 0
        %v3868 = vsel %vm1996, %v3026, 0
        %v3871 = vsel %vm1996, %v3027, 0
        %v3874 = vsel %vm1996, %v3028, 0
        %v3877 = vsel %vm3071, %v567, 0
        %v3880 = vsel %vm3071, %v568, 0
        %3882 = vmatprep.subr.mxu0 %v566
        %3883 = vmatpush1.msra.mxu0 %v565
        %3884 = vmatprep.subr.mxu0 %v3880
        %3885 = vmatpush1.msra.mxu0 %v3877
        %3886 = vmatprep.subr.mxu0 0.0
        %3887 = vmatpush1.msra.mxu0 0.0
        %3888 = vmatprep.subr.mxu0 0.0
        %3889 = vmatpush1.msra.mxu0 0.0
        %3890 = vmatprep.subr.mxu0 0.0
        %3891 = vmatpush1.msra.mxu0 0.0
        %3892 = vmatprep.subr.mxu0 0.0
        %3893 = vmatpush1.msra.mxu0 0.0
        %3894 = vmatprep.subr.mxu0 0.0
        %3895 = vmatpush1.msra.mxu0 0.0
        %3896 = vmatprep.subr.mxu0 0.0
        %3897 = vmatpush1.msra.mxu0 0.0
        %3898 = vmatprep.subr.mxu0 0.0
        %3899 = vmatpush1.msra.mxu0 0.0
        %3900 = vmatprep.subr.mxu0 0.0
        %3901 = vmatpush1.msra.mxu0 0.0
        %3902 = vmatprep.subr.mxu0 0.0
        %3903 = vmatpush1.msra.mxu0 0.0
        %3904 = vmatprep.subr.mxu0 0.0
        %3905 = vmatpush1.msra.mxu0 0.0
        %3906 = vmatprep.subr.mxu0 0.0
        %3907 = vmatpush1.msra.mxu0 0.0
        %3908 = vmatprep.subr.mxu0 0.0
        %3909 = vmatpush1.msra.mxu0 0.0
        %3910 = vmatprep.subr.mxu0 0.0
        %3911 = vmatpush1.msra.mxu0 0.0
        %3912 = vmatprep.subr.mxu0 0.0
        %3913 = vmatpush1.msra.mxu0 0.0
        %3914 = vmatprep.subr.mxu0 0.0
        %3915 = vmatpush1.msra.mxu0 0.0
        %3916 = vmatprep.subr.mxu0 0.0
        %3917 = vmatpush1.msra.mxu0 0.0
        %3918 = vmatprep.subr.mxu0 0.0
        %3919 = vmatpush1.msra.mxu0 0.0
        %3920 = vmatprep.subr.mxu0 0.0
        %3921 = vmatpush1.msra.mxu0 0.0
        %3922 = vmatprep.subr.mxu0 0.0
        %3923 = vmatpush1.msra.mxu0 0.0
        %3924 = vmatprep.subr.mxu0 0.0
        %3925 = vmatpush1.msra.mxu0 0.0
        %3926 = vmatprep.subr.mxu0 0.0
        %3927 = vmatpush1.msra.mxu0 0.0
        %3928 = vmatprep.subr.mxu0 0.0
        %3929 = vmatpush1.msra.mxu0 0.0
        %3930 = vmatprep.subr.mxu0 0.0
        %3931 = vmatpush1.msra.mxu0 0.0
        %3932 = vmatprep.subr.mxu0 0.0
        %3933 = vmatpush1.msra.mxu0 0.0
        %3934 = vmatprep.subr.mxu0 0.0
        %3935 = vmatpush1.msra.mxu0 0.0
        %3936 = vmatprep.subr.mxu0 0.0
        %3937 = vmatpush1.msra.mxu0 0.0
        %3938 = vmatprep.subr.mxu0 0.0
        %3939 = vmatpush1.msra.mxu0 0.0
        %3940 = vmatprep.subr.mxu0 0.0
        %3941 = vmatpush1.msra.mxu0 0.0
        %3942 = vmatprep.subr.mxu0 0.0
        %3943 = vmatpush1.msra.mxu0 0.0
        %3944 = vmatprep.subr.mxu0 0.0
        %3945 = vmatpush1.msra.mxu0 0.0
        %3946 = vmatprep.mubr.f32.mxu0 0.0
        %3947 = vmatmul.mubr.f32.gmra.mrb[0].mxu0 %v3856
        %v3948 = vpop.f32.mrb[0].mxu0
        %v3949 = vadd.f32 0.0, %v3948
        %v3950 = vpop.f32.mrb[0].mxu0
        %v3951 = vadd.f32 0.0, %v3950
        %3952 = vmatprep.mubr.f32.mxu0 0.0
        %3953 = vmatmul.mubr.f32.gmra.mrb[0].mxu0 %v3859
        %v3954 = vpop.f32.mrb[0].mxu0
        %v3955 = vadd.f32 0.0, %v3954
        %v3956 = vpop.f32.mrb[0].mxu0
        %v3957 = vadd.f32 0.0, %v3956
        %3958 = vmatprep.mubr.f32.mxu0 0.0
        %3959 = vmatmul.mubr.f32.gmra.mrb[0].mxu0 %v3862
        %v3960 = vpop.f32.mrb[0].mxu0
        %v3961 = vadd.f32 0.0, %v3960
        %v3962 = vpop.f32.mrb[0].mxu0
        %v3963 = vadd.f32 0.0, %v3962
        %3964 = vmatprep.mubr.f32.mxu0 0.0
        %3965 = vmatmul.mubr.f32.gmra.mrb[0].mxu0 %v3865
        %v3966 = vpop.f32.mrb[0].mxu0
        %v3967 = vadd.f32 0.0, %v3966
        %v3968 = vpop.f32.mrb[0].mxu0
        %v3969 = vadd.f32 0.0, %v3968
        %3970 = vmatprep.mubr.f32.mxu0 0.0
        %3971 = vmatmul.mubr.f32.gmra.mrb[0].mxu0 %v3868
        %v3972 = vpop.f32.mrb[0].mxu0
        %v3973 = vadd.f32 0.0, %v3972
        %v3974 = vpop.f32.mrb[0].mxu0
        %v3975 = vadd.f32 0.0, %v3974
        %3976 = vmatprep.mubr.f32.mxu0 0.0
        %3977 = vmatmul.mubr.f32.gmra.mrb[0].mxu0 %v3871
        %v3978 = vpop.f32.mrb[0].mxu0
        %v3979 = vadd.f32 0.0, %v3978
        %v3980 = vpop.f32.mrb[0].mxu0
        %v3981 = vadd.f32 0.0, %v3980
        %3982 = vmatprep.mubr.f32.mxu0 0.0
        %3983 = vmatmul.mubr.f32.gmra.mrb[0].mxu0 %v3874
        %v3984 = vpop.f32.mrb[0].mxu0
        %v3985 = vadd.f32 0.0, %v3984
        %v3986 = vpop.f32.mrb[0].mxu0
        %v3987 = vadd.f32 0.0, %v3986
        %3988 = vdwg.mxu0
        %v3990 = vsel %vm1996, %v3029, 0
        %v3993 = vsel %vm1996, %v3030, 0
        %v3996 = vsel %vm1996, %v3031, 0
        %v3999 = vsel %vm1996, %v3032, 0
        %v4002 = vsel %vm1996, %v3033, 0
        %v4005 = vsel %vm1996, %v3034, 0
        %v4008 = vsel %vm1996, %v3035, 0
        %v4011 = vsel %vm3071, %v571, 0
        %v4014 = vsel %vm3071, %v572, 0
        %4016 = vmatprep.subr.mxu0 %v570
        %4017 = vmatpush1.msra.mxu0 %v569
        %4018 = vmatprep.subr.mxu0 %v4014
        %4019 = vmatpush1.msra.mxu0 %v4011
        %4020 = vmatprep.subr.mxu0 0.0
        %4021 = vmatpush1.msra.mxu0 0.0
        %4022 = vmatprep.subr.mxu0 0.0
        %4023 = vmatpush1.msra.mxu0 0.0
        %4024 = vmatprep.subr.mxu0 0.0
        %4025 = vmatpush1.msra.mxu0 0.0
        %4026 = vmatprep.subr.mxu0 0.0
        %4027 = vmatpush1.msra.mxu0 0.0
        %4028 = vmatprep.subr.mxu0 0.0
        %4029 = vmatpush1.msra.mxu0 0.0
        %4030 = vmatprep.subr.mxu0 0.0
        %4031 = vmatpush1.msra.mxu0 0.0
        %4032 = vmatprep.subr.mxu0 0.0
        %4033 = vmatpush1.msra.mxu0 0.0
        %4034 = vmatprep.subr.mxu0 0.0
        %4035 = vmatpush1.msra.mxu0 0.0
        %4036 = vmatprep.subr.mxu0 0.0
        %4037 = vmatpush1.msra.mxu0 0.0
        %4038 = vmatprep.subr.mxu0 0.0
        %4039 = vmatpush1.msra.mxu0 0.0
        %4040 = vmatprep.subr.mxu0 0.0
        %4041 = vmatpush1.msra.mxu0 0.0
        %4042 = vmatprep.subr.mxu0 0.0
        %4043 = vmatpush1.msra.mxu0 0.0
        %4044 = vmatprep.subr.mxu0 0.0
        %4045 = vmatpush1.msra.mxu0 0.0
        %4046 = vmatprep.subr.mxu0 0.0
        %4047 = vmatpush1.msra.mxu0 0.0
        %4048 = vmatprep.subr.mxu0 0.0
        %4049 = vmatpush1.msra.mxu0 0.0
        %4050 = vmatprep.subr.mxu0 0.0
        %4051 = vmatpush1.msra.mxu0 0.0
        %4052 = vmatprep.subr.mxu0 0.0
        %4053 = vmatpush1.msra.mxu0 0.0
        %4054 = vmatprep.subr.mxu0 0.0
        %4055 = vmatpush1.msra.mxu0 0.0
        %4056 = vmatprep.subr.mxu0 0.0
        %4057 = vmatpush1.msra.mxu0 0.0
        %4058 = vmatprep.subr.mxu0 0.0
        %4059 = vmatpush1.msra.mxu0 0.0
        %4060 = vmatprep.subr.mxu0 0.0
        %4061 = vmatpush1.msra.mxu0 0.0
        %4062 = vmatprep.subr.mxu0 0.0
        %4063 = vmatpush1.msra.mxu0 0.0
        %4064 = vmatprep.subr.mxu0 0.0
        %4065 = vmatpush1.msra.mxu0 0.0
        %4066 = vmatprep.subr.mxu0 0.0
        %4067 = vmatpush1.msra.mxu0 0.0
        %4068 = vmatprep.subr.mxu0 0.0
        %4069 = vmatpush1.msra.mxu0 0.0
        %4070 = vmatprep.subr.mxu0 0.0
        %4071 = vmatpush1.msra.mxu0 0.0
        %4072 = vmatprep.subr.mxu0 0.0
        %4073 = vmatpush1.msra.mxu0 0.0
        %4074 = vmatprep.subr.mxu0 0.0
        %4075 = vmatpush1.msra.mxu0 0.0
        %4076 = vmatprep.subr.mxu0 0.0
        %4077 = vmatpush1.msra.mxu0 0.0
        %4078 = vmatprep.subr.mxu0 0.0
        %4079 = vmatpush1.msra.mxu0 0.0
        %4080 = vmatprep.mubr.f32.mxu0 0.0
        %4081 = vmatmul.mubr.f32.gmra.mrb[0].mxu0 %v3990
        %v4082 = vpop.f32.mrb[0].mxu0
        %v4083 = vadd.f32 0.0, %v4082
        %v4084 = vpop.f32.mrb[0].mxu0
        %v4085 = vadd.f32 0.0, %v4084
        %4086 = vmatprep.mubr.f32.mxu0 0.0
        %4087 = vmatmul.mubr.f32.gmra.mrb[0].mxu0 %v3993
        %v4088 = vpop.f32.mrb[0].mxu0
        %v4089 = vadd.f32 0.0, %v4088
        %v4090 = vpop.f32.mrb[0].mxu0
        %v4091 = vadd.f32 0.0, %v4090
        %4092 = vmatprep.mubr.f32.mxu0 0.0
        %4093 = vmatmul.mubr.f32.gmra.mrb[0].mxu0 %v3996
        %v4094 = vpop.f32.mrb[0].mxu0
        %v4095 = vadd.f32 0.0, %v4094
        %v4096 = vpop.f32.mrb[0].mxu0
        %v4097 = vadd.f32 0.0, %v4096
        %4098 = vmatprep.mubr.f32.mxu0 0.0
        %4099 = vmatmul.mubr.f32.gmra.mrb[0].mxu0 %v3999
        %v4100 = vpop.f32.mrb[0].mxu0
        %v4101 = vadd.f32 0.0, %v4100
        %v4102 = vpop.f32.mrb[0].mxu0
        %v4103 = vadd.f32 0.0, %v4102
        %4104 = vmatprep.mubr.f32.mxu0 0.0
        %4105 = vmatmul.mubr.f32.gmra.mrb[0].mxu0 %v4002
        %v4106 = vpop.f32.mrb[0].mxu0
        %v4107 = vadd.f32 0.0, %v4106
        %v4108 = vpop.f32.mrb[0].mxu0
        %v4109 = vadd.f32 0.0, %v4108
        %4110 = vmatprep.mubr.f32.mxu0 0.0
        %4111 = vmatmul.mubr.f32.gmra.mrb[0].mxu0 %v4005
        %v4112 = vpop.f32.mrb[0].mxu0
        %v4113 = vadd.f32 0.0, %v4112
        %v4114 = vpop.f32.mrb[0].mxu0
        %v4115 = vadd.f32 0.0, %v4114
        %4116 = vmatprep.mubr.f32.mxu0 0.0
        %4117 = vmatmul.mubr.f32.gmra.mrb[0].mxu0 %v4008
        %v4118 = vpop.f32.mrb[0].mxu0
        %v4119 = vadd.f32 0.0, %v4118
        %v4120 = vpop.f32.mrb[0].mxu0
        %v4121 = vadd.f32 0.0, %v4120
        %4122 = vdwg.mxu0
        %v4124 = vsel %vm1996, %v3036, 0
        %v4127 = vsel %vm1996, %v3037, 0
        %v4130 = vsel %vm1996, %v3038, 0
        %v4133 = vsel %vm1996, %v3039, 0
        %v4136 = vsel %vm1996, %v3040, 0
        %v4139 = vsel %vm1996, %v3041, 0
        %v4142 = vsel %vm1996, %v3042, 0
        %v4145 = vsel %vm3071, %v575, 0
        %v4148 = vsel %vm3071, %v576, 0
        %4150 = vmatprep.subr.mxu0 %v574
        %4151 = vmatpush1.msra.mxu0 %v573
        %4152 = vmatprep.subr.mxu0 %v4148
        %4153 = vmatpush1.msra.mxu0 %v4145
        %4154 = vmatprep.subr.mxu0 0.0
        %4155 = vmatpush1.msra.mxu0 0.0
        %4156 = vmatprep.subr.mxu0 0.0
        %4157 = vmatpush1.msra.mxu0 0.0
        %4158 = vmatprep.subr.mxu0 0.0
        %4159 = vmatpush1.msra.mxu0 0.0
        %4160 = vmatprep.subr.mxu0 0.0
        %4161 = vmatpush1.msra.mxu0 0.0
        %4162 = vmatprep.subr.mxu0 0.0
        %4163 = vmatpush1.msra.mxu0 0.0
        %4164 = vmatprep.subr.mxu0 0.0
        %4165 = vmatpush1.msra.mxu0 0.0
        %4166 = vmatprep.subr.mxu0 0.0
        %4167 = vmatpush1.msra.mxu0 0.0
        %4168 = vmatprep.subr.mxu0 0.0
        %4169 = vmatpush1.msra.mxu0 0.0
        %4170 = vmatprep.subr.mxu0 0.0
        %4171 = vmatpush1.msra.mxu0 0.0
        %4172 = vmatprep.subr.mxu0 0.0
        %4173 = vmatpush1.msra.mxu0 0.0
        %4174 = vmatprep.subr.mxu0 0.0
        %4175 = vmatpush1.msra.mxu0 0.0
        %4176 = vmatprep.subr.mxu0 0.0
        %4177 = vmatpush1.msra.mxu0 0.0
        %4178 = vmatprep.subr.mxu0 0.0
        %4179 = vmatpush1.msra.mxu0 0.0
        %4180 = vmatprep.subr.mxu0 0.0
        %4181 = vmatpush1.msra.mxu0 0.0
        %4182 = vmatprep.subr.mxu0 0.0
        %4183 = vmatpush1.msra.mxu0 0.0
        %4184 = vmatprep.subr.mxu0 0.0
        %4185 = vmatpush1.msra.mxu0 0.0
        %4186 = vmatprep.subr.mxu0 0.0
        %4187 = vmatpush1.msra.mxu0 0.0
        %4188 = vmatprep.subr.mxu0 0.0
        %4189 = vmatpush1.msra.mxu0 0.0
        %4190 = vmatprep.subr.mxu0 0.0
        %4191 = vmatpush1.msra.mxu0 0.0
        %4192 = vmatprep.subr.mxu0 0.0
        %4193 = vmatpush1.msra.mxu0 0.0
        %4194 = vmatprep.subr.mxu0 0.0
        %4195 = vmatpush1.msra.mxu0 0.0
        %4196 = vmatprep.subr.mxu0 0.0
        %4197 = vmatpush1.msra.mxu0 0.0
        %4198 = vmatprep.subr.mxu0 0.0
        %4199 = vmatpush1.msra.mxu0 0.0
        %4200 = vmatprep.subr.mxu0 0.0
        %4201 = vmatpush1.msra.mxu0 0.0
        %4202 = vmatprep.subr.mxu0 0.0
        %4203 = vmatpush1.msra.mxu0 0.0
        %4204 = vmatprep.subr.mxu0 0.0
        %4205 = vmatpush1.msra.mxu0 0.0
        %4206 = vmatprep.subr.mxu0 0.0
        %4207 = vmatpush1.msra.mxu0 0.0
        %4208 = vmatprep.subr.mxu0 0.0
        %4209 = vmatpush1.msra.mxu0 0.0
        %4210 = vmatprep.subr.mxu0 0.0
        %4211 = vmatpush1.msra.mxu0 0.0
        %4212 = vmatprep.subr.mxu0 0.0
        %4213 = vmatpush1.msra.mxu0 0.0
        %4214 = vmatprep.mubr.f32.mxu0 0.0
        %4215 = vmatmul.mubr.f32.gmra.mrb[0].mxu0 %v4124
        %v4216 = vpop.f32.mrb[0].mxu0
        %v4217 = vadd.f32 0.0, %v4216
        %v4218 = vpop.f32.mrb[0].mxu0
        %v4219 = vadd.f32 0.0, %v4218
        %4220 = vmatprep.mubr.f32.mxu0 0.0
        %4221 = vmatmul.mubr.f32.gmra.mrb[0].mxu0 %v4127
        %v4222 = vpop.f32.mrb[0].mxu0
        %v4223 = vadd.f32 0.0, %v4222
        %v4224 = vpop.f32.mrb[0].mxu0
        %v4225 = vadd.f32 0.0, %v4224
        %4226 = vmatprep.mubr.f32.mxu0 0.0
        %4227 = vmatmul.mubr.f32.gmra.mrb[0].mxu0 %v4130
        %v4228 = vpop.f32.mrb[0].mxu0
        %v4229 = vadd.f32 0.0, %v4228
        %v4230 = vpop.f32.mrb[0].mxu0
        %v4231 = vadd.f32 0.0, %v4230
        %4232 = vmatprep.mubr.f32.mxu0 0.0
        %4233 = vmatmul.mubr.f32.gmra.mrb[0].mxu0 %v4133
        %v4234 = vpop.f32.mrb[0].mxu0
        %v4235 = vadd.f32 0.0, %v4234
        %v4236 = vpop.f32.mrb[0].mxu0
        %v4237 = vadd.f32 0.0, %v4236
        %4238 = vmatprep.mubr.f32.mxu0 0.0
        %4239 = vmatmul.mubr.f32.gmra.mrb[0].mxu0 %v4136
        %v4240 = vpop.f32.mrb[0].mxu0
        %v4241 = vadd.f32 0.0, %v4240
        %v4242 = vpop.f32.mrb[0].mxu0
        %v4243 = vadd.f32 0.0, %v4242
        %4244 = vmatprep.mubr.f32.mxu0 0.0
        %4245 = vmatmul.mubr.f32.gmra.mrb[0].mxu0 %v4139
        %v4246 = vpop.f32.mrb[0].mxu0
        %v4247 = vadd.f32 0.0, %v4246
        %v4248 = vpop.f32.mrb[0].mxu0
        %v4249 = vadd.f32 0.0, %v4248
        %4250 = vmatprep.mubr.f32.mxu0 0.0
        %4251 = vmatmul.mubr.f32.gmra.mrb[0].mxu0 %v4142
        %v4252 = vpop.f32.mrb[0].mxu0
        %v4253 = vadd.f32 0.0, %v4252
        %v4254 = vpop.f32.mrb[0].mxu0
        %v4255 = vadd.f32 0.0, %v4254
        %4256 = vdwg.mxu0
        %v4258 = vsel %vm1996, %v3043, 0
        %v4261 = vsel %vm1996, %v3044, 0
        %v4264 = vsel %vm1996, %v3045, 0
        %v4267 = vsel %vm1996, %v3046, 0
        %v4270 = vsel %vm1996, %v3047, 0
        %v4273 = vsel %vm1996, %v3048, 0
        %v4276 = vsel %vm1996, %v3049, 0
        %v4279 = vsel %vm3071, %v579, 0
        %v4282 = vsel %vm3071, %v580, 0
        %4284 = vmatprep.subr.mxu0 %v578
        %4285 = vmatpush1.msra.mxu0 %v577
        %4286 = vmatprep.subr.mxu0 %v4282
        %4287 = vmatpush1.msra.mxu0 %v4279
        %4288 = vmatprep.subr.mxu0 0.0
        %4289 = vmatpush1.msra.mxu0 0.0
        %4290 = vmatprep.subr.mxu0 0.0
        %4291 = vmatpush1.msra.mxu0 0.0
        %4292 = vmatprep.subr.mxu0 0.0
        %4293 = vmatpush1.msra.mxu0 0.0
        %4294 = vmatprep.subr.mxu0 0.0
        %4295 = vmatpush1.msra.mxu0 0.0
        %4296 = vmatprep.subr.mxu0 0.0
        %4297 = vmatpush1.msra.mxu0 0.0
        %4298 = vmatprep.subr.mxu0 0.0
        %4299 = vmatpush1.msra.mxu0 0.0
        %4300 = vmatprep.subr.mxu0 0.0
        %4301 = vmatpush1.msra.mxu0 0.0
        %4302 = vmatprep.subr.mxu0 0.0
        %4303 = vmatpush1.msra.mxu0 0.0
        %4304 = vmatprep.subr.mxu0 0.0
        %4305 = vmatpush1.msra.mxu0 0.0
        %4306 = vmatprep.subr.mxu0 0.0
        %4307 = vmatpush1.msra.mxu0 0.0
        %4308 = vmatprep.subr.mxu0 0.0
        %4309 = vmatpush1.msra.mxu0 0.0
        %4310 = vmatprep.subr.mxu0 0.0
        %4311 = vmatpush1.msra.mxu0 0.0
        %4312 = vmatprep.subr.mxu0 0.0
        %4313 = vmatpush1.msra.mxu0 0.0
        %4314 = vmatprep.subr.mxu0 0.0
        %4315 = vmatpush1.msra.mxu0 0.0
        %4316 = vmatprep.subr.mxu0 0.0
        %4317 = vmatpush1.msra.mxu0 0.0
        %4318 = vmatprep.subr.mxu0 0.0
        %4319 = vmatpush1.msra.mxu0 0.0
        %4320 = vmatprep.subr.mxu0 0.0
        %4321 = vmatpush1.msra.mxu0 0.0
        %4322 = vmatprep.subr.mxu0 0.0
        %4323 = vmatpush1.msra.mxu0 0.0
        %4324 = vmatprep.subr.mxu0 0.0
        %4325 = vmatpush1.msra.mxu0 0.0
        %4326 = vmatprep.subr.mxu0 0.0
        %4327 = vmatpush1.msra.mxu0 0.0
        %4328 = vmatprep.subr.mxu0 0.0
        %4329 = vmatpush1.msra.mxu0 0.0
        %4330 = vmatprep.subr.mxu0 0.0
        %4331 = vmatpush1.msra.mxu0 0.0
        %4332 = vmatprep.subr.mxu0 0.0
        %4333 = vmatpush1.msra.mxu0 0.0
        %4334 = vmatprep.subr.mxu0 0.0
        %4335 = vmatpush1.msra.mxu0 0.0
        %4336 = vmatprep.subr.mxu0 0.0
        %4337 = vmatpush1.msra.mxu0 0.0
        %4338 = vmatprep.subr.mxu0 0.0
        %4339 = vmatpush1.msra.mxu0 0.0
        %4340 = vmatprep.subr.mxu0 0.0
        %4341 = vmatpush1.msra.mxu0 0.0
        %4342 = vmatprep.subr.mxu0 0.0
        %4343 = vmatpush1.msra.mxu0 0.0
        %4344 = vmatprep.subr.mxu0 0.0
        %4345 = vmatpush1.msra.mxu0 0.0
        %4346 = vmatprep.subr.mxu0 0.0
        %4347 = vmatpush1.msra.mxu0 0.0
        %4348 = vmatprep.mubr.f32.mxu0 0.0
        %4349 = vmatmul.mubr.f32.gmra.mrb[0].mxu0 %v4258
        %v4350 = vpop.f32.mrb[0].mxu0
        %v4351 = vadd.f32 0.0, %v4350
        %v4352 = vpop.f32.mrb[0].mxu0
        %v4353 = vadd.f32 0.0, %v4352
        %4354 = vmatprep.mubr.f32.mxu0 0.0
        %4355 = vmatmul.mubr.f32.gmra.mrb[0].mxu0 %v4261
        %v4356 = vpop.f32.mrb[0].mxu0
        %v4357 = vadd.f32 0.0, %v4356
        %v4358 = vpop.f32.mrb[0].mxu0
        %v4359 = vadd.f32 0.0, %v4358
        %4360 = vmatprep.mubr.f32.mxu0 0.0
        %4361 = vmatmul.mubr.f32.gmra.mrb[0].mxu0 %v4264
        %v4362 = vpop.f32.mrb[0].mxu0
        %v4363 = vadd.f32 0.0, %v4362
        %v4364 = vpop.f32.mrb[0].mxu0
        %v4365 = vadd.f32 0.0, %v4364
        %4366 = vmatprep.mubr.f32.mxu0 0.0
        %4367 = vmatmul.mubr.f32.gmra.mrb[0].mxu0 %v4267
        %v4368 = vpop.f32.mrb[0].mxu0
        %v4369 = vadd.f32 0.0, %v4368
        %v4370 = vpop.f32.mrb[0].mxu0
        %v4371 = vadd.f32 0.0, %v4370
        %4372 = vmatprep.mubr.f32.mxu0 0.0
        %4373 = vmatmul.mubr.f32.gmra.mrb[0].mxu0 %v4270
        %v4374 = vpop.f32.mrb[0].mxu0
        %v4375 = vadd.f32 0.0, %v4374
        %v4376 = vpop.f32.mrb[0].mxu0
        %v4377 = vadd.f32 0.0, %v4376
        %4378 = vmatprep.mubr.f32.mxu0 0.0
        %4379 = vmatmul.mubr.f32.gmra.mrb[0].mxu0 %v4273
        %v4380 = vpop.f32.mrb[0].mxu0
        %v4381 = vadd.f32 0.0, %v4380
        %v4382 = vpop.f32.mrb[0].mxu0
        %v4383 = vadd.f32 0.0, %v4382
        %4384 = vmatprep.mubr.f32.mxu0 0.0
        %4385 = vmatmul.mubr.f32.gmra.mrb[0].mxu0 %v4276
        %v4386 = vpop.f32.mrb[0].mxu0
        %v4387 = vadd.f32 0.0, %v4386
        %v4388 = vpop.f32.mrb[0].mxu0
        %v4389 = vadd.f32 0.0, %v4388
        %4390 = vdwg.mxu0
        %4391 = vst [vmem:[%s331] sm:$0xff] %v3145
        %4392 = vst.msk [vmem:[%s331 + $0x8] sm:$0xff] %vm654, %v3147
        %4393 = vst [vmem:[%s331 + $0x10] sm:$0xff] %v3151
        %4394 = vst.msk [vmem:[%s331 + $0x18] sm:$0xff] %vm654, %v3153
        %4395 = vst [vmem:[%s331 + $0x20] sm:$0xff] %v3157
        %4396 = vst.msk [vmem:[%s331 + $0x28] sm:$0xff] %vm654, %v3159
        %4397 = vst [vmem:[%s331 + $0x30] sm:$0xff] %v3163
        %4398 = vst.msk [vmem:[%s331 + $0x38] sm:$0xff] %vm654, %v3165
        %4399 = vst [vmem:[%s331 + $0x40] sm:$0xff] %v3169
        %4400 = vst.msk [vmem:[%s331 + $0x48] sm:$0xff] %vm654, %v3171
        %4401 = vst [vmem:[%s331 + $0x50] sm:$0xff] %v3175
        %4402 = vst.msk [vmem:[%s331 + $0x58] sm:$0xff] %vm654, %v3177
        %4403 = vst [vmem:[%s331 + $0x60] sm:$0x3] %v3181
        %vm4404 = vcmask 582656
        %4405 = vst.msk [vmem:[%s331 + $0x68] sm:$0x3] %vm4404, %v3183
        %4406 = vst [vmem:[%s331 + $0x70] sm:$0xff] %v3279
        %4407 = vst.msk [vmem:[%s331 + $0x78] sm:$0xff] %vm654, %v3281
        %4408 = vst [vmem:[%s331 + $0x80] sm:$0xff] %v3285
        %4409 = vst.msk [vmem:[%s331 + $0x88] sm:$0xff] %vm654, %v3287
        %4410 = vst [vmem:[%s331 + $0x90] sm:$0xff] %v3291
        %4411 = vst.msk [vmem:[%s331 + $0x98] sm:$0xff] %vm654, %v3293
        %4412 = vst [vmem:[%s331 + $0xa0] sm:$0xff] %v3297
        %4413 = vst.msk [vmem:[%s331 + $0xa8] sm:$0xff] %vm654, %v3299
        %4414 = vst [vmem:[%s331 + $0xb0] sm:$0xff] %v3303
        %4415 = vst.msk [vmem:[%s331 + $0xb8] sm:$0xff] %vm654, %v3305
        %4416 = vst [vmem:[%s331 + $0xc0] sm:$0xff] %v3309
        %4417 = vst.msk [vmem:[%s331 + $0xc8] sm:$0xff] %vm654, %v3311
        %4418 = vst [vmem:[%s331 + $0xd0] sm:$0x3] %v3315
        %4419 = vst.msk [vmem:[%s331 + $0xd8] sm:$0x3] %vm4404, %v3317
        %4420 = vst [vmem:[%s331 + $0xe0] sm:$0xff] %v3413
        %4421 = vst.msk [vmem:[%s331 + $0xe8] sm:$0xff] %vm654, %v3415
        %4422 = vst [vmem:[%s331 + $0xf0] sm:$0xff] %v3419
        %4423 = vst.msk [vmem:[%s331 + $0xf8] sm:$0xff] %vm654, %v3421
        %4424 = vst [vmem:[%s331 + $0x100] sm:$0xff] %v3425
        %4425 = vst.msk [vmem:[%s331 + $0x108] sm:$0xff] %vm654, %v3427
        %4426 = vst [vmem:[%s331 + $0x110] sm:$0xff] %v3431
        %4427 = vst.msk [vmem:[%s331 + $0x118] sm:$0xff] %vm654, %v3433
        %4428 = vst [vmem:[%s331 + $0x120] sm:$0xff] %v3437
        %4429 = vst.msk [vmem:[%s331 + $0x128] sm:$0xff] %vm654, %v3439
        %4430 = vst [vmem:[%s331 + $0x130] sm:$0xff] %v3443
        %4431 = vst.msk [vmem:[%s331 + $0x138] sm:$0xff] %vm654, %v3445
        %4432 = vst [vmem:[%s331 + $0x140] sm:$0x3] %v3449
        %4433 = vst.msk [vmem:[%s331 + $0x148] sm:$0x3] %vm4404, %v3451
        %4434 = vst [vmem:[%s331 + $0x150] sm:$0xff] %v3547
        %4435 = vst.msk [vmem:[%s331 + $0x158] sm:$0xff] %vm654, %v3549
        %4436 = vst [vmem:[%s331 + $0x160] sm:$0xff] %v3553
        %4437 = vst.msk [vmem:[%s331 + $0x168] sm:$0xff] %vm654, %v3555
        %4438 = vst [vmem:[%s331 + $0x170] sm:$0xff] %v3559
        %4439 = vst.msk [vmem:[%s331 + $0x178] sm:$0xff] %vm654, %v3561
        %4440 = vst [vmem:[%s331 + $0x180] sm:$0xff] %v3565
        %4441 = vst.msk [vmem:[%s331 + $0x188] sm:$0xff] %vm654, %v3567
        %4442 = vst [vmem:[%s331 + $0x190] sm:$0xff] %v3571
        %4443 = vst.msk [vmem:[%s331 + $0x198] sm:$0xff] %vm654, %v3573
        %4444 = vst [vmem:[%s331 + $0x1a0] sm:$0xff] %v3577
        %4445 = vst.msk [vmem:[%s331 + $0x1a8] sm:$0xff] %vm654, %v3579
        %4446 = vst [vmem:[%s331 + $0x1b0] sm:$0x3] %v3583
        %4447 = vst.msk [vmem:[%s331 + $0x1b8] sm:$0x3] %vm4404, %v3585
        %4448 = vst [vmem:[%s331 + $0x1c0] sm:$0xff] %v3681
        %4449 = vst.msk [vmem:[%s331 + $0x1c8] sm:$0xff] %vm654, %v3683
        %4450 = vst [vmem:[%s331 + $0x1d0] sm:$0xff] %v3687
        %4451 = vst.msk [vmem:[%s331 + $0x1d8] sm:$0xff] %vm654, %v3689
        %4452 = vst [vmem:[%s331 + $0x1e0] sm:$0xff] %v3693
        %4453 = vst.msk [vmem:[%s331 + $0x1e8] sm:$0xff] %vm654, %v3695
        %4454 = vst [vmem:[%s331 + $0x1f0] sm:$0xff] %v3699
        %4455 = vst.msk [vmem:[%s331 + $0x1f8] sm:$0xff] %vm654, %v3701
        %4456 = vst [vmem:[%s331 + $0x200] sm:$0xff] %v3705
        %4457 = vst.msk [vmem:[%s331 + $0x208] sm:$0xff] %vm654, %v3707
        %4458 = vst [vmem:[%s331 + $0x210] sm:$0xff] %v3711
        %4459 = vst.msk [vmem:[%s331 + $0x218] sm:$0xff] %vm654, %v3713
        %4460 = vst [vmem:[%s331 + $0x220] sm:$0x3] %v3717
        %4461 = vst.msk [vmem:[%s331 + $0x228] sm:$0x3] %vm4404, %v3719
        %4462 = vst [vmem:[%s331 + $0x230] sm:$0xff] %v3815
        %4463 = vst.msk [vmem:[%s331 + $0x238] sm:$0xff] %vm654, %v3817
        %4464 = vst [vmem:[%s331 + $0x240] sm:$0xff] %v3821
        %4465 = vst.msk [vmem:[%s331 + $0x248] sm:$0xff] %vm654, %v3823
        %4466 = vst [vmem:[%s331 + $0x250] sm:$0xff] %v3827
        %4467 = vst.msk [vmem:[%s331 + $0x258] sm:$0xff] %vm654, %v3829
        %4468 = vst [vmem:[%s331 + $0x260] sm:$0xff] %v3833
        %4469 = vst.msk [vmem:[%s331 + $0x268] sm:$0xff] %vm654, %v3835
        %4470 = vst [vmem:[%s331 + $0x270] sm:$0xff] %v3839
        %4471 = vst.msk [vmem:[%s331 + $0x278] sm:$0xff] %vm654, %v3841
        %4472 = vst [vmem:[%s331 + $0x280] sm:$0xff] %v3845
        %4473 = vst.msk [vmem:[%s331 + $0x288] sm:$0xff] %vm654, %v3847
        %4474 = vst [vmem:[%s331 + $0x290] sm:$0x3] %v3851
        %4475 = vst.msk [vmem:[%s331 + $0x298] sm:$0x3] %vm4404, %v3853
        %4476 = vst [vmem:[%s331 + $0x2a0] sm:$0xff] %v3949
        %4477 = vst.msk [vmem:[%s331 + $0x2a8] sm:$0xff] %vm654, %v3951
        %4478 = vst [vmem:[%s331 + $0x2b0] sm:$0xff] %v3955
        %4479 = vst.msk [vmem:[%s331 + $0x2b8] sm:$0xff] %vm654, %v3957
        %4480 = vst [vmem:[%s331 + $0x2c0] sm:$0xff] %v3961
        %4481 = vst.msk [vmem:[%s331 + $0x2c8] sm:$0xff] %vm654, %v3963
        %4482 = vst [vmem:[%s331 + $0x2d0] sm:$0xff] %v3967
        %4483 = vst.msk [vmem:[%s331 + $0x2d8] sm:$0xff] %vm654, %v3969
        %4484 = vst [vmem:[%s331 + $0x2e0] sm:$0xff] %v3973
        %4485 = vst.msk [vmem:[%s331 + $0x2e8] sm:$0xff] %vm654, %v3975
        %4486 = vst [vmem:[%s331 + $0x2f0] sm:$0xff] %v3979
        %4487 = vst.msk [vmem:[%s331 + $0x2f8] sm:$0xff] %vm654, %v3981
        %4488 = vst [vmem:[%s331 + $0x300] sm:$0x3] %v3985
        %4489 = vst.msk [vmem:[%s331 + $0x308] sm:$0x3] %vm4404, %v3987
        %4490 = vst [vmem:[%s331 + $0x310] sm:$0xff] %v4083
        %4491 = vst.msk [vmem:[%s331 + $0x318] sm:$0xff] %vm654, %v4085
        %4492 = vst [vmem:[%s331 + $0x320] sm:$0xff] %v4089
        %4493 = vst.msk [vmem:[%s331 + $0x328] sm:$0xff] %vm654, %v4091
        %4494 = vst [vmem:[%s331 + $0x330] sm:$0xff] %v4095
        %4495 = vst.msk [vmem:[%s331 + $0x338] sm:$0xff] %vm654, %v4097
        %4496 = vst [vmem:[%s331 + $0x340] sm:$0xff] %v4101
        %4497 = vst.msk [vmem:[%s331 + $0x348] sm:$0xff] %vm654, %v4103
        %4498 = vst [vmem:[%s331 + $0x350] sm:$0xff] %v4107
        %4499 = vst.msk [vmem:[%s331 + $0x358] sm:$0xff] %vm654, %v4109
        %4500 = vst [vmem:[%s331 + $0x360] sm:$0xff] %v4113
        %4501 = vst.msk [vmem:[%s331 + $0x368] sm:$0xff] %vm654, %v4115
        %4502 = vst [vmem:[%s331 + $0x370] sm:$0x3] %v4119
        %4503 = vst.msk [vmem:[%s331 + $0x378] sm:$0x3] %vm4404, %v4121
        %4504 = vst [vmem:[%s331 + $0x380] sm:$0xff] %v4217
        %4505 = vst.msk [vmem:[%s331 + $0x388] sm:$0xff] %vm654, %v4219
        %4506 = vst [vmem:[%s331 + $0x390] sm:$0xff] %v4223
        %4507 = vst.msk [vmem:[%s331 + $0x398] sm:$0xff] %vm654, %v4225
        %4508 = vst [vmem:[%s331 + $0x3a0] sm:$0xff] %v4229
        %4509 = vst.msk [vmem:[%s331 + $0x3a8] sm:$0xff] %vm654, %v4231
        %4510 = vst [vmem:[%s331 + $0x3b0] sm:$0xff] %v4235
        %4511 = vst.msk [vmem:[%s331 + $0x3b8] sm:$0xff] %vm654, %v4237
        %4512 = vst [vmem:[%s331 + $0x3c0] sm:$0xff] %v4241
        %4513 = vst.msk [vmem:[%s331 + $0x3c8] sm:$0xff] %vm654, %v4243
        %4514 = vst [vmem:[%s331 + $0x3d0] sm:$0xff] %v4247
        %4515 = vst.msk [vmem:[%s331 + $0x3d8] sm:$0xff] %vm654, %v4249
        %4516 = vst [vmem:[%s331 + $0x3e0] sm:$0x3] %v4253
        %4517 = vst.msk [vmem:[%s331 + $0x3e8] sm:$0x3] %vm4404, %v4255
        %4518 = vst [vmem:[%s331 + $0x3f0] sm:$0xff] %v4351
        %4519 = vst.msk [vmem:[%s331 + $0x3f8] sm:$0xff] %vm654, %v4353
        %4520 = vst [vmem:[%s331 + $0x400] sm:$0xff] %v4357
        %4521 = vst.msk [vmem:[%s331 + $0x408] sm:$0xff] %vm654, %v4359
        %4522 = vst [vmem:[%s331 + $0x410] sm:$0xff] %v4363
        %4523 = vst.msk [vmem:[%s331 + $0x418] sm:$0xff] %vm654, %v4365
        %4524 = vst [vmem:[%s331 + $0x420] sm:$0xff] %v4369
        %4525 = vst.msk [vmem:[%s331 + $0x428] sm:$0xff] %vm654, %v4371
        %4526 = vst [vmem:[%s331 + $0x430] sm:$0xff] %v4375
        %4527 = vst.msk [vmem:[%s331 + $0x438] sm:$0xff] %vm654, %v4377
        %4528 = vst [vmem:[%s331 + $0x440] sm:$0xff] %v4381
        %4529 = vst.msk [vmem:[%s331 + $0x448] sm:$0xff] %vm654, %v4383
        %4530 = vst [vmem:[%s331 + $0x450] sm:$0x3] %v4387
        %4531 = vst.msk [vmem:[%s331 + $0x458] sm:$0x3] %vm4404, %v4389
        %s4532 = sand.u32 %s199, 1
        %s4533 = scalar_lea.sflag [#allocation6], %s4532
        %s4534 = sand.u32 %s199, 1
        %s4535 = smul.addr %s4534, 1120
        %s4536 = scalar_lea.vmem [#allocation5], %s4535
        // Predicated region
        $region49: #{tpu_custom_call.1} parent=47 // pred_check
          %p4537 = pneg %p209
        $region50: #{tpu_custom_call.1} parent=47 // pred_check_branch
          %4539 = sbr.rel (%p4537) target = $region52
        $region51: #{tpu_custom_call.1} parent=47 // pred_region
          %s4540 = smul.u32 10, %s24
          %s4542 = ssub.s32 17920, 17920
          %4543 = vsyncadd %s4533, %s4542
          %s4544 = smul.addr %s4540, 14
          %s4545 = smul.addr %s4544, 128
          %s4546 = scalar_lea.hbm %s7, %s4545
          %s4547 = sshll.u32 %s4536, 4
          %s4548 = int_to_ptr.vmem [resolvable:$true] %s4547
          %4553 = dma.vmem_to_hbm [thread:$0]  %s4548, 17920, %s4546, %s4533, 256, 256, 16
        $region52: #{tpu_custom_call.1} parent=47 // pred_fallthru
          _
      $region48: #{tpu_custom_call.1} parent=5 // pred_fallthru
        _
      %p4554 = scmp.le.s32.totalorder 2, %s19
      // Predicated region
      $region53: #{tpu_custom_call.1} parent=5 // pred_check
        %p4555 = pneg %p4554
      $region54: #{tpu_custom_call.1} parent=5 // pred_check_branch
        %4557 = sbr.rel (%p4555) target = $region56
      $region55: #{tpu_custom_call.1} parent=5 // pred_region
        %s4558 = ssub.s32 %s19, 2
        // Predicated region
        $region57: #{tpu_custom_call.1} parent=55 // pred_check
          %p4559 = pneg %p215
        $region58: #{tpu_custom_call.1} parent=55 // pred_check_branch
          %4561 = sbr.rel (%p4559) target = $region60
        $region59: #{tpu_custom_call.1} parent=55 // pred_region
          %s4562 = sand.u32 %s200, 1
          %s4563 = scalar_lea.sflag [#allocation6], %s4562
          %s4564 = sand.u32 %s200, 1
          %s4565 = smul.addr %s4564, 1120
          %s4566 = scalar_lea.vmem [#allocation5], %s4565
          %4567 = dma.done %s4563, 17920
        $region60: #{tpu_custom_call.1} parent=55 // pred_fallthru
          _
      $region56: #{tpu_custom_call.1} parent=5 // pred_fallthru
        _
    $region6: #{tpu_custom_call.1} parent=1 // loop_footer
      %s23 = sadd.s32 1, %s19
    $region7: #{tpu_custom_call.1} parent=1 // loop_footer_branch
      %18 = sbr.rel target = $region3
    $region8: #{tpu_custom_call.1} parent=1 // loop_exit
      _
    %4568 = vsyncpa [#allocation6], 1
    %s4569 = scalar_lea.sflag [#allocation6], 1
    %4570 = vsyncpa %s4569, 1

</llo_original>
